<compile_context>
chip_gen: v6e
topology: v6e:2x2x1
jax: 0.10.0
libtpu: 0.0.40
codegen_flags: <defaults>
</compile_context>

<pallas_src>
import numpy as np
from functools import partial

import jax
import jax.numpy as jnp
from jax import lax
from jax.experimental import pallas as pl
from jax.experimental.pallas import tpu as pltpu

# Static geometry implied by the module (Linear(192, ...) forces a 42x28 input image).
H_IN, W_IN = 42, 28
C1, C2 = 32, 64
KH, KW = 3, 5
H1, W1O = H_IN - KH + 1, W_IN - KW + 1        # 40, 24  (conv1 output)
HP1, WP1 = H1 // 3, W1O // 3                  # 13, 8   (pool1 output)
H2, W2O = HP1 - KH + 1, WP1 - KW + 1          # 11, 4   (conv2 output)
HP2, WP2 = H2 // 3, W2O // 3                  # 3, 1    (pool2 output)
FLAT = C2 * HP2 * WP2                         # 192
HID = 128
NOUT = 20
OUT_PAD = 128                                 # lane-dense (unmasked) output width
K1 = KH * W_IN                                # 84   conv1 im2col depth (kh folded into K)
N1 = 3 * WP1 * C1                             # 768  conv1 output lanes, order (w%3, w//3, c)
K2 = WP1 * C1                                 # 256  conv2 per-kh depth, lanes (w1, c1)
N2 = W2O * C2                                 # 256  conv2 output lanes, order (w2, c2)


def cnn_kernel(x_ref, w1_ref, b1_ref, w2_ref, b2_ref,
               wl1_ref, bl1_ref, wl2_ref, bl2_ref, out_ref):
    B = x_ref.shape[1]

    # ---- conv1 (1 -> 32, 3x5) + ReLU: one bf16 (B*40, 84) @ (84, 768) matmul, f32 accumulate ----
    xcol = x_ref[...].reshape(H1 * B, K1)                                   # (40B, 84) bf16
    y1 = jnp.dot(xcol, w1_ref[...], preferred_element_type=jnp.float32)     # (40B, 768) f32
    y1 = jnp.maximum(y1 + b1_ref[...], 0.0).reshape(H1, B, N1)              # (40, B, 768)

    # ---- maxpool1 3x3 / stride 3 (floor; row 39 dropped), H- and W-pool fused per output row ----
    # Lanes are ordered (w%3, w//3, c) -> the W-pool is a max over three ALIGNED 256-lane thirds.
    # The (13, B, 768) intermediate is never materialized; result is cast to bf16 for conv2.
    pooled = []
    for i in range(HP1):
        hmax = jnp.maximum(jnp.maximum(y1[3 * i], y1[3 * i + 1]), y1[3 * i + 2])   # (B, 768)
        pooled.append(jnp.maximum(jnp.maximum(hmax[:, 0:K2], hmax[:, K2:2 * K2]),
                                  hmax[:, 2 * K2:3 * K2]).astype(jnp.bfloat16))     # (B, 256)
    pw = jnp.stack(pooled, axis=0)                                                   # (13, B, 256) bf16

    # ---- conv2 (32 -> 64, 3x5) + ReLU: 3 full-depth bf16 (B*11, 256) @ (256, 256) matmuls --------
    z2 = b2_ref[...]                                                         # (1, 256) f32 bias
    for kh in range(KH):
        a2 = pw[kh:kh + H2].reshape(H2 * B, K2)                              # (11B, 256) bf16
        z2 = z2 + jnp.dot(a2, w2_ref[kh], preferred_element_type=jnp.float32)
    z2 = jnp.maximum(z2, 0.0).reshape(H2, B, N2)                             # (11, B, 256) f32

    # ---- maxpool2 3x3 / stride 3 (floor; w2=3 and rows 9,10 dropped) ----------------------------
    mw = jnp.maximum(jnp.maximum(z2[..., 0:C2], z2[..., C2:2 * C2]),
                     z2[..., 2 * C2:3 * C2])                                 # (11, B, 64) f32

    # ---- flatten + linear1 + dropout(identity) + linear2 ---------------------------------------
    # TODO(synk): nn.Dropout(0.5) is implemented as identity (inference mode); training-mode
    #             stochastic masking / scaling is intentionally omitted.
    h = bl1_ref[...]                                                         # (1, 128) f32
    for i in range(HP2):
        hp_i = jnp.maximum(jnp.maximum(mw[3 * i], mw[3 * i + 1]),
                           mw[3 * i + 2]).astype(jnp.bfloat16)               # (B, 64) bf16
        h = h + jnp.dot(hp_i, wl1_ref[i], preferred_element_type=jnp.float32)        # (B, 128) f32
    logits = jnp.dot(h.astype(jnp.bfloat16), wl2_ref[...],
                     preferred_element_type=jnp.float32) + bl2_ref[...]               # (B, 128) f32
    out_ref[...] = logits


def init_params(key):
    ks = jax.random.split(key, 8)
    s = 0.1
    return {
        'w1':  s * jax.random.normal(ks[0], (C1, 1, KH, KW), jnp.float32),
        'b1':  s * jax.random.normal(ks[1], (C1,), jnp.float32),
        'w2':  s * jax.random.normal(ks[2], (C2, C1, KH, KW), jnp.float32),
        'b2':  s * jax.random.normal(ks[3], (C2,), jnp.float32),
        'wl1': s * jax.random.normal(ks[4], (HID, FLAT), jnp.float32),
        'bl1': s * jax.random.normal(ks[5], (HID,), jnp.float32),
        'wl2': s * jax.random.normal(ks[6], (NOUT, HID), jnp.float32),
        'bl2': s * jax.random.normal(ks[7], (NOUT,), jnp.float32),
    }


def prepare_kernel_params(params):
    """One-time host-side re-layout of PyTorch-convention parameters (hoisted out of the forward).
    Matmul weights are stored bf16 (MXU-native on all generations); biases stay f32."""
    w1 = np.asarray(params['w1'], np.float32)                    # (32, 1, 3, 5) = (c, 1, kh, kw)
    # conv1 Toeplitz: w1m[kh*28 + u, (w%3)*256 + (w//3)*32 + c] = W1[c, 0, kh, u - w] (0 <= u-w < 5)
    w1m = np.zeros((K1, N1), np.float32)
    for kh in range(KH):
        for w in range(W1O):
            col0 = (w % 3) * K2 + (w // 3) * C1
            for kw in range(KW):
                w1m[kh * W_IN + w + kw, col0:col0 + C1] = w1[:, 0, kh, kw]
    b1m = np.tile(np.asarray(params['b1'], np.float32), 3 * WP1)[None, :]          # (1, 768)

    w2 = np.asarray(params['w2'], np.float32)                    # (64, 32, 3, 5) = (c2, c1, kh, kw)
    # conv2 W-Toeplitz per kh: w2m[kh, w1*32 + c1, w2*64 + c2] = W2[c2, c1, kh, w1 - w2] (0 <= w1-w2 < 5)
    w2m = np.zeros((KH, K2, N2), np.float32)
    for kh in range(KH):
        for w2o in range(W2O):
            for kw in range(KW):
                r0 = (w2o + kw) * C1
                w2m[kh, r0:r0 + C1, w2o * C2:(w2o + 1) * C2] = w2[:, :, kh, kw].T
    b2m = np.tile(np.asarray(params['b2'], np.float32), W2O)[None, :]              # (1, 256)

    wl1_pt = np.asarray(params['wl1'], np.float32)               # (128, 192); PyTorch flat idx = c2*3 + i
    wl1m = np.transpose(wl1_pt.reshape(HID, C2, HP2), (2, 1, 0))                   # (3, 64, 128): [i, c2, o]
    bl1m = np.asarray(params['bl1'], np.float32)[None, :]                          # (1, 128)

    wl2_pt = np.asarray(params['wl2'], np.float32)               # (20, 128)
    wl2m = np.zeros((HID, OUT_PAD), np.float32)
    wl2m[:, :NOUT] = wl2_pt.T                                                      # (128, 128), zero-padded
    bl2m = np.zeros((1, OUT_PAD), np.float32)
    bl2m[0, :NOUT] = np.asarray(params['bl2'], np.float32)                         # (1, 128), zero-padded

    return (jnp.asarray(w1m, jnp.bfloat16), jnp.asarray(b1m, jnp.float32),
            jnp.asarray(w2m, jnp.bfloat16), jnp.asarray(b2m, jnp.float32),
            jnp.asarray(wl1m, jnp.bfloat16), jnp.asarray(bl1m, jnp.float32),
            jnp.asarray(wl2m, jnp.bfloat16), jnp.asarray(bl2m, jnp.float32))


def _round_up(n, m):
    return ((n + m - 1) // m) * m


@partial(jax.jit, static_argnames=("batch_block",))
def cnn_forward(x, kernel_params, *, batch_block=128):
    """x: (N, 1, 42, 28) float32 NCHW.  kernel_params: output of prepare_kernel_params.
    Returns (N, 10), (N, 10) logits for the two digits."""
    N = x.shape[0]
    # Batch block: 16-aligned (bf16 sublane packing); default 128 keeps VMEM residency ~25 MB,
    # which fits v7x's 64 MiB as well as v5e/v6e's 128 MiB.
    B = min(_round_up(batch_block, 16), _round_up(N, 16))
    n_pad = _round_up(N, B)
    # v7x megacore: when the padded batch allows it, ensure >= 2 grid steps so both TCs get work.
    if n_pad // B < 2 and n_pad >= 32:
        B = _round_up(n_pad // 2, 16)
        n_pad = _round_up(N, B)

    # Cast to bf16 BEFORE the im2col concat/transpose (halves wrapper-side HBM traffic); the whole
    # pad + concat + transpose is fused with the pallas_call under this jit.
    x_hw = x[:, 0, :, :].astype(jnp.bfloat16)                                  # (N, 42, 28)
    if n_pad != N:
        x_hw = jnp.pad(x_hw, ((0, n_pad - N), (0, 0), (0, 0)))
    # conv1 im2col over kh (pure layout plumbing): xcol[n, h, kh*28 + u] = x[n, h+kh, u]
    xcol = jnp.concatenate([x_hw[:, kh:kh + H1, :] for kh in range(KH)], axis=-1)   # (n_pad, 40, 84)
    xcol = jnp.transpose(xcol, (1, 0, 2))                                           # (40, n_pad, 84)

    w1m, b1m, w2m, b2m, wl1m, bl1m, wl2m, bl2m = kernel_params

    def const_spec(arr):
        nd = arr.ndim
        return pl.BlockSpec(arr.shape, lambda n, _nd=nd: (0,) * _nd)

    out = pl.pallas_call(
        cnn_kernel,
        out_shape=jax.ShapeDtypeStruct((n_pad, OUT_PAD), jnp.float32),
        grid_spec=pltpu.PrefetchScalarGridSpec(
            num_scalar_prefetch=0,
            grid=(n_pad // B,),
            in_specs=[
                pl.BlockSpec((H1, B, K1), lambda n: (0, n, 0)),
                const_spec(w1m), const_spec(b1m),
                const_spec(w2m), const_spec(b2m),
                const_spec(wl1m), const_spec(bl1m),
                const_spec(wl2m), const_spec(bl2m),
            ],
            out_specs=pl.BlockSpec((B, OUT_PAD), lambda n: (n, 0)),
        ),
        compiler_params=pltpu.CompilerParams(
            dimension_semantics=("parallel",),
            vmem_limit_bytes=48 * 1024 * 1024,
        ),
    )(xcol, w1m, b1m, w2m, b2m, wl1m, bl1m, wl2m, bl2m)

    logits = out[:N, :NOUT]
    return logits[:, :10], logits[:, 10:]


def cnn_reference(x, params):
    """Pure-JAX f32 reference mirroring the PyTorch forward (dropout in eval mode)."""
    dn = ('NCHW', 'OIHW', 'NCHW')
    y = lax.conv_general_dilated(x, params['w1'], (1, 1), 'VALID', dimension_numbers=dn)
    y = jnp.maximum(y + params['b1'][None, :, None, None], 0.0)
    y = lax.reduce_window(y, -jnp.inf, lax.max, (1, 1, 3, 3), (1, 1, 3, 3), 'VALID')
    y = lax.conv_general_dilated(y, params['w2'], (1, 1), 'VALID', dimension_numbers=dn)
    y = jnp.maximum(y + params['b2'][None, :, None, None], 0.0)
    y = lax.reduce_window(y, -jnp.inf, lax.max, (1, 1, 3, 3), (1, 1, 3, 3), 'VALID')
    y = y.reshape(y.shape[0], -1)                                     # (N, 192), PyTorch flatten order
    y = y @ params['wl1'].T + params['bl1']
    y = y @ params['wl2'].T + params['bl2']
    return y[:, :10], y[:, 10:]


if __name__ == "__main__":
    key = jax.random.PRNGKey(0)
    pkey, xkey = jax.random.split(key)
    params = init_params(pkey)
    kparams = prepare_kernel_params(params)       # host-side re-layout, once per parameter set

    x = jax.random.normal(xkey, (2, 1, H_IN, W_IN), jnp.float32)      # batch=2, NCHW

    out1, out2 = cnn_forward(x, kparams)
    (out1, out2) = jax.block_until_ready((out1, out2))

    ref1, ref2 = cnn_reference(x, params)
    # bf16 MXU path vs f32 reference: tolerance widened accordingly.
    np.testing.assert_allclose(np.asarray(out1), np.asarray(ref1), rtol=5e-2, atol=5e-2)
    np.testing.assert_allclose(np.asarray(out2), np.asarray(ref2), rtol=5e-2, atol=5e-2)

    print("KERNEL_OK")
</pallas_src>

<mosaic_0001>
module attributes {stable_mosaic.version = 11 : i64} {
  func.func @cnn_kernel(%arg0: i32, %arg1: memref<40x16x84xbf16, #tpu.memory_space<vmem>>, %arg2: memref<84x768xbf16, #tpu.memory_space<vmem>>, %arg3: memref<1x768xf32, #tpu.memory_space<vmem>>, %arg4: memref<3x256x256xbf16, #tpu.memory_space<vmem>>, %arg5: memref<1x256xf32, #tpu.memory_space<vmem>>, %arg6: memref<3x64x128xbf16, #tpu.memory_space<vmem>>, %arg7: memref<1x128xf32, #tpu.memory_space<vmem>>, %arg8: memref<128x128xbf16, #tpu.memory_space<vmem>>, %arg9: memref<1x128xf32, #tpu.memory_space<vmem>>, %arg10: memref<16x128xf32, #tpu.memory_space<vmem>>) attributes {dimension_semantics = [#tpu.dimension_semantics<parallel>], iteration_bounds = array<i64: 1>, scalar_prefetch = 0 : i64, scratch_operands = 0 : i64, tpu.core_type = #tpu.core_type<tc>, window_params = [{transform_indices = @transform_0, window_bounds = array<i64: 40, 16, 84>}, {pipeline_mode = #tpu.pipeline_mode<synchronous>, transform_indices = @transform_1, window_bounds = array<i64: 84, 768>}, {pipeline_mode = #tpu.pipeline_mode<synchronous>, transform_indices = @transform_2, window_bounds = array<i64: 1, 768>}, {pipeline_mode = #tpu.pipeline_mode<synchronous>, transform_indices = @transform_3, window_bounds = array<i64: 3, 256, 256>}, {pipeline_mode = #tpu.pipeline_mode<synchronous>, transform_indices = @transform_4, window_bounds = array<i64: 1, 256>}, {pipeline_mode = #tpu.pipeline_mode<synchronous>, transform_indices = @transform_5, window_bounds = array<i64: 3, 64, 128>}, {pipeline_mode = #tpu.pipeline_mode<synchronous>, transform_indices = @transform_6, window_bounds = array<i64: 1, 128>}, {pipeline_mode = #tpu.pipeline_mode<synchronous>, transform_indices = @transform_7, window_bounds = array<i64: 128, 128>}, {pipeline_mode = #tpu.pipeline_mode<synchronous>, transform_indices = @transform_8, window_bounds = array<i64: 1, 128>}, {transform_indices = @transform_9, window_bounds = array<i64: 16, 128>}]} {
    %c0 = arith.constant 0 : index
    %c0_0 = arith.constant 0 : index
    %c0_1 = arith.constant 0 : index
    %0 = vector.load %arg1[%c0, %c0_0, %c0_1] : memref<40x16x84xbf16, #tpu.memory_space<vmem>>, vector<40x16x84xbf16>
    %1 = vector.shape_cast %0 : vector<40x16x84xbf16> to vector<640x84xbf16>
    %c0_2 = arith.constant 0 : index
    %c0_3 = arith.constant 0 : index
    %2 = vector.load %arg2[%c0_2, %c0_3] : memref<84x768xbf16, #tpu.memory_space<vmem>>, vector<84x768xbf16>
    %cst = arith.constant dense<0.000000e+00> : vector<640x768xf32>
    %3 = tpu.matmul %1, %2, %cst {dimension_numbers = #tpu.dot_dimension_numbers<[1], [0], [0], [1], [0, 0, 1, 1], [], []>} : vector<640x84xbf16>, vector<84x768xbf16>, vector<640x768xf32> -> vector<640x768xf32>
    %c0_4 = arith.constant 0 : index
    %c0_5 = arith.constant 0 : index
    %4 = vector.load %arg3[%c0_4, %c0_5] : memref<1x768xf32, #tpu.memory_space<vmem>>, vector<1x768xf32>
    %5 = vector.broadcast %4 : vector<1x768xf32> to vector<640x768xf32>
    %6 = arith.addf %3, %5 : vector<640x768xf32>
    %cst_6 = arith.constant 0.000000e+00 : f32
    %7 = vector.broadcast %cst_6 : f32 to vector<640x768xf32>
    %8 = arith.maximumf %6, %7 : vector<640x768xf32>
    %9 = vector.shape_cast %8 : vector<640x768xf32> to vector<40x16x768xf32>
    %10 = vector.extract_strided_slice %9 {offsets = [0, 0, 0], sizes = [1, 16, 768], strides = [1, 1, 1]} : vector<40x16x768xf32> to vector<1x16x768xf32>
    %11 = vector.shape_cast %10 : vector<1x16x768xf32> to vector<16x768xf32>
    %12 = vector.extract_strided_slice %9 {offsets = [1, 0, 0], sizes = [1, 16, 768], strides = [1, 1, 1]} : vector<40x16x768xf32> to vector<1x16x768xf32>
    %13 = vector.shape_cast %12 : vector<1x16x768xf32> to vector<16x768xf32>
    %14 = arith.maximumf %11, %13 : vector<16x768xf32>
    %15 = vector.extract_strided_slice %9 {offsets = [2, 0, 0], sizes = [1, 16, 768], strides = [1, 1, 1]} : vector<40x16x768xf32> to vector<1x16x768xf32>
    %16 = vector.shape_cast %15 : vector<1x16x768xf32> to vector<16x768xf32>
    %17 = arith.maximumf %14, %16 : vector<16x768xf32>
    %18 = vector.extract_strided_slice %17 {offsets = [0, 0], sizes = [16, 256], strides = [1, 1]} : vector<16x768xf32> to vector<16x256xf32>
    %19 = vector.extract_strided_slice %17 {offsets = [0, 256], sizes = [16, 256], strides = [1, 1]} : vector<16x768xf32> to vector<16x256xf32>
    %20 = arith.maximumf %18, %19 : vector<16x256xf32>
    %21 = vector.extract_strided_slice %17 {offsets = [0, 512], sizes = [16, 256], strides = [1, 1]} : vector<16x768xf32> to vector<16x256xf32>
    %22 = arith.maximumf %20, %21 : vector<16x256xf32>
    %23 = arith.truncf %22 : vector<16x256xf32> to vector<16x256xbf16>
    %24 = vector.extract_strided_slice %9 {offsets = [3, 0, 0], sizes = [1, 16, 768], strides = [1, 1, 1]} : vector<40x16x768xf32> to vector<1x16x768xf32>
    %25 = vector.shape_cast %24 : vector<1x16x768xf32> to vector<16x768xf32>
    %26 = vector.extract_strided_slice %9 {offsets = [4, 0, 0], sizes = [1, 16, 768], strides = [1, 1, 1]} : vector<40x16x768xf32> to vector<1x16x768xf32>
    %27 = vector.shape_cast %26 : vector<1x16x768xf32> to vector<16x768xf32>
    %28 = arith.maximumf %25, %27 : vector<16x768xf32>
    %29 = vector.extract_strided_slice %9 {offsets = [5, 0, 0], sizes = [1, 16, 768], strides = [1, 1, 1]} : vector<40x16x768xf32> to vector<1x16x768xf32>
    %30 = vector.shape_cast %29 : vector<1x16x768xf32> to vector<16x768xf32>
    %31 = arith.maximumf %28, %30 : vector<16x768xf32>
    %32 = vector.extract_strided_slice %31 {offsets = [0, 0], sizes = [16, 256], strides = [1, 1]} : vector<16x768xf32> to vector<16x256xf32>
    %33 = vector.extract_strided_slice %31 {offsets = [0, 256], sizes = [16, 256], strides = [1, 1]} : vector<16x768xf32> to vector<16x256xf32>
    %34 = arith.maximumf %32, %33 : vector<16x256xf32>
    %35 = vector.extract_strided_slice %31 {offsets = [0, 512], sizes = [16, 256], strides = [1, 1]} : vector<16x768xf32> to vector<16x256xf32>
    %36 = arith.maximumf %34, %35 : vector<16x256xf32>
    %37 = arith.truncf %36 : vector<16x256xf32> to vector<16x256xbf16>
    %38 = vector.extract_strided_slice %9 {offsets = [6, 0, 0], sizes = [1, 16, 768], strides = [1, 1, 1]} : vector<40x16x768xf32> to vector<1x16x768xf32>
    %39 = vector.shape_cast %38 : vector<1x16x768xf32> to vector<16x768xf32>
    %40 = vector.extract_strided_slice %9 {offsets = [7, 0, 0], sizes = [1, 16, 768], strides = [1, 1, 1]} : vector<40x16x768xf32> to vector<1x16x768xf32>
    %41 = vector.shape_cast %40 : vector<1x16x768xf32> to vector<16x768xf32>
    %42 = arith.maximumf %39, %41 : vector<16x768xf32>
    %43 = vector.extract_strided_slice %9 {offsets = [8, 0, 0], sizes = [1, 16, 768], strides = [1, 1, 1]} : vector<40x16x768xf32> to vector<1x16x768xf32>
    %44 = vector.shape_cast %43 : vector<1x16x768xf32> to vector<16x768xf32>
    %45 = arith.maximumf %42, %44 : vector<16x768xf32>
    %46 = vector.extract_strided_slice %45 {offsets = [0, 0], sizes = [16, 256], strides = [1, 1]} : vector<16x768xf32> to vector<16x256xf32>
    %47 = vector.extract_strided_slice %45 {offsets = [0, 256], sizes = [16, 256], strides = [1, 1]} : vector<16x768xf32> to vector<16x256xf32>
    %48 = arith.maximumf %46, %47 : vector<16x256xf32>
    %49 = vector.extract_strided_slice %45 {offsets = [0, 512], sizes = [16, 256], strides = [1, 1]} : vector<16x768xf32> to vector<16x256xf32>
    %50 = arith.maximumf %48, %49 : vector<16x256xf32>
    %51 = arith.truncf %50 : vector<16x256xf32> to vector<16x256xbf16>
    %52 = vector.extract_strided_slice %9 {offsets = [9, 0, 0], sizes = [1, 16, 768], strides = [1, 1, 1]} : vector<40x16x768xf32> to vector<1x16x768xf32>
    %53 = vector.shape_cast %52 : vector<1x16x768xf32> to vector<16x768xf32>
    %54 = vector.extract_strided_slice %9 {offsets = [10, 0, 0], sizes = [1, 16, 768], strides = [1, 1, 1]} : vector<40x16x768xf32> to vector<1x16x768xf32>
    %55 = vector.shape_cast %54 : vector<1x16x768xf32> to vector<16x768xf32>
    %56 = arith.maximumf %53, %55 : vector<16x768xf32>
    %57 = vector.extract_strided_slice %9 {offsets = [11, 0, 0], sizes = [1, 16, 768], strides = [1, 1, 1]} : vector<40x16x768xf32> to vector<1x16x768xf32>
    %58 = vector.shape_cast %57 : vector<1x16x768xf32> to vector<16x768xf32>
    %59 = arith.maximumf %56, %58 : vector<16x768xf32>
    %60 = vector.extract_strided_slice %59 {offsets = [0, 0], sizes = [16, 256], strides = [1, 1]} : vector<16x768xf32> to vector<16x256xf32>
    %61 = vector.extract_strided_slice %59 {offsets = [0, 256], sizes = [16, 256], strides = [1, 1]} : vector<16x768xf32> to vector<16x256xf32>
    %62 = arith.maximumf %60, %61 : vector<16x256xf32>
    %63 = vector.extract_strided_slice %59 {offsets = [0, 512], sizes = [16, 256], strides = [1, 1]} : vector<16x768xf32> to vector<16x256xf32>
    %64 = arith.maximumf %62, %63 : vector<16x256xf32>
    %65 = arith.truncf %64 : vector<16x256xf32> to vector<16x256xbf16>
    %66 = vector.extract_strided_slice %9 {offsets = [12, 0, 0], sizes = [1, 16, 768], strides = [1, 1, 1]} : vector<40x16x768xf32> to vector<1x16x768xf32>
    %67 = vector.shape_cast %66 : vector<1x16x768xf32> to vector<16x768xf32>
    %68 = vector.extract_strided_slice %9 {offsets = [13, 0, 0], sizes = [1, 16, 768], strides = [1, 1, 1]} : vector<40x16x768xf32> to vector<1x16x768xf32>
    %69 = vector.shape_cast %68 : vector<1x16x768xf32> to vector<16x768xf32>
    %70 = arith.maximumf %67, %69 : vector<16x768xf32>
    %71 = vector.extract_strided_slice %9 {offsets = [14, 0, 0], sizes = [1, 16, 768], strides = [1, 1, 1]} : vector<40x16x768xf32> to vector<1x16x768xf32>
    %72 = vector.shape_cast %71 : vector<1x16x768xf32> to vector<16x768xf32>
    %73 = arith.maximumf %70, %72 : vector<16x768xf32>
    %74 = vector.extract_strided_slice %73 {offsets = [0, 0], sizes = [16, 256], strides = [1, 1]} : vector<16x768xf32> to vector<16x256xf32>
    %75 = vector.extract_strided_slice %73 {offsets = [0, 256], sizes = [16, 256], strides = [1, 1]} : vector<16x768xf32> to vector<16x256xf32>
    %76 = arith.maximumf %74, %75 : vector<16x256xf32>
    %77 = vector.extract_strided_slice %73 {offsets = [0, 512], sizes = [16, 256], strides = [1, 1]} : vector<16x768xf32> to vector<16x256xf32>
    %78 = arith.maximumf %76, %77 : vector<16x256xf32>
    %79 = arith.truncf %78 : vector<16x256xf32> to vector<16x256xbf16>
    %80 = vector.extract_strided_slice %9 {offsets = [15, 0, 0], sizes = [1, 16, 768], strides = [1, 1, 1]} : vector<40x16x768xf32> to vector<1x16x768xf32>
    %81 = vector.shape_cast %80 : vector<1x16x768xf32> to vector<16x768xf32>
    %82 = vector.extract_strided_slice %9 {offsets = [16, 0, 0], sizes = [1, 16, 768], strides = [1, 1, 1]} : vector<40x16x768xf32> to vector<1x16x768xf32>
    %83 = vector.shape_cast %82 : vector<1x16x768xf32> to vector<16x768xf32>
    %84 = arith.maximumf %81, %83 : vector<16x768xf32>
    %85 = vector.extract_strided_slice %9 {offsets = [17, 0, 0], sizes = [1, 16, 768], strides = [1, 1, 1]} : vector<40x16x768xf32> to vector<1x16x768xf32>
    %86 = vector.shape_cast %85 : vector<1x16x768xf32> to vector<16x768xf32>
    %87 = arith.maximumf %84, %86 : vector<16x768xf32>
    %88 = vector.extract_strided_slice %87 {offsets = [0, 0], sizes = [16, 256], strides = [1, 1]} : vector<16x768xf32> to vector<16x256xf32>
    %89 = vector.extract_strided_slice %87 {offsets = [0, 256], sizes = [16, 256], strides = [1, 1]} : vector<16x768xf32> to vector<16x256xf32>
    %90 = arith.maximumf %88, %89 : vector<16x256xf32>
    %91 = vector.extract_strided_slice %87 {offsets = [0, 512], sizes = [16, 256], strides = [1, 1]} : vector<16x768xf32> to vector<16x256xf32>
    %92 = arith.maximumf %90, %91 : vector<16x256xf32>
    %93 = arith.truncf %92 : vector<16x256xf32> to vector<16x256xbf16>
    %94 = vector.extract_strided_slice %9 {offsets = [18, 0, 0], sizes = [1, 16, 768], strides = [1, 1, 1]} : vector<40x16x768xf32> to vector<1x16x768xf32>
    %95 = vector.shape_cast %94 : vector<1x16x768xf32> to vector<16x768xf32>
    %96 = vector.extract_strided_slice %9 {offsets = [19, 0, 0], sizes = [1, 16, 768], strides = [1, 1, 1]} : vector<40x16x768xf32> to vector<1x16x768xf32>
    %97 = vector.shape_cast %96 : vector<1x16x768xf32> to vector<16x768xf32>
    %98 = arith.maximumf %95, %97 : vector<16x768xf32>
    %99 = vector.extract_strided_slice %9 {offsets = [20, 0, 0], sizes = [1, 16, 768], strides = [1, 1, 1]} : vector<40x16x768xf32> to vector<1x16x768xf32>
    %100 = vector.shape_cast %99 : vector<1x16x768xf32> to vector<16x768xf32>
    %101 = arith.maximumf %98, %100 : vector<16x768xf32>
    %102 = vector.extract_strided_slice %101 {offsets = [0, 0], sizes = [16, 256], strides = [1, 1]} : vector<16x768xf32> to vector<16x256xf32>
    %103 = vector.extract_strided_slice %101 {offsets = [0, 256], sizes = [16, 256], strides = [1, 1]} : vector<16x768xf32> to vector<16x256xf32>
    %104 = arith.maximumf %102, %103 : vector<16x256xf32>
    %105 = vector.extract_strided_slice %101 {offsets = [0, 512], sizes = [16, 256], strides = [1, 1]} : vector<16x768xf32> to vector<16x256xf32>
    %106 = arith.maximumf %104, %105 : vector<16x256xf32>
    %107 = arith.truncf %106 : vector<16x256xf32> to vector<16x256xbf16>
    %108 = vector.extract_strided_slice %9 {offsets = [21, 0, 0], sizes = [1, 16, 768], strides = [1, 1, 1]} : vector<40x16x768xf32> to vector<1x16x768xf32>
    %109 = vector.shape_cast %108 : vector<1x16x768xf32> to vector<16x768xf32>
    %110 = vector.extract_strided_slice %9 {offsets = [22, 0, 0], sizes = [1, 16, 768], strides = [1, 1, 1]} : vector<40x16x768xf32> to vector<1x16x768xf32>
    %111 = vector.shape_cast %110 : vector<1x16x768xf32> to vector<16x768xf32>
    %112 = arith.maximumf %109, %111 : vector<16x768xf32>
    %113 = vector.extract_strided_slice %9 {offsets = [23, 0, 0], sizes = [1, 16, 768], strides = [1, 1, 1]} : vector<40x16x768xf32> to vector<1x16x768xf32>
    %114 = vector.shape_cast %113 : vector<1x16x768xf32> to vector<16x768xf32>
    %115 = arith.maximumf %112, %114 : vector<16x768xf32>
    %116 = vector.extract_strided_slice %115 {offsets = [0, 0], sizes = [16, 256], strides = [1, 1]} : vector<16x768xf32> to vector<16x256xf32>
    %117 = vector.extract_strided_slice %115 {offsets = [0, 256], sizes = [16, 256], strides = [1, 1]} : vector<16x768xf32> to vector<16x256xf32>
    %118 = arith.maximumf %116, %117 : vector<16x256xf32>
    %119 = vector.extract_strided_slice %115 {offsets = [0, 512], sizes = [16, 256], strides = [1, 1]} : vector<16x768xf32> to vector<16x256xf32>
    %120 = arith.maximumf %118, %119 : vector<16x256xf32>
    %121 = arith.truncf %120 : vector<16x256xf32> to vector<16x256xbf16>
    %122 = vector.extract_strided_slice %9 {offsets = [24, 0, 0], sizes = [1, 16, 768], strides = [1, 1, 1]} : vector<40x16x768xf32> to vector<1x16x768xf32>
    %123 = vector.shape_cast %122 : vector<1x16x768xf32> to vector<16x768xf32>
    %124 = vector.extract_strided_slice %9 {offsets = [25, 0, 0], sizes = [1, 16, 768], strides = [1, 1, 1]} : vector<40x16x768xf32> to vector<1x16x768xf32>
    %125 = vector.shape_cast %124 : vector<1x16x768xf32> to vector<16x768xf32>
    %126 = arith.maximumf %123, %125 : vector<16x768xf32>
    %127 = vector.extract_strided_slice %9 {offsets = [26, 0, 0], sizes = [1, 16, 768], strides = [1, 1, 1]} : vector<40x16x768xf32> to vector<1x16x768xf32>
    %128 = vector.shape_cast %127 : vector<1x16x768xf32> to vector<16x768xf32>
    %129 = arith.maximumf %126, %128 : vector<16x768xf32>
    %130 = vector.extract_strided_slice %129 {offsets = [0, 0], sizes = [16, 256], strides = [1, 1]} : vector<16x768xf32> to vector<16x256xf32>
    %131 = vector.extract_strided_slice %129 {offsets = [0, 256], sizes = [16, 256], strides = [1, 1]} : vector<16x768xf32> to vector<16x256xf32>
    %132 = arith.maximumf %130, %131 : vector<16x256xf32>
    %133 = vector.extract_strided_slice %129 {offsets = [0, 512], sizes = [16, 256], strides = [1, 1]} : vector<16x768xf32> to vector<16x256xf32>
    %134 = arith.maximumf %132, %133 : vector<16x256xf32>
    %135 = arith.truncf %134 : vector<16x256xf32> to vector<16x256xbf16>
    %136 = vector.extract_strided_slice %9 {offsets = [27, 0, 0], sizes = [1, 16, 768], strides = [1, 1, 1]} : vector<40x16x768xf32> to vector<1x16x768xf32>
    %137 = vector.shape_cast %136 : vector<1x16x768xf32> to vector<16x768xf32>
    %138 = vector.extract_strided_slice %9 {offsets = [28, 0, 0], sizes = [1, 16, 768], strides = [1, 1, 1]} : vector<40x16x768xf32> to vector<1x16x768xf32>
    %139 = vector.shape_cast %138 : vector<1x16x768xf32> to vector<16x768xf32>
    %140 = arith.maximumf %137, %139 : vector<16x768xf32>
    %141 = vector.extract_strided_slice %9 {offsets = [29, 0, 0], sizes = [1, 16, 768], strides = [1, 1, 1]} : vector<40x16x768xf32> to vector<1x16x768xf32>
    %142 = vector.shape_cast %141 : vector<1x16x768xf32> to vector<16x768xf32>
    %143 = arith.maximumf %140, %142 : vector<16x768xf32>
    %144 = vector.extract_strided_slice %143 {offsets = [0, 0], sizes = [16, 256], strides = [1, 1]} : vector<16x768xf32> to vector<16x256xf32>
    %145 = vector.extract_strided_slice %143 {offsets = [0, 256], sizes = [16, 256], strides = [1, 1]} : vector<16x768xf32> to vector<16x256xf32>
    %146 = arith.maximumf %144, %145 : vector<16x256xf32>
    %147 = vector.extract_strided_slice %143 {offsets = [0, 512], sizes = [16, 256], strides = [1, 1]} : vector<16x768xf32> to vector<16x256xf32>
    %148 = arith.maximumf %146, %147 : vector<16x256xf32>
    %149 = arith.truncf %148 : vector<16x256xf32> to vector<16x256xbf16>
    %150 = vector.extract_strided_slice %9 {offsets = [30, 0, 0], sizes = [1, 16, 768], strides = [1, 1, 1]} : vector<40x16x768xf32> to vector<1x16x768xf32>
    %151 = vector.shape_cast %150 : vector<1x16x768xf32> to vector<16x768xf32>
    %152 = vector.extract_strided_slice %9 {offsets = [31, 0, 0], sizes = [1, 16, 768], strides = [1, 1, 1]} : vector<40x16x768xf32> to vector<1x16x768xf32>
    %153 = vector.shape_cast %152 : vector<1x16x768xf32> to vector<16x768xf32>
    %154 = arith.maximumf %151, %153 : vector<16x768xf32>
    %155 = vector.extract_strided_slice %9 {offsets = [32, 0, 0], sizes = [1, 16, 768], strides = [1, 1, 1]} : vector<40x16x768xf32> to vector<1x16x768xf32>
    %156 = vector.shape_cast %155 : vector<1x16x768xf32> to vector<16x768xf32>
    %157 = arith.maximumf %154, %156 : vector<16x768xf32>
    %158 = vector.extract_strided_slice %157 {offsets = [0, 0], sizes = [16, 256], strides = [1, 1]} : vector<16x768xf32> to vector<16x256xf32>
    %159 = vector.extract_strided_slice %157 {offsets = [0, 256], sizes = [16, 256], strides = [1, 1]} : vector<16x768xf32> to vector<16x256xf32>
    %160 = arith.maximumf %158, %159 : vector<16x256xf32>
    %161 = vector.extract_strided_slice %157 {offsets = [0, 512], sizes = [16, 256], strides = [1, 1]} : vector<16x768xf32> to vector<16x256xf32>
    %162 = arith.maximumf %160, %161 : vector<16x256xf32>
    %163 = arith.truncf %162 : vector<16x256xf32> to vector<16x256xbf16>
    %164 = vector.extract_strided_slice %9 {offsets = [33, 0, 0], sizes = [1, 16, 768], strides = [1, 1, 1]} : vector<40x16x768xf32> to vector<1x16x768xf32>
    %165 = vector.shape_cast %164 : vector<1x16x768xf32> to vector<16x768xf32>
    %166 = vector.extract_strided_slice %9 {offsets = [34, 0, 0], sizes = [1, 16, 768], strides = [1, 1, 1]} : vector<40x16x768xf32> to vector<1x16x768xf32>
    %167 = vector.shape_cast %166 : vector<1x16x768xf32> to vector<16x768xf32>
    %168 = arith.maximumf %165, %167 : vector<16x768xf32>
    %169 = vector.extract_strided_slice %9 {offsets = [35, 0, 0], sizes = [1, 16, 768], strides = [1, 1, 1]} : vector<40x16x768xf32> to vector<1x16x768xf32>
    %170 = vector.shape_cast %169 : vector<1x16x768xf32> to vector<16x768xf32>
    %171 = arith.maximumf %168, %170 : vector<16x768xf32>
    %172 = vector.extract_strided_slice %171 {offsets = [0, 0], sizes = [16, 256], strides = [1, 1]} : vector<16x768xf32> to vector<16x256xf32>
    %173 = vector.extract_strided_slice %171 {offsets = [0, 256], sizes = [16, 256], strides = [1, 1]} : vector<16x768xf32> to vector<16x256xf32>
    %174 = arith.maximumf %172, %173 : vector<16x256xf32>
    %175 = vector.extract_strided_slice %171 {offsets = [0, 512], sizes = [16, 256], strides = [1, 1]} : vector<16x768xf32> to vector<16x256xf32>
    %176 = arith.maximumf %174, %175 : vector<16x256xf32>
    %177 = arith.truncf %176 : vector<16x256xf32> to vector<16x256xbf16>
    %178 = vector.extract_strided_slice %9 {offsets = [36, 0, 0], sizes = [1, 16, 768], strides = [1, 1, 1]} : vector<40x16x768xf32> to vector<1x16x768xf32>
    %179 = vector.shape_cast %178 : vector<1x16x768xf32> to vector<16x768xf32>
    %180 = vector.extract_strided_slice %9 {offsets = [37, 0, 0], sizes = [1, 16, 768], strides = [1, 1, 1]} : vector<40x16x768xf32> to vector<1x16x768xf32>
    %181 = vector.shape_cast %180 : vector<1x16x768xf32> to vector<16x768xf32>
    %182 = arith.maximumf %179, %181 : vector<16x768xf32>
    %183 = vector.extract_strided_slice %9 {offsets = [38, 0, 0], sizes = [1, 16, 768], strides = [1, 1, 1]} : vector<40x16x768xf32> to vector<1x16x768xf32>
    %184 = vector.shape_cast %183 : vector<1x16x768xf32> to vector<16x768xf32>
    %185 = arith.maximumf %182, %184 : vector<16x768xf32>
    %186 = vector.extract_strided_slice %185 {offsets = [0, 0], sizes = [16, 256], strides = [1, 1]} : vector<16x768xf32> to vector<16x256xf32>
    %187 = vector.extract_strided_slice %185 {offsets = [0, 256], sizes = [16, 256], strides = [1, 1]} : vector<16x768xf32> to vector<16x256xf32>
    %188 = arith.maximumf %186, %187 : vector<16x256xf32>
    %189 = vector.extract_strided_slice %185 {offsets = [0, 512], sizes = [16, 256], strides = [1, 1]} : vector<16x768xf32> to vector<16x256xf32>
    %190 = arith.maximumf %188, %189 : vector<16x256xf32>
    %191 = arith.truncf %190 : vector<16x256xf32> to vector<16x256xbf16>
    %192 = vector.shape_cast %23 : vector<16x256xbf16> to vector<1x16x256xbf16>
    %193 = vector.shape_cast %37 : vector<16x256xbf16> to vector<1x16x256xbf16>
    %194 = vector.shape_cast %51 : vector<16x256xbf16> to vector<1x16x256xbf16>
    %195 = vector.shape_cast %65 : vector<16x256xbf16> to vector<1x16x256xbf16>
    %196 = vector.shape_cast %79 : vector<16x256xbf16> to vector<1x16x256xbf16>
    %197 = vector.shape_cast %93 : vector<16x256xbf16> to vector<1x16x256xbf16>
    %198 = vector.shape_cast %107 : vector<16x256xbf16> to vector<1x16x256xbf16>
    %199 = vector.shape_cast %121 : vector<16x256xbf16> to vector<1x16x256xbf16>
    %200 = vector.shape_cast %135 : vector<16x256xbf16> to vector<1x16x256xbf16>
    %201 = vector.shape_cast %149 : vector<16x256xbf16> to vector<1x16x256xbf16>
    %202 = vector.shape_cast %163 : vector<16x256xbf16> to vector<1x16x256xbf16>
    %203 = vector.shape_cast %177 : vector<16x256xbf16> to vector<1x16x256xbf16>
    %204 = vector.shape_cast %191 : vector<16x256xbf16> to vector<1x16x256xbf16>
    %205 = tpu.concatenate %192, %193, %194, %195, %196, %197, %198, %199, %200, %201, %202, %203, %204 in 0 : vector<1x16x256xbf16>, vector<1x16x256xbf16>, vector<1x16x256xbf16>, vector<1x16x256xbf16>, vector<1x16x256xbf16>, vector<1x16x256xbf16>, vector<1x16x256xbf16>, vector<1x16x256xbf16>, vector<1x16x256xbf16>, vector<1x16x256xbf16>, vector<1x16x256xbf16>, vector<1x16x256xbf16>, vector<1x16x256xbf16> -> vector<13x16x256xbf16>
    %c0_7 = arith.constant 0 : index
    %c0_8 = arith.constant 0 : index
    %206 = vector.load %arg5[%c0_7, %c0_8] : memref<1x256xf32, #tpu.memory_space<vmem>>, vector<1x256xf32>
    %207 = vector.extract_strided_slice %205 {offsets = [0, 0, 0], sizes = [11, 16, 256], strides = [1, 1, 1]} : vector<13x16x256xbf16> to vector<11x16x256xbf16>
    %208 = vector.shape_cast %207 : vector<11x16x256xbf16> to vector<176x256xbf16>
    %c0_9 = arith.constant 0 : index
    %c0_10 = arith.constant 0 : index
    %c0_11 = arith.constant 0 : index
    %209 = vector.load %arg4[%c0_9, %c0_10, %c0_11] : memref<3x256x256xbf16, #tpu.memory_space<vmem>>, vector<1x256x256xbf16>
    %210 = vector.shape_cast %209 : vector<1x256x256xbf16> to vector<256x256xbf16>
    %cst_12 = arith.constant dense<0.000000e+00> : vector<176x256xf32>
    %211 = tpu.matmul %208, %210, %cst_12 {dimension_numbers = #tpu.dot_dimension_numbers<[1], [0], [0], [1], [0, 0, 1, 1], [], []>} : vector<176x256xbf16>, vector<256x256xbf16>, vector<176x256xf32> -> vector<176x256xf32>
    %212 = vector.broadcast %206 : vector<1x256xf32> to vector<176x256xf32>
    %213 = arith.addf %212, %211 : vector<176x256xf32>
    %214 = vector.extract_strided_slice %205 {offsets = [1, 0, 0], sizes = [11, 16, 256], strides = [1, 1, 1]} : vector<13x16x256xbf16> to vector<11x16x256xbf16>
    %215 = vector.shape_cast %214 : vector<11x16x256xbf16> to vector<176x256xbf16>
    %c1 = arith.constant 1 : index
    %c0_13 = arith.constant 0 : index
    %c0_14 = arith.constant 0 : index
    %216 = vector.load %arg4[%c1, %c0_13, %c0_14] : memref<3x256x256xbf16, #tpu.memory_space<vmem>>, vector<1x256x256xbf16>
    %217 = vector.shape_cast %216 : vector<1x256x256xbf16> to vector<256x256xbf16>
    %cst_15 = arith.constant dense<0.000000e+00> : vector<176x256xf32>
    %218 = tpu.matmul %215, %217, %cst_15 {dimension_numbers = #tpu.dot_dimension_numbers<[1], [0], [0], [1], [0, 0, 1, 1], [], []>} : vector<176x256xbf16>, vector<256x256xbf16>, vector<176x256xf32> -> vector<176x256xf32>
    %219 = arith.addf %213, %218 : vector<176x256xf32>
    %220 = vector.extract_strided_slice %205 {offsets = [2, 0, 0], sizes = [11, 16, 256], strides = [1, 1, 1]} : vector<13x16x256xbf16> to vector<11x16x256xbf16>
    %221 = vector.shape_cast %220 : vector<11x16x256xbf16> to vector<176x256xbf16>
    %c2 = arith.constant 2 : index
    %c0_16 = arith.constant 0 : index
    %c0_17 = arith.constant 0 : index
    %222 = vector.load %arg4[%c2, %c0_16, %c0_17] : memref<3x256x256xbf16, #tpu.memory_space<vmem>>, vector<1x256x256xbf16>
    %223 = vector.shape_cast %222 : vector<1x256x256xbf16> to vector<256x256xbf16>
    %cst_18 = arith.constant dense<0.000000e+00> : vector<176x256xf32>
    %224 = tpu.matmul %221, %223, %cst_18 {dimension_numbers = #tpu.dot_dimension_numbers<[1], [0], [0], [1], [0, 0, 1, 1], [], []>} : vector<176x256xbf16>, vector<256x256xbf16>, vector<176x256xf32> -> vector<176x256xf32>
    %225 = arith.addf %219, %224 : vector<176x256xf32>
    %cst_19 = arith.constant 0.000000e+00 : f32
    %226 = vector.broadcast %cst_19 : f32 to vector<176x256xf32>
    %227 = arith.maximumf %225, %226 : vector<176x256xf32>
    %228 = vector.shape_cast %227 : vector<176x256xf32> to vector<11x16x256xf32>
    %229 = vector.extract_strided_slice %228 {offsets = [0, 0, 0], sizes = [11, 16, 64], strides = [1, 1, 1]} : vector<11x16x256xf32> to vector<11x16x64xf32>
    %230 = vector.extract_strided_slice %228 {offsets = [0, 0, 64], sizes = [11, 16, 64], strides = [1, 1, 1]} : vector<11x16x256xf32> to vector<11x16x64xf32>
    %231 = arith.maximumf %229, %230 : vector<11x16x64xf32>
    %232 = vector.extract_strided_slice %228 {offsets = [0, 0, 128], sizes = [11, 16, 64], strides = [1, 1, 1]} : vector<11x16x256xf32> to vector<11x16x64xf32>
    %233 = arith.maximumf %231, %232 : vector<11x16x64xf32>
    %c0_20 = arith.constant 0 : index
    %c0_21 = arith.constant 0 : index
    %234 = vector.load %arg7[%c0_20, %c0_21] : memref<1x128xf32, #tpu.memory_space<vmem>>, vector<1x128xf32>
    %235 = vector.extract_strided_slice %233 {offsets = [0, 0, 0], sizes = [1, 16, 64], strides = [1, 1, 1]} : vector<11x16x64xf32> to vector<1x16x64xf32>
    %236 = vector.shape_cast %235 : vector<1x16x64xf32> to vector<16x64xf32>
    %237 = vector.extract_strided_slice %233 {offsets = [1, 0, 0], sizes = [1, 16, 64], strides = [1, 1, 1]} : vector<11x16x64xf32> to vector<1x16x64xf32>
    %238 = vector.shape_cast %237 : vector<1x16x64xf32> to vector<16x64xf32>
    %239 = arith.maximumf %236, %238 : vector<16x64xf32>
    %240 = vector.extract_strided_slice %233 {offsets = [2, 0, 0], sizes = [1, 16, 64], strides = [1, 1, 1]} : vector<11x16x64xf32> to vector<1x16x64xf32>
    %241 = vector.shape_cast %240 : vector<1x16x64xf32> to vector<16x64xf32>
    %242 = arith.maximumf %239, %241 : vector<16x64xf32>
    %243 = arith.truncf %242 : vector<16x64xf32> to vector<16x64xbf16>
    %c0_22 = arith.constant 0 : index
    %c0_23 = arith.constant 0 : index
    %c0_24 = arith.constant 0 : index
    %244 = vector.load %arg6[%c0_22, %c0_23, %c0_24] : memref<3x64x128xbf16, #tpu.memory_space<vmem>>, vector<1x64x128xbf16>
    %245 = vector.shape_cast %244 : vector<1x64x128xbf16> to vector<64x128xbf16>
    %cst_25 = arith.constant dense<0.000000e+00> : vector<16x128xf32>
    %246 = tpu.matmul %243, %245, %cst_25 {dimension_numbers = #tpu.dot_dimension_numbers<[1], [0], [0], [1], [0, 0, 1, 1], [], []>} : vector<16x64xbf16>, vector<64x128xbf16>, vector<16x128xf32> -> vector<16x128xf32>
    %247 = vector.broadcast %234 : vector<1x128xf32> to vector<16x128xf32>
    %248 = arith.addf %247, %246 : vector<16x128xf32>
    %249 = vector.extract_strided_slice %233 {offsets = [3, 0, 0], sizes = [1, 16, 64], strides = [1, 1, 1]} : vector<11x16x64xf32> to vector<1x16x64xf32>
    %250 = vector.shape_cast %249 : vector<1x16x64xf32> to vector<16x64xf32>
    %251 = vector.extract_strided_slice %233 {offsets = [4, 0, 0], sizes = [1, 16, 64], strides = [1, 1, 1]} : vector<11x16x64xf32> to vector<1x16x64xf32>
    %252 = vector.shape_cast %251 : vector<1x16x64xf32> to vector<16x64xf32>
    %253 = arith.maximumf %250, %252 : vector<16x64xf32>
    %254 = vector.extract_strided_slice %233 {offsets = [5, 0, 0], sizes = [1, 16, 64], strides = [1, 1, 1]} : vector<11x16x64xf32> to vector<1x16x64xf32>
    %255 = vector.shape_cast %254 : vector<1x16x64xf32> to vector<16x64xf32>
    %256 = arith.maximumf %253, %255 : vector<16x64xf32>
    %257 = arith.truncf %256 : vector<16x64xf32> to vector<16x64xbf16>
    %c1_26 = arith.constant 1 : index
    %c0_27 = arith.constant 0 : index
    %c0_28 = arith.constant 0 : index
    %258 = vector.load %arg6[%c1_26, %c0_27, %c0_28] : memref<3x64x128xbf16, #tpu.memory_space<vmem>>, vector<1x64x128xbf16>
    %259 = vector.shape_cast %258 : vector<1x64x128xbf16> to vector<64x128xbf16>
    %cst_29 = arith.constant dense<0.000000e+00> : vector<16x128xf32>
    %260 = tpu.matmul %257, %259, %cst_29 {dimension_numbers = #tpu.dot_dimension_numbers<[1], [0], [0], [1], [0, 0, 1, 1], [], []>} : vector<16x64xbf16>, vector<64x128xbf16>, vector<16x128xf32> -> vector<16x128xf32>
    %261 = arith.addf %248, %260 : vector<16x128xf32>
    %262 = vector.extract_strided_slice %233 {offsets = [6, 0, 0], sizes = [1, 16, 64], strides = [1, 1, 1]} : vector<11x16x64xf32> to vector<1x16x64xf32>
    %263 = vector.shape_cast %262 : vector<1x16x64xf32> to vector<16x64xf32>
    %264 = vector.extract_strided_slice %233 {offsets = [7, 0, 0], sizes = [1, 16, 64], strides = [1, 1, 1]} : vector<11x16x64xf32> to vector<1x16x64xf32>
    %265 = vector.shape_cast %264 : vector<1x16x64xf32> to vector<16x64xf32>
    %266 = arith.maximumf %263, %265 : vector<16x64xf32>
    %267 = vector.extract_strided_slice %233 {offsets = [8, 0, 0], sizes = [1, 16, 64], strides = [1, 1, 1]} : vector<11x16x64xf32> to vector<1x16x64xf32>
    %268 = vector.shape_cast %267 : vector<1x16x64xf32> to vector<16x64xf32>
    %269 = arith.maximumf %266, %268 : vector<16x64xf32>
    %270 = arith.truncf %269 : vector<16x64xf32> to vector<16x64xbf16>
    %c2_30 = arith.constant 2 : index
    %c0_31 = arith.constant 0 : index
    %c0_32 = arith.constant 0 : index
    %271 = vector.load %arg6[%c2_30, %c0_31, %c0_32] : memref<3x64x128xbf16, #tpu.memory_space<vmem>>, vector<1x64x128xbf16>
    %272 = vector.shape_cast %271 : vector<1x64x128xbf16> to vector<64x128xbf16>
    %cst_33 = arith.constant dense<0.000000e+00> : vector<16x128xf32>
    %273 = tpu.matmul %270, %272, %cst_33 {dimension_numbers = #tpu.dot_dimension_numbers<[1], [0], [0], [1], [0, 0, 1, 1], [], []>} : vector<16x64xbf16>, vector<64x128xbf16>, vector<16x128xf32> -> vector<16x128xf32>
    %274 = arith.addf %261, %273 : vector<16x128xf32>
    %275 = arith.truncf %274 : vector<16x128xf32> to vector<16x128xbf16>
    %c0_34 = arith.constant 0 : index
    %c0_35 = arith.constant 0 : index
    %276 = vector.load %arg8[%c0_34, %c0_35] : memref<128x128xbf16, #tpu.memory_space<vmem>>, vector<128x128xbf16>
    %cst_36 = arith.constant dense<0.000000e+00> : vector<16x128xf32>
    %277 = tpu.matmul %275, %276, %cst_36 {dimension_numbers = #tpu.dot_dimension_numbers<[1], [0], [0], [1], [0, 0, 1, 1], [], []>} : vector<16x128xbf16>, vector<128x128xbf16>, vector<16x128xf32> -> vector<16x128xf32>
    %c0_37 = arith.constant 0 : index
    %c0_38 = arith.constant 0 : index
    %278 = vector.load %arg9[%c0_37, %c0_38] : memref<1x128xf32, #tpu.memory_space<vmem>>, vector<1x128xf32>
    %279 = vector.broadcast %278 : vector<1x128xf32> to vector<16x128xf32>
    %280 = arith.addf %277, %279 : vector<16x128xf32>
    %c0_39 = arith.constant 0 : index
    %c0_40 = arith.constant 0 : index
    %281 = vector.load %arg10[%c0_39, %c0_40] : memref<16x128xf32, #tpu.memory_space<vmem>>, vector<16x128xf32>
    tpu.vector_store %arg10[%c0_39, %c0_40], %280 {strides = array<i32>} : memref<16x128xf32, #tpu.memory_space<vmem>>, vector<16x128xf32>,
    return
  }
  func.func @transform_0(%arg0: i32) -> (i32, i32, i32) {
    %c0_i32 = arith.constant 0 : i32
    %c0_i32_0 = arith.constant 0 : i32
    %c0_i32_1 = arith.constant 0 : i32
    return %c0_i32, %arg0, %c0_i32_0 : i32, i32, i32
  }
  func.func @transform_1(%arg0: i32) -> (i32, i32) {
    %c0_i32 = arith.constant 0 : i32
    %c0_i32_0 = arith.constant 0 : i32
    %c0_i32_1 = arith.constant 0 : i32
    return %c0_i32, %c0_i32_0 : i32, i32
  }
  func.func @transform_2(%arg0: i32) -> (i32, i32) {
    %c0_i32 = arith.constant 0 : i32
    %c0_i32_0 = arith.constant 0 : i32
    %c0_i32_1 = arith.constant 0 : i32
    return %c0_i32, %c0_i32_0 : i32, i32
  }
  func.func @transform_3(%arg0: i32) -> (i32, i32, i32) {
    %c0_i32 = arith.constant 0 : i32
    %c0_i32_0 = arith.constant 0 : i32
    %c0_i32_1 = arith.constant 0 : i32
    %c0_i32_2 = arith.constant 0 : i32
    return %c0_i32, %c0_i32_0, %c0_i32_1 : i32, i32, i32
  }
  func.func @transform_4(%arg0: i32) -> (i32, i32) {
    %c0_i32 = arith.constant 0 : i32
    %c0_i32_0 = arith.constant 0 : i32
    %c0_i32_1 = arith.constant 0 : i32
    return %c0_i32, %c0_i32_0 : i32, i32
  }
  func.func @transform_5(%arg0: i32) -> (i32, i32, i32) {
    %c0_i32 = arith.constant 0 : i32
    %c0_i32_0 = arith.constant 0 : i32
    %c0_i32_1 = arith.constant 0 : i32
    %c0_i32_2 = arith.constant 0 : i32
    return %c0_i32, %c0_i32_0, %c0_i32_1 : i32, i32, i32
  }
  func.func @transform_6(%arg0: i32) -> (i32, i32) {
    %c0_i32 = arith.constant 0 : i32
    %c0_i32_0 = arith.constant 0 : i32
    %c0_i32_1 = arith.constant 0 : i32
    return %c0_i32, %c0_i32_0 : i32, i32
  }
  func.func @transform_7(%arg0: i32) -> (i32, i32) {
    %c0_i32 = arith.constant 0 : i32
    %c0_i32_0 = arith.constant 0 : i32
    %c0_i32_1 = arith.constant 0 : i32
    return %c0_i32, %c0_i32_0 : i32, i32
  }
  func.func @transform_8(%arg0: i32) -> (i32, i32) {
    %c0_i32 = arith.constant 0 : i32
    %c0_i32_0 = arith.constant 0 : i32
    %c0_i32_1 = arith.constant 0 : i32
    return %c0_i32, %c0_i32_0 : i32, i32
  }
  func.func @transform_9(%arg0: i32) -> (i32, i32) {
    %c0_i32 = arith.constant 0 : i32
    %c0_i32_0 = arith.constant 0 : i32
    return %arg0, %c0_i32 : i32, i32
  }
}

</mosaic_0001>

<llo_original>
// kernel: cnn_forward.1
$region0: #{cnn_forward.1}
  #allocation0 [shape = 'u32[]', space=smem, size = 0x4, offset = 0x4, fixed_abs, tag = 'smem constant byte address 0x4 - core index']
  #allocation1 [shape = 'u32[144,128]{1,0:T(1,128)}', space=vmem, size = 0x12000, scoped, tag = 'internal scratch']
  %s0 = inlined_call_operand.vmem [shape: bf16[40,16,84], index: 0, kind: input, shape index: {}]
  %s1 = inlined_call_operand.vmem [shape: bf16[84,768], index: 1, kind: input, shape index: {}]
  %s2 = inlined_call_operand.vmem [shape: f32[1,768], index: 2, kind: input, shape index: {}]
  %s3 = inlined_call_operand.vmem [shape: bf16[3,256,256], index: 3, kind: input, shape index: {}]
  %s4 = inlined_call_operand.vmem [shape: f32[1,256], index: 4, kind: input, shape index: {}]
  %s5 = inlined_call_operand.vmem [shape: bf16[3,64,128], index: 5, kind: input, shape index: {}]
  %s6 = inlined_call_operand.vmem [shape: f32[1,128], index: 6, kind: input, shape index: {}]
  %s7 = inlined_call_operand.vmem [shape: bf16[128,128], index: 7, kind: input, shape index: {}]
  %s8 = inlined_call_operand.vmem [shape: f32[1,128], index: 8, kind: input, shape index: {}]
  %s9 = inlined_call_operand.vmem [shape: f32[16,128], index: 9, kind: output, shape index: {}]
  %s10 = sld [smem:[#allocation0]]
  $region46: #{cnn_forward.1} parent=0
    _
  %s12 = ssub.s32 1, %s10
  %s13 = scalar_select 0, %s12, %s10
  // Predicated region
  $region2: #{cnn_forward.1} parent=0 // pred_check
    _
  $region3: #{cnn_forward.1} parent=0 // pred_check_branch
    %15 = sbr.rel (0) target = $region5
  $region4: #{cnn_forward.1} parent=0 // pred_region
    _
  $region5: #{cnn_forward.1} parent=0 // pred_fallthru
    _
  // Predicated region
  $region6: #{cnn_forward.1} parent=0 // pred_check
    _
  $region7: #{cnn_forward.1} parent=0 // pred_check_branch
    %17 = sbr.rel (0) target = $region9
  $region8: #{cnn_forward.1} parent=0 // pred_region
    _
  $region9: #{cnn_forward.1} parent=0 // pred_fallthru
    _
  // Predicated region
  $region10: #{cnn_forward.1} parent=0 // pred_check
    _
  $region11: #{cnn_forward.1} parent=0 // pred_check_branch
    %19 = sbr.rel (0) target = $region13
  $region12: #{cnn_forward.1} parent=0 // pred_region
    _
  $region13: #{cnn_forward.1} parent=0 // pred_fallthru
    _
  // Predicated region
  $region14: #{cnn_forward.1} parent=0 // pred_check
    _
  $region15: #{cnn_forward.1} parent=0 // pred_check_branch
    %21 = sbr.rel (0) target = $region17
  $region16: #{cnn_forward.1} parent=0 // pred_region
    _
  $region17: #{cnn_forward.1} parent=0 // pred_fallthru
    _
  // Predicated region
  $region18: #{cnn_forward.1} parent=0 // pred_check
    _
  $region19: #{cnn_forward.1} parent=0 // pred_check_branch
    %23 = sbr.rel (0) target = $region21
  $region20: #{cnn_forward.1} parent=0 // pred_region
    _
  $region21: #{cnn_forward.1} parent=0 // pred_fallthru
    _
  // Predicated region
  $region22: #{cnn_forward.1} parent=0 // pred_check
    _
  $region23: #{cnn_forward.1} parent=0 // pred_check_branch
    %25 = sbr.rel (0) target = $region25
  $region24: #{cnn_forward.1} parent=0 // pred_region
    _
  $region25: #{cnn_forward.1} parent=0 // pred_fallthru
    _
  // Predicated region
  $region26: #{cnn_forward.1} parent=0 // pred_check
    _
  $region27: #{cnn_forward.1} parent=0 // pred_check_branch
    %27 = sbr.rel (0) target = $region29
  $region28: #{cnn_forward.1} parent=0 // pred_region
    _
  $region29: #{cnn_forward.1} parent=0 // pred_fallthru
    _
  // Predicated region
  $region30: #{cnn_forward.1} parent=0 // pred_check
    _
  $region31: #{cnn_forward.1} parent=0 // pred_check_branch
    %29 = sbr.rel (0) target = $region33
  $region32: #{cnn_forward.1} parent=0 // pred_region
    _
  $region33: #{cnn_forward.1} parent=0 // pred_fallthru
    _
  // Predicated region
  $region34: #{cnn_forward.1} parent=0 // pred_check
    _
  $region35: #{cnn_forward.1} parent=0 // pred_check_branch
    %31 = sbr.rel (0) target = $region37
  $region36: #{cnn_forward.1} parent=0 // pred_region
    _
  $region37: #{cnn_forward.1} parent=0 // pred_fallthru
    _
  %v33 = vld [vmem:[%s0] sm:$0xf]
  %v34 = vld [vmem:[%s0 + $0x4] sm:$0xf]
  %v35 = vld [vmem:[%s0 + $0x8] sm:$0xf]
  %v36 = vld [vmem:[%s0 + $0xc] sm:$0xf]
  %v37 = vld [vmem:[%s0 + $0x10] sm:$0xf]
  %v38 = vld [vmem:[%s0 + $0x14] sm:$0xf]
  %v39 = vld [vmem:[%s0 + $0x18] sm:$0xf]
  %v40 = vld [vmem:[%s0 + $0x1c] sm:$0xf]
  %v41 = vld [vmem:[%s0 + $0x20] sm:$0xf]
  %v42 = vld [vmem:[%s0 + $0x24] sm:$0xf]
  %v43 = vld [vmem:[%s0 + $0x28] sm:$0xf]
  %v44 = vld [vmem:[%s0 + $0x2c] sm:$0xf]
  %v45 = vld [vmem:[%s0 + $0x30] sm:$0xf]
  %v46 = vld [vmem:[%s0 + $0x34] sm:$0xf]
  %v47 = vld [vmem:[%s0 + $0x38] sm:$0xf]
  %v48 = vld [vmem:[%s0 + $0x3c] sm:$0xf]
  %v49 = vld [vmem:[%s0 + $0x40] sm:$0xf]
  %v50 = vld [vmem:[%s0 + $0x44] sm:$0xf]
  %v51 = vld [vmem:[%s0 + $0x48] sm:$0xf]
  %v52 = vld [vmem:[%s0 + $0x4c] sm:$0xf]
  %v53 = vld [vmem:[%s0 + $0x50] sm:$0xf]
  %v54 = vld [vmem:[%s0 + $0x54] sm:$0xf]
  %v55 = vld [vmem:[%s0 + $0x58] sm:$0xf]
  %v56 = vld [vmem:[%s0 + $0x5c] sm:$0xf]
  %v57 = vld [vmem:[%s0 + $0x60] sm:$0xf]
  %v58 = vld [vmem:[%s0 + $0x64] sm:$0xf]
  %v59 = vld [vmem:[%s0 + $0x68] sm:$0xf]
  %v60 = vld [vmem:[%s0 + $0x6c] sm:$0xf]
  %v61 = vld [vmem:[%s0 + $0x70] sm:$0xf]
  %v62 = vld [vmem:[%s0 + $0x74] sm:$0xf]
  %v63 = vld [vmem:[%s0 + $0x78] sm:$0xf]
  %v64 = vld [vmem:[%s0 + $0x7c] sm:$0xf]
  %v65 = vld [vmem:[%s0 + $0x80] sm:$0xf]
  %v66 = vld [vmem:[%s0 + $0x84] sm:$0xf]
  %v67 = vld [vmem:[%s0 + $0x88] sm:$0xf]
  %v68 = vld [vmem:[%s0 + $0x8c] sm:$0xf]
  %v69 = vld [vmem:[%s0 + $0x90] sm:$0xf]
  %v70 = vld [vmem:[%s0 + $0x94] sm:$0xf]
  %v71 = vld [vmem:[%s0 + $0x98] sm:$0xf]
  %v72 = vld [vmem:[%s0 + $0x9c] sm:$0xf]
  %v73 = vld [vmem:[%s0 + $0xa0] sm:$0xf]
  %v74 = vld [vmem:[%s0 + $0xa4] sm:$0xf]
  %v75 = vld [vmem:[%s0 + $0xa8] sm:$0xf]
  %v76 = vld [vmem:[%s0 + $0xac] sm:$0xf]
  %v77 = vld [vmem:[%s0 + $0xb0] sm:$0xf]
  %v78 = vld [vmem:[%s0 + $0xb4] sm:$0xf]
  %v79 = vld [vmem:[%s0 + $0xb8] sm:$0xf]
  %v80 = vld [vmem:[%s0 + $0xbc] sm:$0xf]
  %v81 = vld [vmem:[%s0 + $0xc0] sm:$0xf]
  %v82 = vld [vmem:[%s0 + $0xc4] sm:$0xf]
  %v83 = vld [vmem:[%s0 + $0xc8] sm:$0xf]
  %v84 = vld [vmem:[%s0 + $0xcc] sm:$0xf]
  %v85 = vld [vmem:[%s0 + $0xd0] sm:$0xf]
  %v86 = vld [vmem:[%s0 + $0xd4] sm:$0xf]
  %v87 = vld [vmem:[%s0 + $0xd8] sm:$0xf]
  %v88 = vld [vmem:[%s0 + $0xdc] sm:$0xf]
  %v89 = vld [vmem:[%s0 + $0xe0] sm:$0xf]
  %v90 = vld [vmem:[%s0 + $0xe4] sm:$0xf]
  %v91 = vld [vmem:[%s0 + $0xe8] sm:$0xf]
  %v92 = vld [vmem:[%s0 + $0xec] sm:$0xf]
  %v93 = vld [vmem:[%s0 + $0xf0] sm:$0xf]
  %v94 = vld [vmem:[%s0 + $0xf4] sm:$0xf]
  %v95 = vld [vmem:[%s0 + $0xf8] sm:$0xf]
  %v96 = vld [vmem:[%s0 + $0xfc] sm:$0xf]
  %v97 = vld [vmem:[%s0 + $0x100] sm:$0xf]
  %v98 = vld [vmem:[%s0 + $0x104] sm:$0xf]
  %v99 = vld [vmem:[%s0 + $0x108] sm:$0xf]
  %v100 = vld [vmem:[%s0 + $0x10c] sm:$0xf]
  %v101 = vld [vmem:[%s0 + $0x110] sm:$0xf]
  %v102 = vld [vmem:[%s0 + $0x114] sm:$0xf]
  %v103 = vld [vmem:[%s0 + $0x118] sm:$0xf]
  %v104 = vld [vmem:[%s0 + $0x11c] sm:$0xf]
  %v105 = vld [vmem:[%s0 + $0x120] sm:$0xf]
  %v106 = vld [vmem:[%s0 + $0x124] sm:$0xf]
  %v107 = vld [vmem:[%s0 + $0x128] sm:$0xf]
  %v108 = vld [vmem:[%s0 + $0x12c] sm:$0xf]
  %v109 = vld [vmem:[%s0 + $0x130] sm:$0xf]
  %v110 = vld [vmem:[%s0 + $0x134] sm:$0xf]
  %v111 = vld [vmem:[%s0 + $0x138] sm:$0xf]
  %v112 = vld [vmem:[%s0 + $0x13c] sm:$0xf]
  %v113 = vld [vmem:[%s1] sm:$0xff]
  %v114 = vld [vmem:[%s1 + $0x8] sm:$0xff]
  %v115 = vld [vmem:[%s1 + $0x10] sm:$0xff]
  %v116 = vld [vmem:[%s1 + $0x18] sm:$0xff]
  %v117 = vld [vmem:[%s1 + $0x20] sm:$0xff]
  %v118 = vld [vmem:[%s1 + $0x28] sm:$0xff]
  %v119 = vld [vmem:[%s1 + $0x30] sm:$0xff]
  %v120 = vld [vmem:[%s1 + $0x38] sm:$0xff]
  %v121 = vld [vmem:[%s1 + $0x40] sm:$0xff]
  %v122 = vld [vmem:[%s1 + $0x48] sm:$0xff]
  %v123 = vld [vmem:[%s1 + $0x50] sm:$0xff]
  %v124 = vld [vmem:[%s1 + $0x58] sm:$0xff]
  %v125 = vld [vmem:[%s1 + $0x60] sm:$0xff]
  %v126 = vld [vmem:[%s1 + $0x68] sm:$0xff]
  %v127 = vld [vmem:[%s1 + $0x70] sm:$0xff]
  %v128 = vld [vmem:[%s1 + $0x78] sm:$0xff]
  %v129 = vld [vmem:[%s1 + $0x80] sm:$0xff]
  %v130 = vld [vmem:[%s1 + $0x88] sm:$0xff]
  %v131 = vld [vmem:[%s1 + $0x90] sm:$0xff]
  %v132 = vld [vmem:[%s1 + $0x98] sm:$0xff]
  %v133 = vld [vmem:[%s1 + $0xa0] sm:$0xff]
  %v134 = vld [vmem:[%s1 + $0xa8] sm:$0xff]
  %v135 = vld [vmem:[%s1 + $0xb0] sm:$0xff]
  %v136 = vld [vmem:[%s1 + $0xb8] sm:$0xff]
  %v137 = vld [vmem:[%s1 + $0xc0] sm:$0xff]
  %v138 = vld [vmem:[%s1 + $0xc8] sm:$0xff]
  %v139 = vld [vmem:[%s1 + $0xd0] sm:$0xff]
  %v140 = vld [vmem:[%s1 + $0xd8] sm:$0xff]
  %v141 = vld [vmem:[%s1 + $0xe0] sm:$0xff]
  %v142 = vld [vmem:[%s1 + $0xe8] sm:$0xff]
  %v143 = vld [vmem:[%s1 + $0xf0] sm:$0x33]
  %v144 = vld [vmem:[%s1 + $0xf8] sm:$0x33]
  %v145 = vld [vmem:[%s1 + $0x100] sm:$0x33]
  %v146 = vld [vmem:[%s2] sm:$0x3f]
  %v148 = vlaneseq
  %v149 = vshrl.u32 %v148, 7
  %v150 = vsub.s32 0, %v149
  %v151 = vrot.slane %v146, %v150
  %v152 = vlaneseq
  %v153 = vshrl.u32 %v152, 7
  %v154 = vsub.s32 1, %v153
  %v155 = vrot.slane %v146, %v154
  %v156 = vlaneseq
  %v157 = vshrl.u32 %v156, 7
  %v158 = vsub.s32 2, %v157
  %v159 = vrot.slane %v146, %v158
  %v160 = vlaneseq
  %v161 = vshrl.u32 %v160, 7
  %v162 = vsub.s32 3, %v161
  %v163 = vrot.slane %v146, %v162
  %v164 = vlaneseq
  %v165 = vshrl.u32 %v164, 7
  %v166 = vsub.s32 4, %v165
  %v167 = vrot.slane %v146, %v166
  %v168 = vlaneseq
  %v169 = vshrl.u32 %v168, 7
  %v170 = vsub.s32 5, %v169
  %v171 = vrot.slane %v146, %v170
  %v258 = vunpack.c.l.b16 %v33
  %v259 = vunpack.c.l.b16 %v34
  %v260 = vunpack.c.l.b16 %v35
  %v261 = vunpack.c.l.b16 %v36
  %v262 = vunpack.c.l.b16 %v37
  %v263 = vunpack.c.l.b16 %v38
  %v264 = vunpack.c.l.b16 %v39
  %v265 = vunpack.c.l.b16 %v40
  %v266 = vunpack.c.l.b16 %v41
  %v267 = vunpack.c.l.b16 %v42
  %v268 = vunpack.c.l.b16 %v43
  %v269 = vunpack.c.l.b16 %v44
  %v270 = vunpack.c.l.b16 %v45
  %v271 = vunpack.c.l.b16 %v46
  %v272 = vunpack.c.l.b16 %v47
  %v273 = vunpack.c.l.b16 %v48
  %v274 = vunpack.c.l.b16 %v49
  %v275 = vunpack.c.l.b16 %v50
  %v276 = vunpack.c.l.b16 %v51
  %v277 = vunpack.c.l.b16 %v52
  %v278 = vunpack.c.l.b16 %v53
  %v279 = vunpack.c.l.b16 %v54
  %v280 = vunpack.c.l.b16 %v55
  %v281 = vunpack.c.l.b16 %v56
  %v282 = vunpack.c.l.b16 %v57
  %v283 = vunpack.c.l.b16 %v58
  %v284 = vunpack.c.l.b16 %v59
  %v285 = vunpack.c.l.b16 %v60
  %v286 = vunpack.c.l.b16 %v61
  %v287 = vunpack.c.l.b16 %v62
  %v288 = vunpack.c.l.b16 %v63
  %v289 = vunpack.c.l.b16 %v64
  %v290 = vunpack.c.l.b16 %v65
  %v291 = vunpack.c.l.b16 %v66
  %v292 = vunpack.c.l.b16 %v67
  %v293 = vunpack.c.l.b16 %v68
  %v294 = vunpack.c.l.b16 %v69
  %v295 = vunpack.c.l.b16 %v70
  %v296 = vunpack.c.l.b16 %v71
  %v297 = vunpack.c.l.b16 %v72
  %v298 = vunpack.c.l.b16 %v73
  %v299 = vunpack.c.l.b16 %v74
  %v300 = vunpack.c.l.b16 %v75
  %v301 = vunpack.c.l.b16 %v76
  %v302 = vunpack.c.l.b16 %v77
  %v303 = vunpack.c.l.b16 %v78
  %v304 = vunpack.c.l.b16 %v79
  %v305 = vunpack.c.l.b16 %v80
  %v306 = vunpack.c.l.b16 %v81
  %v307 = vunpack.c.l.b16 %v82
  %v308 = vunpack.c.l.b16 %v83
  %v309 = vunpack.c.l.b16 %v84
  %v310 = vunpack.c.l.b16 %v85
  %v311 = vunpack.c.l.b16 %v86
  %v312 = vunpack.c.l.b16 %v87
  %v313 = vunpack.c.l.b16 %v88
  %v314 = vunpack.c.l.b16 %v89
  %v315 = vunpack.c.l.b16 %v90
  %v316 = vunpack.c.l.b16 %v91
  %v317 = vunpack.c.l.b16 %v92
  %v318 = vunpack.c.l.b16 %v93
  %v319 = vunpack.c.l.b16 %v94
  %v320 = vunpack.c.l.b16 %v95
  %v321 = vunpack.c.l.b16 %v96
  %v322 = vunpack.c.l.b16 %v97
  %v323 = vunpack.c.l.b16 %v98
  %v324 = vunpack.c.l.b16 %v99
  %v325 = vunpack.c.l.b16 %v100
  %v326 = vunpack.c.l.b16 %v101
  %v327 = vunpack.c.l.b16 %v102
  %v328 = vunpack.c.l.b16 %v103
  %v329 = vunpack.c.l.b16 %v104
  %v330 = vunpack.c.l.b16 %v105
  %v331 = vunpack.c.l.b16 %v106
  %v332 = vunpack.c.l.b16 %v107
  %v333 = vunpack.c.l.b16 %v108
  %v334 = vunpack.c.l.b16 %v109
  %v335 = vunpack.c.l.b16 %v110
  %v336 = vunpack.c.l.b16 %v111
  %v337 = vunpack.c.l.b16 %v112
  %v338 = vpack.c.b16 %v259, %v258
  %v339 = vpack.c.b16 %v261, %v260
  %v340 = vpack.c.b16 %v263, %v262
  %v341 = vpack.c.b16 %v265, %v264
  %v342 = vpack.c.b16 %v267, %v266
  %v343 = vpack.c.b16 %v269, %v268
  %v344 = vpack.c.b16 %v271, %v270
  %v345 = vpack.c.b16 %v273, %v272
  %v346 = vpack.c.b16 %v275, %v274
  %v347 = vpack.c.b16 %v277, %v276
  %v348 = vpack.c.b16 %v279, %v278
  %v349 = vpack.c.b16 %v281, %v280
  %v350 = vpack.c.b16 %v283, %v282
  %v351 = vpack.c.b16 %v285, %v284
  %v352 = vpack.c.b16 %v287, %v286
  %v353 = vpack.c.b16 %v289, %v288
  %v354 = vpack.c.b16 %v291, %v290
  %v355 = vpack.c.b16 %v293, %v292
  %v356 = vpack.c.b16 %v295, %v294
  %v357 = vpack.c.b16 %v297, %v296
  %v358 = vpack.c.b16 %v299, %v298
  %v359 = vpack.c.b16 %v301, %v300
  %v360 = vpack.c.b16 %v303, %v302
  %v361 = vpack.c.b16 %v305, %v304
  %v362 = vpack.c.b16 %v307, %v306
  %v363 = vpack.c.b16 %v309, %v308
  %v364 = vpack.c.b16 %v311, %v310
  %v365 = vpack.c.b16 %v313, %v312
  %v366 = vpack.c.b16 %v315, %v314
  %v367 = vpack.c.b16 %v317, %v316
  %v368 = vpack.c.b16 %v319, %v318
  %v369 = vpack.c.b16 %v321, %v320
  %v370 = vpack.c.b16 %v323, %v322
  %v371 = vpack.c.b16 %v325, %v324
  %v372 = vpack.c.b16 %v327, %v326
  %v373 = vpack.c.b16 %v329, %v328
  %v374 = vpack.c.b16 %v331, %v330
  %v375 = vpack.c.b16 %v333, %v332
  %v376 = vpack.c.b16 %v335, %v334
  %v377 = vpack.c.b16 %v337, %v336
  %v411 = vunpack.c.l.b16 %v113
  %v412 = vunpack.c.h.b16 %v113
  %v413 = vunpack.c.l.b16 %v114
  %v414 = vunpack.c.h.b16 %v114
  %v415 = vunpack.c.l.b16 %v115
  %v416 = vunpack.c.h.b16 %v115
  %v417 = vunpack.c.l.b16 %v116
  %v418 = vunpack.c.h.b16 %v116
  %v419 = vunpack.c.l.b16 %v117
  %v420 = vunpack.c.h.b16 %v117
  %v421 = vunpack.c.l.b16 %v118
  %v422 = vunpack.c.h.b16 %v118
  %v423 = vunpack.c.l.b16 %v119
  %v424 = vunpack.c.h.b16 %v119
  %v425 = vunpack.c.l.b16 %v120
  %v426 = vunpack.c.h.b16 %v120
  %v427 = vunpack.c.l.b16 %v121
  %v428 = vunpack.c.h.b16 %v121
  %v429 = vunpack.c.l.b16 %v122
  %v430 = vunpack.c.h.b16 %v122
  %v431 = vunpack.c.l.b16 %v123
  %v432 = vunpack.c.h.b16 %v123
  %v433 = vunpack.c.l.b16 %v124
  %v434 = vunpack.c.h.b16 %v124
  %v435 = vunpack.c.l.b16 %v125
  %v436 = vunpack.c.h.b16 %v125
  %v437 = vunpack.c.l.b16 %v126
  %v438 = vunpack.c.h.b16 %v126
  %v439 = vunpack.c.l.b16 %v127
  %v440 = vunpack.c.h.b16 %v127
  %v441 = vunpack.c.l.b16 %v128
  %v442 = vunpack.c.h.b16 %v128
  %v443 = vunpack.c.l.b16 %v129
  %v444 = vunpack.c.h.b16 %v129
  %v445 = vunpack.c.l.b16 %v130
  %v446 = vunpack.c.h.b16 %v130
  %v447 = vunpack.c.l.b16 %v131
  %v448 = vunpack.c.h.b16 %v131
  %v449 = vunpack.c.l.b16 %v132
  %v450 = vunpack.c.h.b16 %v132
  %v451 = vunpack.c.l.b16 %v133
  %v452 = vunpack.c.h.b16 %v133
  %v453 = vunpack.c.l.b16 %v134
  %v454 = vunpack.c.h.b16 %v134
  %v455 = vunpack.c.l.b16 %v135
  %v456 = vunpack.c.h.b16 %v135
  %v457 = vunpack.c.l.b16 %v136
  %v458 = vunpack.c.h.b16 %v136
  %v459 = vunpack.c.l.b16 %v137
  %v460 = vunpack.c.h.b16 %v137
  %v461 = vunpack.c.l.b16 %v138
  %v462 = vunpack.c.h.b16 %v138
  %v463 = vunpack.c.l.b16 %v139
  %v464 = vunpack.c.h.b16 %v139
  %v465 = vunpack.c.l.b16 %v140
  %v466 = vunpack.c.h.b16 %v140
  %v467 = vunpack.c.l.b16 %v141
  %v468 = vunpack.c.h.b16 %v141
  %v469 = vunpack.c.l.b16 %v142
  %v470 = vunpack.c.h.b16 %v142
  %v471 = vunpack.c.l.b16 %v143
  %v472 = vunpack.c.h.b16 %v143
  %v473 = vunpack.c.l.b16 %v144
  %v474 = vunpack.c.h.b16 %v144
  %v475 = vunpack.c.l.b16 %v145
  %v476 = vunpack.c.h.b16 %v145
  %v477 = vpack.c.b16 %v417, %v411
  %v478 = vpack.c.b16 %v418, %v412
  %v479 = vpack.c.b16 %v419, %v413
  %v480 = vpack.c.b16 %v420, %v414
  %v481 = vpack.c.b16 %v421, %v415
  %v482 = vpack.c.b16 %v422, %v416
  %v483 = vpack.c.b16 %v429, %v423
  %v484 = vpack.c.b16 %v430, %v424
  %v485 = vpack.c.b16 %v431, %v425
  %v486 = vpack.c.b16 %v432, %v426
  %v487 = vpack.c.b16 %v433, %v427
  %v488 = vpack.c.b16 %v434, %v428
  %v489 = vpack.c.b16 %v441, %v435
  %v490 = vpack.c.b16 %v442, %v436
  %v491 = vpack.c.b16 %v443, %v437
  %v492 = vpack.c.b16 %v444, %v438
  %v493 = vpack.c.b16 %v445, %v439
  %v494 = vpack.c.b16 %v446, %v440
  %v495 = vpack.c.b16 %v453, %v447
  %v496 = vpack.c.b16 %v454, %v448
  %v497 = vpack.c.b16 %v455, %v449
  %v498 = vpack.c.b16 %v456, %v450
  %v499 = vpack.c.b16 %v457, %v451
  %v500 = vpack.c.b16 %v458, %v452
  %v501 = vpack.c.b16 %v465, %v459
  %v502 = vpack.c.b16 %v466, %v460
  %v503 = vpack.c.b16 %v467, %v461
  %v504 = vpack.c.b16 %v468, %v462
  %v505 = vpack.c.b16 %v469, %v463
  %v506 = vpack.c.b16 %v470, %v464
  %v507 = vpack.c.b16 %v471, %v471
  %v508 = vpack.c.b16 %v472, %v472
  %v509 = vpack.c.b16 %v473, %v473
  %v510 = vpack.c.b16 %v474, %v474
  %v511 = vpack.c.b16 %v475, %v475
  %v512 = vpack.c.b16 %v476, %v476
  %vm543 = vcmask 687104
  %v545 = vsel %vm543, %v338, 0
  %v548 = vsel %vm543, %v339, 0
  %v551 = vsel %vm543, %v340, 0
  %v554 = vsel %vm543, %v341, 0
  %v557 = vsel %vm543, %v342, 0
  %v560 = vsel %vm543, %v343, 0
  %v563 = vsel %vm543, %v344, 0
  %v566 = vsel %vm543, %v345, 0
  %v569 = vsel %vm543, %v346, 0
  %v572 = vsel %vm543, %v347, 0
  %v575 = vsel %vm543, %v348, 0
  %v578 = vsel %vm543, %v349, 0
  %v581 = vsel %vm543, %v350, 0
  %v584 = vsel %vm543, %v351, 0
  %v587 = vsel %vm543, %v352, 0
  %v590 = vsel %vm543, %v353, 0
  %v593 = vsel %vm543, %v354, 0
  %v596 = vsel %vm543, %v355, 0
  %v599 = vsel %vm543, %v356, 0
  %v602 = vsel %vm543, %v357, 0
  %v605 = vsel %vm543, %v358, 0
  %v608 = vsel %vm543, %v359, 0
  %v611 = vsel %vm543, %v360, 0
  %v614 = vsel %vm543, %v361, 0
  %v617 = vsel %vm543, %v362, 0
  %v620 = vsel %vm543, %v363, 0
  %v623 = vsel %vm543, %v364, 0
  %v626 = vsel %vm543, %v365, 0
  %v629 = vsel %vm543, %v366, 0
  %v632 = vsel %vm543, %v367, 0
  %v635 = vsel %vm543, %v368, 0
  %v638 = vsel %vm543, %v369, 0
  %v641 = vsel %vm543, %v370, 0
  %v644 = vsel %vm543, %v371, 0
  %v647 = vsel %vm543, %v372, 0
  %v650 = vsel %vm543, %v373, 0
  %v653 = vsel %vm543, %v374, 0
  %v656 = vsel %vm543, %v375, 0
  %v659 = vsel %vm543, %v376, 0
  %v662 = vsel %vm543, %v377, 0
  %vm664 = vcmask 1041408
  %v666 = vsel %vm664, %v507, 0
  %v669 = vsel %vm664, %v508, 0
  %v672 = vsel %vm664, %v509, 0
  %v675 = vsel %vm664, %v510, 0
  %v678 = vsel %vm664, %v511, 0
  %v681 = vsel %vm664, %v512, 0
  %683 = vmatprep.subr.bf16.mxu0 0
  %684 = vmatpush1.bf16.msra.mxu0 0
  %685 = vmatprep.subr.bf16.mxu0 0
  %686 = vmatpush1.bf16.msra.mxu0 0
  %687 = vmatprep.subr.bf16.mxu0 %v669
  %688 = vmatpush1.bf16.msra.mxu0 %v666
  %689 = vmatprep.subr.bf16.mxu0 %v502
  %690 = vmatpush1.bf16.msra.mxu0 %v501
  %691 = vmatprep.subr.bf16.mxu0 %v496
  %692 = vmatpush1.bf16.msra.mxu0 %v495
  %693 = vmatprep.subr.bf16.mxu0 %v490
  %694 = vmatpush1.bf16.msra.mxu0 %v489
  %695 = vmatprep.subr.bf16.mxu0 %v484
  %696 = vmatpush1.bf16.msra.mxu0 %v483
  %697 = vmatprep.subr.bf16.mxu0 %v478
  %698 = vmatpush1.bf16.msra.mxu0 %v477
  %699 = vmatprep.subr.bf16.mxu0 0
  %700 = vmatpush2.bf16.msra.mxu0 0
  %701 = vmatprep.subr.bf16.mxu0 0
  %702 = vmatpush2.bf16.msra.mxu0 0
  %703 = vmatprep.subr.bf16.mxu0 0
  %704 = vmatpush2.bf16.msra.mxu0 0
  %705 = vmatprep.subr.bf16.mxu0 0
  %706 = vmatpush2.bf16.msra.mxu0 0
  %707 = vmatprep.subr.bf16.mxu0 0
  %708 = vmatpush2.bf16.msra.mxu0 0
  %709 = vmatprep.subr.bf16.mxu0 0
  %710 = vmatpush2.bf16.msra.mxu0 0
  %711 = vmatprep.subr.bf16.mxu0 0
  %712 = vmatpush2.bf16.msra.mxu0 0
  %713 = vmatprep.subr.bf16.mxu0 0
  %714 = vmatpush2.bf16.msra.mxu0 0
  %715 = vmatprep.mubr.bf16.mxu0 0
  %716 = vmatmul.mubr.bf16.gmra.mxu0 %v545
  %v717 = vpop.f32.mrf.mxu0
  %v718 = vadd.f32 %v151, %v717
  %v719 = vpop.f32.mrf.mxu0
  %v720 = vadd.f32 %v155, %v719
  %v721 = vpop.f32.mrf.mxu0
  %v722 = vadd.f32 %v151, %v721
  %v723 = vpop.f32.mrf.mxu0
  %v724 = vadd.f32 %v155, %v723
  %725 = vmatprep.mubr.bf16.mxu0 0
  %726 = vmatmul.mubr.bf16.gmra.mxu0 %v548
  %v727 = vpop.f32.mrf.mxu0
  %v728 = vadd.f32 %v151, %v727
  %v729 = vpop.f32.mrf.mxu0
  %v730 = vadd.f32 %v155, %v729
  %v731 = vpop.f32.mrf.mxu0
  %v732 = vadd.f32 %v151, %v731
  %v733 = vpop.f32.mrf.mxu0
  %v734 = vadd.f32 %v155, %v733
  %735 = vmatprep.mubr.bf16.mxu0 0
  %736 = vmatmul.mubr.bf16.gmra.mxu0 %v551
  %v737 = vpop.f32.mrf.mxu0
  %v738 = vadd.f32 %v151, %v737
  %v739 = vpop.f32.mrf.mxu0
  %v740 = vadd.f32 %v155, %v739
  %v741 = vpop.f32.mrf.mxu0
  %v742 = vadd.f32 %v151, %v741
  %v743 = vpop.f32.mrf.mxu0
  %v744 = vadd.f32 %v155, %v743
  %745 = vmatprep.mubr.bf16.mxu0 0
  %746 = vmatmul.mubr.bf16.gmra.mxu0 %v554
  %v747 = vpop.f32.mrf.mxu0
  %v748 = vadd.f32 %v151, %v747
  %v749 = vpop.f32.mrf.mxu0
  %v750 = vadd.f32 %v155, %v749
  %v751 = vpop.f32.mrf.mxu0
  %v752 = vadd.f32 %v151, %v751
  %v753 = vpop.f32.mrf.mxu0
  %v754 = vadd.f32 %v155, %v753
  %755 = vmatprep.mubr.bf16.mxu0 0
  %756 = vmatmul.mubr.bf16.gmra.mxu0 %v557
  %v757 = vpop.f32.mrf.mxu0
  %v758 = vadd.f32 %v151, %v757
  %v759 = vpop.f32.mrf.mxu0
  %v760 = vadd.f32 %v155, %v759
  %v761 = vpop.f32.mrf.mxu0
  %v762 = vadd.f32 %v151, %v761
  %v763 = vpop.f32.mrf.mxu0
  %v764 = vadd.f32 %v155, %v763
  %765 = vmatprep.mubr.bf16.mxu0 0
  %766 = vmatmul.mubr.bf16.gmra.mxu0 %v560
  %v767 = vpop.f32.mrf.mxu0
  %v768 = vadd.f32 %v151, %v767
  %v769 = vpop.f32.mrf.mxu0
  %v770 = vadd.f32 %v155, %v769
  %v771 = vpop.f32.mrf.mxu0
  %v772 = vadd.f32 %v151, %v771
  %v773 = vpop.f32.mrf.mxu0
  %v774 = vadd.f32 %v155, %v773
  %775 = vmatprep.mubr.bf16.mxu0 0
  %776 = vmatmul.mubr.bf16.gmra.mxu0 %v563
  %v777 = vpop.f32.mrf.mxu0
  %v778 = vadd.f32 %v151, %v777
  %v779 = vpop.f32.mrf.mxu0
  %v780 = vadd.f32 %v155, %v779
  %v781 = vpop.f32.mrf.mxu0
  %v782 = vadd.f32 %v151, %v781
  %v783 = vpop.f32.mrf.mxu0
  %v784 = vadd.f32 %v155, %v783
  %785 = vmatprep.mubr.bf16.mxu0 0
  %786 = vmatmul.mubr.bf16.gmra.mxu0 %v566
  %v787 = vpop.f32.mrf.mxu0
  %v788 = vadd.f32 %v151, %v787
  %v789 = vpop.f32.mrf.mxu0
  %v790 = vadd.f32 %v155, %v789
  %v791 = vpop.f32.mrf.mxu0
  %v792 = vadd.f32 %v151, %v791
  %v793 = vpop.f32.mrf.mxu0
  %v794 = vadd.f32 %v155, %v793
  %795 = vmatprep.mubr.bf16.mxu0 0
  %796 = vmatmul.mubr.bf16.gmra.mxu0 %v569
  %v797 = vpop.f32.mrf.mxu0
  %v798 = vadd.f32 %v151, %v797
  %v799 = vpop.f32.mrf.mxu0
  %v800 = vadd.f32 %v155, %v799
  %v801 = vpop.f32.mrf.mxu0
  %v802 = vadd.f32 %v151, %v801
  %v803 = vpop.f32.mrf.mxu0
  %v804 = vadd.f32 %v155, %v803
  %805 = vmatprep.mubr.bf16.mxu0 0
  %806 = vmatmul.mubr.bf16.gmra.mxu0 %v572
  %v807 = vpop.f32.mrf.mxu0
  %v808 = vadd.f32 %v151, %v807
  %v809 = vpop.f32.mrf.mxu0
  %v810 = vadd.f32 %v155, %v809
  %v811 = vpop.f32.mrf.mxu0
  %v812 = vadd.f32 %v151, %v811
  %v813 = vpop.f32.mrf.mxu0
  %v814 = vadd.f32 %v155, %v813
  %815 = vmatprep.mubr.bf16.mxu0 0
  %816 = vmatmul.mubr.bf16.gmra.mxu0 %v575
  %v817 = vpop.f32.mrf.mxu0
  %v818 = vadd.f32 %v151, %v817
  %v819 = vpop.f32.mrf.mxu0
  %v820 = vadd.f32 %v155, %v819
  %v821 = vpop.f32.mrf.mxu0
  %v822 = vadd.f32 %v151, %v821
  %v823 = vpop.f32.mrf.mxu0
  %v824 = vadd.f32 %v155, %v823
  %825 = vmatprep.mubr.bf16.mxu0 0
  %826 = vmatmul.mubr.bf16.gmra.mxu0 %v578
  %v827 = vpop.f32.mrf.mxu0
  %v828 = vadd.f32 %v151, %v827
  %v829 = vpop.f32.mrf.mxu0
  %v830 = vadd.f32 %v155, %v829
  %v831 = vpop.f32.mrf.mxu0
  %v832 = vadd.f32 %v151, %v831
  %v833 = vpop.f32.mrf.mxu0
  %v834 = vadd.f32 %v155, %v833
  %835 = vmatprep.mubr.bf16.mxu0 0
  %836 = vmatmul.mubr.bf16.gmra.mxu0 %v581
  %v837 = vpop.f32.mrf.mxu0
  %v838 = vadd.f32 %v151, %v837
  %v839 = vpop.f32.mrf.mxu0
  %v840 = vadd.f32 %v155, %v839
  %v841 = vpop.f32.mrf.mxu0
  %v842 = vadd.f32 %v151, %v841
  %v843 = vpop.f32.mrf.mxu0
  %v844 = vadd.f32 %v155, %v843
  %845 = vmatprep.mubr.bf16.mxu0 0
  %846 = vmatmul.mubr.bf16.gmra.mxu0 %v584
  %v847 = vpop.f32.mrf.mxu0
  %v848 = vadd.f32 %v151, %v847
  %v849 = vpop.f32.mrf.mxu0
  %v850 = vadd.f32 %v155, %v849
  %v851 = vpop.f32.mrf.mxu0
  %v852 = vadd.f32 %v151, %v851
  %v853 = vpop.f32.mrf.mxu0
  %v854 = vadd.f32 %v155, %v853
  %855 = vmatprep.mubr.bf16.mxu0 0
  %856 = vmatmul.mubr.bf16.gmra.mxu0 %v587
  %v857 = vpop.f32.mrf.mxu0
  %v858 = vadd.f32 %v151, %v857
  %v859 = vpop.f32.mrf.mxu0
  %v860 = vadd.f32 %v155, %v859
  %v861 = vpop.f32.mrf.mxu0
  %v862 = vadd.f32 %v151, %v861
  %v863 = vpop.f32.mrf.mxu0
  %v864 = vadd.f32 %v155, %v863
  %865 = vmatprep.mubr.bf16.mxu0 0
  %866 = vmatmul.mubr.bf16.gmra.mxu0 %v590
  %v867 = vpop.f32.mrf.mxu0
  %v868 = vadd.f32 %v151, %v867
  %v869 = vpop.f32.mrf.mxu0
  %v870 = vadd.f32 %v155, %v869
  %v871 = vpop.f32.mrf.mxu0
  %v872 = vadd.f32 %v151, %v871
  %v873 = vpop.f32.mrf.mxu0
  %v874 = vadd.f32 %v155, %v873
  %875 = vmatprep.mubr.bf16.mxu0 0
  %876 = vmatmul.mubr.bf16.gmra.mxu0 %v593
  %v877 = vpop.f32.mrf.mxu0
  %v878 = vadd.f32 %v151, %v877
  %v879 = vpop.f32.mrf.mxu0
  %v880 = vadd.f32 %v155, %v879
  %v881 = vpop.f32.mrf.mxu0
  %v882 = vadd.f32 %v151, %v881
  %v883 = vpop.f32.mrf.mxu0
  %v884 = vadd.f32 %v155, %v883
  %885 = vmatprep.mubr.bf16.mxu0 0
  %886 = vmatmul.mubr.bf16.gmra.mxu0 %v596
  %v887 = vpop.f32.mrf.mxu0
  %v888 = vadd.f32 %v151, %v887
  %v889 = vpop.f32.mrf.mxu0
  %v890 = vadd.f32 %v155, %v889
  %v891 = vpop.f32.mrf.mxu0
  %v892 = vadd.f32 %v151, %v891
  %v893 = vpop.f32.mrf.mxu0
  %v894 = vadd.f32 %v155, %v893
  %895 = vmatprep.mubr.bf16.mxu0 0
  %896 = vmatmul.mubr.bf16.gmra.mxu0 %v599
  %v897 = vpop.f32.mrf.mxu0
  %v898 = vadd.f32 %v151, %v897
  %v899 = vpop.f32.mrf.mxu0
  %v900 = vadd.f32 %v155, %v899
  %v901 = vpop.f32.mrf.mxu0
  %v902 = vadd.f32 %v151, %v901
  %v903 = vpop.f32.mrf.mxu0
  %v904 = vadd.f32 %v155, %v903
  %905 = vmatprep.mubr.bf16.mxu0 0
  %906 = vmatmul.mubr.bf16.gmra.mxu0 %v602
  %v907 = vpop.f32.mrf.mxu0
  %v908 = vadd.f32 %v151, %v907
  %v909 = vpop.f32.mrf.mxu0
  %v910 = vadd.f32 %v155, %v909
  %v911 = vpop.f32.mrf.mxu0
  %v912 = vadd.f32 %v151, %v911
  %v913 = vpop.f32.mrf.mxu0
  %v914 = vadd.f32 %v155, %v913
  %915 = vmatprep.mubr.bf16.mxu0 0
  %916 = vmatmul.mubr.bf16.gmra.mxu0 %v605
  %v917 = vpop.f32.mrf.mxu0
  %v918 = vadd.f32 %v151, %v917
  %v919 = vpop.f32.mrf.mxu0
  %v920 = vadd.f32 %v155, %v919
  %v921 = vpop.f32.mrf.mxu0
  %v922 = vadd.f32 %v151, %v921
  %v923 = vpop.f32.mrf.mxu0
  %v924 = vadd.f32 %v155, %v923
  %925 = vmatprep.mubr.bf16.mxu0 0
  %926 = vmatmul.mubr.bf16.gmra.mxu0 %v608
  %v927 = vpop.f32.mrf.mxu0
  %v928 = vadd.f32 %v151, %v927
  %v929 = vpop.f32.mrf.mxu0
  %v930 = vadd.f32 %v155, %v929
  %v931 = vpop.f32.mrf.mxu0
  %v932 = vadd.f32 %v151, %v931
  %v933 = vpop.f32.mrf.mxu0
  %v934 = vadd.f32 %v155, %v933
  %935 = vmatprep.mubr.bf16.mxu0 0
  %936 = vmatmul.mubr.bf16.gmra.mxu0 %v611
  %v937 = vpop.f32.mrf.mxu0
  %v938 = vadd.f32 %v151, %v937
  %v939 = vpop.f32.mrf.mxu0
  %v940 = vadd.f32 %v155, %v939
  %v941 = vpop.f32.mrf.mxu0
  %v942 = vadd.f32 %v151, %v941
  %v943 = vpop.f32.mrf.mxu0
  %v944 = vadd.f32 %v155, %v943
  %945 = vmatprep.mubr.bf16.mxu0 0
  %946 = vmatmul.mubr.bf16.gmra.mxu0 %v614
  %v947 = vpop.f32.mrf.mxu0
  %v948 = vadd.f32 %v151, %v947
  %v949 = vpop.f32.mrf.mxu0
  %v950 = vadd.f32 %v155, %v949
  %v951 = vpop.f32.mrf.mxu0
  %v952 = vadd.f32 %v151, %v951
  %v953 = vpop.f32.mrf.mxu0
  %v954 = vadd.f32 %v155, %v953
  %955 = vmatprep.mubr.bf16.mxu0 0
  %956 = vmatmul.mubr.bf16.gmra.mxu0 %v617
  %v957 = vpop.f32.mrf.mxu0
  %v958 = vadd.f32 %v151, %v957
  %v959 = vpop.f32.mrf.mxu0
  %v960 = vadd.f32 %v155, %v959
  %v961 = vpop.f32.mrf.mxu0
  %v962 = vadd.f32 %v151, %v961
  %v963 = vpop.f32.mrf.mxu0
  %v964 = vadd.f32 %v155, %v963
  %965 = vmatprep.mubr.bf16.mxu0 0
  %966 = vmatmul.mubr.bf16.gmra.mxu0 %v620
  %v967 = vpop.f32.mrf.mxu0
  %v968 = vadd.f32 %v151, %v967
  %v969 = vpop.f32.mrf.mxu0
  %v970 = vadd.f32 %v155, %v969
  %v971 = vpop.f32.mrf.mxu0
  %v972 = vadd.f32 %v151, %v971
  %v973 = vpop.f32.mrf.mxu0
  %v974 = vadd.f32 %v155, %v973
  %975 = vmatprep.mubr.bf16.mxu0 0
  %976 = vmatmul.mubr.bf16.gmra.mxu0 %v623
  %v977 = vpop.f32.mrf.mxu0
  %v978 = vadd.f32 %v151, %v977
  %v979 = vpop.f32.mrf.mxu0
  %v980 = vadd.f32 %v155, %v979
  %v981 = vpop.f32.mrf.mxu0
  %v982 = vadd.f32 %v151, %v981
  %v983 = vpop.f32.mrf.mxu0
  %v984 = vadd.f32 %v155, %v983
  %985 = vmatprep.mubr.bf16.mxu0 0
  %986 = vmatmul.mubr.bf16.gmra.mxu0 %v626
  %v987 = vpop.f32.mrf.mxu0
  %v988 = vadd.f32 %v151, %v987
  %v989 = vpop.f32.mrf.mxu0
  %v990 = vadd.f32 %v155, %v989
  %v991 = vpop.f32.mrf.mxu0
  %v992 = vadd.f32 %v151, %v991
  %v993 = vpop.f32.mrf.mxu0
  %v994 = vadd.f32 %v155, %v993
  %995 = vmatprep.mubr.bf16.mxu0 0
  %996 = vmatmul.mubr.bf16.gmra.mxu0 %v629
  %v997 = vpop.f32.mrf.mxu0
  %v998 = vadd.f32 %v151, %v997
  %v999 = vpop.f32.mrf.mxu0
  %v1000 = vadd.f32 %v155, %v999
  %v1001 = vpop.f32.mrf.mxu0
  %v1002 = vadd.f32 %v151, %v1001
  %v1003 = vpop.f32.mrf.mxu0
  %v1004 = vadd.f32 %v155, %v1003
  %1005 = vmatprep.mubr.bf16.mxu0 0
  %1006 = vmatmul.mubr.bf16.gmra.mxu0 %v632
  %v1007 = vpop.f32.mrf.mxu0
  %v1008 = vadd.f32 %v151, %v1007
  %v1009 = vpop.f32.mrf.mxu0
  %v1010 = vadd.f32 %v155, %v1009
  %v1011 = vpop.f32.mrf.mxu0
  %v1012 = vadd.f32 %v151, %v1011
  %v1013 = vpop.f32.mrf.mxu0
  %v1014 = vadd.f32 %v155, %v1013
  %1015 = vmatprep.mubr.bf16.mxu0 0
  %1016 = vmatmul.mubr.bf16.gmra.mxu0 %v635
  %v1017 = vpop.f32.mrf.mxu0
  %v1018 = vadd.f32 %v151, %v1017
  %v1019 = vpop.f32.mrf.mxu0
  %v1020 = vadd.f32 %v155, %v1019
  %v1021 = vpop.f32.mrf.mxu0
  %v1022 = vadd.f32 %v151, %v1021
  %v1023 = vpop.f32.mrf.mxu0
  %v1024 = vadd.f32 %v155, %v1023
  %1025 = vmatprep.mubr.bf16.mxu0 0
  %1026 = vmatmul.mubr.bf16.gmra.mxu0 %v638
  %v1027 = vpop.f32.mrf.mxu0
  %v1028 = vadd.f32 %v151, %v1027
  %v1029 = vpop.f32.mrf.mxu0
  %v1030 = vadd.f32 %v155, %v1029
  %v1031 = vpop.f32.mrf.mxu0
  %v1032 = vadd.f32 %v151, %v1031
  %v1033 = vpop.f32.mrf.mxu0
  %v1034 = vadd.f32 %v155, %v1033
  %1035 = vmatprep.mubr.bf16.mxu0 0
  %1036 = vmatmul.mubr.bf16.gmra.mxu0 %v641
  %v1037 = vpop.f32.mrf.mxu0
  %v1038 = vadd.f32 %v151, %v1037
  %v1039 = vpop.f32.mrf.mxu0
  %v1040 = vadd.f32 %v155, %v1039
  %v1041 = vpop.f32.mrf.mxu0
  %v1042 = vadd.f32 %v151, %v1041
  %v1043 = vpop.f32.mrf.mxu0
  %v1044 = vadd.f32 %v155, %v1043
  %1045 = vmatprep.mubr.bf16.mxu0 0
  %1046 = vmatmul.mubr.bf16.gmra.mxu0 %v644
  %v1047 = vpop.f32.mrf.mxu0
  %v1048 = vadd.f32 %v151, %v1047
  %v1049 = vpop.f32.mrf.mxu0
  %v1050 = vadd.f32 %v155, %v1049
  %v1051 = vpop.f32.mrf.mxu0
  %v1052 = vadd.f32 %v151, %v1051
  %v1053 = vpop.f32.mrf.mxu0
  %v1054 = vadd.f32 %v155, %v1053
  %1055 = vmatprep.mubr.bf16.mxu0 0
  %1056 = vmatmul.mubr.bf16.gmra.mxu0 %v647
  %v1057 = vpop.f32.mrf.mxu0
  %v1058 = vadd.f32 %v151, %v1057
  %v1059 = vpop.f32.mrf.mxu0
  %v1060 = vadd.f32 %v155, %v1059
  %v1061 = vpop.f32.mrf.mxu0
  %v1062 = vadd.f32 %v151, %v1061
  %v1063 = vpop.f32.mrf.mxu0
  %v1064 = vadd.f32 %v155, %v1063
  %1065 = vmatprep.mubr.bf16.mxu0 0
  %1066 = vmatmul.mubr.bf16.gmra.mxu0 %v650
  %v1067 = vpop.f32.mrf.mxu0
  %v1068 = vadd.f32 %v151, %v1067
  %v1069 = vpop.f32.mrf.mxu0
  %v1070 = vadd.f32 %v155, %v1069
  %v1071 = vpop.f32.mrf.mxu0
  %v1072 = vadd.f32 %v151, %v1071
  %v1073 = vpop.f32.mrf.mxu0
  %v1074 = vadd.f32 %v155, %v1073
  %1075 = vmatprep.mubr.bf16.mxu0 0
  %1076 = vmatmul.mubr.bf16.gmra.mxu0 %v653
  %v1077 = vpop.f32.mrf.mxu0
  %v1078 = vadd.f32 %v151, %v1077
  %v1079 = vpop.f32.mrf.mxu0
  %v1080 = vadd.f32 %v155, %v1079
  %v1081 = vpop.f32.mrf.mxu0
  %v1082 = vadd.f32 %v151, %v1081
  %v1083 = vpop.f32.mrf.mxu0
  %v1084 = vadd.f32 %v155, %v1083
  %1085 = vmatprep.mubr.bf16.mxu0 0
  %1086 = vmatmul.mubr.bf16.gmra.mxu0 %v656
  %v1087 = vpop.f32.mrf.mxu0
  %v1088 = vadd.f32 %v151, %v1087
  %v1089 = vpop.f32.mrf.mxu0
  %v1090 = vadd.f32 %v155, %v1089
  %v1091 = vpop.f32.mrf.mxu0
  %v1092 = vadd.f32 %v151, %v1091
  %v1093 = vpop.f32.mrf.mxu0
  %v1094 = vadd.f32 %v155, %v1093
  %1095 = vmatprep.mubr.bf16.mxu0 0
  %1096 = vmatmul.mubr.bf16.gmra.mxu0 %v659
  %v1097 = vpop.f32.mrf.mxu0
  %v1098 = vadd.f32 %v151, %v1097
  %v1099 = vpop.f32.mrf.mxu0
  %v1100 = vadd.f32 %v155, %v1099
  %v1101 = vpop.f32.mrf.mxu0
  %v1102 = vadd.f32 %v151, %v1101
  %v1103 = vpop.f32.mrf.mxu0
  %v1104 = vadd.f32 %v155, %v1103
  %1105 = vmatprep.mubr.bf16.mxu0 0
  %1106 = vmatmul.mubr.bf16.gmra.mxu0 %v662
  %v1107 = vpop.f32.mrf.mxu0
  %v1108 = vpop.f32.mrf.mxu0
  %v1109 = vpop.f32.mrf.mxu0
  %v1110 = vpop.f32.mrf.mxu0
  %1111 = vdwg.mxu0
  %1112 = vmatprep.subr.bf16.mxu0 0
  %1113 = vmatpush1.bf16.msra.mxu0 0
  %1114 = vmatprep.subr.bf16.mxu0 0
  %1115 = vmatpush1.bf16.msra.mxu0 0
  %1116 = vmatprep.subr.bf16.mxu0 %v675
  %1117 = vmatpush1.bf16.msra.mxu0 %v672
  %1118 = vmatprep.subr.bf16.mxu0 %v504
  %1119 = vmatpush1.bf16.msra.mxu0 %v503
  %1120 = vmatprep.subr.bf16.mxu0 %v498
  %1121 = vmatpush1.bf16.msra.mxu0 %v497
  %1122 = vmatprep.subr.bf16.mxu0 %v492
  %1123 = vmatpush1.bf16.msra.mxu0 %v491
  %1124 = vmatprep.subr.bf16.mxu0 %v486
  %1125 = vmatpush1.bf16.msra.mxu0 %v485
  %1126 = vmatprep.subr.bf16.mxu0 %v480
  %1127 = vmatpush1.bf16.msra.mxu0 %v479
  %1128 = vmatprep.subr.bf16.mxu0 0
  %1129 = vmatpush2.bf16.msra.mxu0 0
  %1130 = vmatprep.subr.bf16.mxu0 0
  %1131 = vmatpush2.bf16.msra.mxu0 0
  %1132 = vmatprep.subr.bf16.mxu0 0
  %1133 = vmatpush2.bf16.msra.mxu0 0
  %1134 = vmatprep.subr.bf16.mxu0 0
  %1135 = vmatpush2.bf16.msra.mxu0 0
  %1136 = vmatprep.subr.bf16.mxu0 0
  %1137 = vmatpush2.bf16.msra.mxu0 0
  %1138 = vmatprep.subr.bf16.mxu0 0
  %1139 = vmatpush2.bf16.msra.mxu0 0
  %1140 = vmatprep.subr.bf16.mxu0 0
  %1141 = vmatpush2.bf16.msra.mxu0 0
  %1142 = vmatprep.subr.bf16.mxu0 0
  %1143 = vmatpush2.bf16.msra.mxu0 0
  %1144 = vmatprep.mubr.bf16.mxu0 0
  %1145 = vmatmul.mubr.bf16.gmra.mxu0 %v545
  %v1146 = vpop.f32.mrf.mxu0
  %v1147 = vadd.f32 %v159, %v1146
  %v1148 = vpop.f32.mrf.mxu0
  %v1149 = vadd.f32 %v163, %v1148
  %v1150 = vpop.f32.mrf.mxu0
  %v1151 = vadd.f32 %v159, %v1150
  %v1152 = vpop.f32.mrf.mxu0
  %v1153 = vadd.f32 %v163, %v1152
  %1154 = vmatprep.mubr.bf16.mxu0 0
  %1155 = vmatmul.mubr.bf16.gmra.mxu0 %v548
  %v1156 = vpop.f32.mrf.mxu0
  %v1157 = vadd.f32 %v159, %v1156
  %v1158 = vpop.f32.mrf.mxu0
  %v1159 = vadd.f32 %v163, %v1158
  %v1160 = vpop.f32.mrf.mxu0
  %v1161 = vadd.f32 %v159, %v1160
  %v1162 = vpop.f32.mrf.mxu0
  %v1163 = vadd.f32 %v163, %v1162
  %1164 = vmatprep.mubr.bf16.mxu0 0
  %1165 = vmatmul.mubr.bf16.gmra.mxu0 %v551
  %v1166 = vpop.f32.mrf.mxu0
  %v1167 = vadd.f32 %v159, %v1166
  %v1168 = vpop.f32.mrf.mxu0
  %v1169 = vadd.f32 %v163, %v1168
  %v1170 = vpop.f32.mrf.mxu0
  %v1171 = vadd.f32 %v159, %v1170
  %v1172 = vpop.f32.mrf.mxu0
  %v1173 = vadd.f32 %v163, %v1172
  %1174 = vmatprep.mubr.bf16.mxu0 0
  %1175 = vmatmul.mubr.bf16.gmra.mxu0 %v554
  %v1176 = vpop.f32.mrf.mxu0
  %v1177 = vadd.f32 %v159, %v1176
  %v1178 = vpop.f32.mrf.mxu0
  %v1179 = vadd.f32 %v163, %v1178
  %v1180 = vpop.f32.mrf.mxu0
  %v1181 = vadd.f32 %v159, %v1180
  %v1182 = vpop.f32.mrf.mxu0
  %v1183 = vadd.f32 %v163, %v1182
  %1184 = vmatprep.mubr.bf16.mxu0 0
  %1185 = vmatmul.mubr.bf16.gmra.mxu0 %v557
  %v1186 = vpop.f32.mrf.mxu0
  %v1187 = vadd.f32 %v159, %v1186
  %v1188 = vpop.f32.mrf.mxu0
  %v1189 = vadd.f32 %v163, %v1188
  %v1190 = vpop.f32.mrf.mxu0
  %v1191 = vadd.f32 %v159, %v1190
  %v1192 = vpop.f32.mrf.mxu0
  %v1193 = vadd.f32 %v163, %v1192
  %1194 = vmatprep.mubr.bf16.mxu0 0
  %1195 = vmatmul.mubr.bf16.gmra.mxu0 %v560
  %v1196 = vpop.f32.mrf.mxu0
  %v1197 = vadd.f32 %v159, %v1196
  %v1198 = vpop.f32.mrf.mxu0
  %v1199 = vadd.f32 %v163, %v1198
  %v1200 = vpop.f32.mrf.mxu0
  %v1201 = vadd.f32 %v159, %v1200
  %v1202 = vpop.f32.mrf.mxu0
  %v1203 = vadd.f32 %v163, %v1202
  %1204 = vmatprep.mubr.bf16.mxu0 0
  %1205 = vmatmul.mubr.bf16.gmra.mxu0 %v563
  %v1206 = vpop.f32.mrf.mxu0
  %v1207 = vadd.f32 %v159, %v1206
  %v1208 = vpop.f32.mrf.mxu0
  %v1209 = vadd.f32 %v163, %v1208
  %v1210 = vpop.f32.mrf.mxu0
  %v1211 = vadd.f32 %v159, %v1210
  %v1212 = vpop.f32.mrf.mxu0
  %v1213 = vadd.f32 %v163, %v1212
  %1214 = vmatprep.mubr.bf16.mxu0 0
  %1215 = vmatmul.mubr.bf16.gmra.mxu0 %v566
  %v1216 = vpop.f32.mrf.mxu0
  %v1217 = vadd.f32 %v159, %v1216
  %v1218 = vpop.f32.mrf.mxu0
  %v1219 = vadd.f32 %v163, %v1218
  %v1220 = vpop.f32.mrf.mxu0
  %v1221 = vadd.f32 %v159, %v1220
  %v1222 = vpop.f32.mrf.mxu0
  %v1223 = vadd.f32 %v163, %v1222
  %1224 = vmatprep.mubr.bf16.mxu0 0
  %1225 = vmatmul.mubr.bf16.gmra.mxu0 %v569
  %v1226 = vpop.f32.mrf.mxu0
  %v1227 = vadd.f32 %v159, %v1226
  %v1228 = vpop.f32.mrf.mxu0
  %v1229 = vadd.f32 %v163, %v1228
  %v1230 = vpop.f32.mrf.mxu0
  %v1231 = vadd.f32 %v159, %v1230
  %v1232 = vpop.f32.mrf.mxu0
  %v1233 = vadd.f32 %v163, %v1232
  %1234 = vmatprep.mubr.bf16.mxu0 0
  %1235 = vmatmul.mubr.bf16.gmra.mxu0 %v572
  %v1236 = vpop.f32.mrf.mxu0
  %v1237 = vadd.f32 %v159, %v1236
  %v1238 = vpop.f32.mrf.mxu0
  %v1239 = vadd.f32 %v163, %v1238
  %v1240 = vpop.f32.mrf.mxu0
  %v1241 = vadd.f32 %v159, %v1240
  %v1242 = vpop.f32.mrf.mxu0
  %v1243 = vadd.f32 %v163, %v1242
  %1244 = vmatprep.mubr.bf16.mxu0 0
  %1245 = vmatmul.mubr.bf16.gmra.mxu0 %v575
  %v1246 = vpop.f32.mrf.mxu0
  %v1247 = vadd.f32 %v159, %v1246
  %v1248 = vpop.f32.mrf.mxu0
  %v1249 = vadd.f32 %v163, %v1248
  %v1250 = vpop.f32.mrf.mxu0
  %v1251 = vadd.f32 %v159, %v1250
  %v1252 = vpop.f32.mrf.mxu0
  %v1253 = vadd.f32 %v163, %v1252
  %1254 = vmatprep.mubr.bf16.mxu0 0
  %1255 = vmatmul.mubr.bf16.gmra.mxu0 %v578
  %v1256 = vpop.f32.mrf.mxu0
  %v1257 = vadd.f32 %v159, %v1256
  %v1258 = vpop.f32.mrf.mxu0
  %v1259 = vadd.f32 %v163, %v1258
  %v1260 = vpop.f32.mrf.mxu0
  %v1261 = vadd.f32 %v159, %v1260
  %v1262 = vpop.f32.mrf.mxu0
  %v1263 = vadd.f32 %v163, %v1262
  %1264 = vmatprep.mubr.bf16.mxu0 0
  %1265 = vmatmul.mubr.bf16.gmra.mxu0 %v581
  %v1266 = vpop.f32.mrf.mxu0
  %v1267 = vadd.f32 %v159, %v1266
  %v1268 = vpop.f32.mrf.mxu0
  %v1269 = vadd.f32 %v163, %v1268
  %v1270 = vpop.f32.mrf.mxu0
  %v1271 = vadd.f32 %v159, %v1270
  %v1272 = vpop.f32.mrf.mxu0
  %v1273 = vadd.f32 %v163, %v1272
  %1274 = vmatprep.mubr.bf16.mxu0 0
  %1275 = vmatmul.mubr.bf16.gmra.mxu0 %v584
  %v1276 = vpop.f32.mrf.mxu0
  %v1277 = vadd.f32 %v159, %v1276
  %v1278 = vpop.f32.mrf.mxu0
  %v1279 = vadd.f32 %v163, %v1278
  %v1280 = vpop.f32.mrf.mxu0
  %v1281 = vadd.f32 %v159, %v1280
  %v1282 = vpop.f32.mrf.mxu0
  %v1283 = vadd.f32 %v163, %v1282
  %1284 = vmatprep.mubr.bf16.mxu0 0
  %1285 = vmatmul.mubr.bf16.gmra.mxu0 %v587
  %v1286 = vpop.f32.mrf.mxu0
  %v1287 = vadd.f32 %v159, %v1286
  %v1288 = vpop.f32.mrf.mxu0
  %v1289 = vadd.f32 %v163, %v1288
  %v1290 = vpop.f32.mrf.mxu0
  %v1291 = vadd.f32 %v159, %v1290
  %v1292 = vpop.f32.mrf.mxu0
  %v1293 = vadd.f32 %v163, %v1292
  %1294 = vmatprep.mubr.bf16.mxu0 0
  %1295 = vmatmul.mubr.bf16.gmra.mxu0 %v590
  %v1296 = vpop.f32.mrf.mxu0
  %v1297 = vadd.f32 %v159, %v1296
  %v1298 = vpop.f32.mrf.mxu0
  %v1299 = vadd.f32 %v163, %v1298
  %v1300 = vpop.f32.mrf.mxu0
  %v1301 = vadd.f32 %v159, %v1300
  %v1302 = vpop.f32.mrf.mxu0
  %v1303 = vadd.f32 %v163, %v1302
  %1304 = vmatprep.mubr.bf16.mxu0 0
  %1305 = vmatmul.mubr.bf16.gmra.mxu0 %v593
  %v1306 = vpop.f32.mrf.mxu0
  %v1307 = vadd.f32 %v159, %v1306
  %v1308 = vpop.f32.mrf.mxu0
  %v1309 = vadd.f32 %v163, %v1308
  %v1310 = vpop.f32.mrf.mxu0
  %v1311 = vadd.f32 %v159, %v1310
  %v1312 = vpop.f32.mrf.mxu0
  %v1313 = vadd.f32 %v163, %v1312
  %1314 = vmatprep.mubr.bf16.mxu0 0
  %1315 = vmatmul.mubr.bf16.gmra.mxu0 %v596
  %v1316 = vpop.f32.mrf.mxu0
  %v1317 = vadd.f32 %v159, %v1316
  %v1318 = vpop.f32.mrf.mxu0
  %v1319 = vadd.f32 %v163, %v1318
  %v1320 = vpop.f32.mrf.mxu0
  %v1321 = vadd.f32 %v159, %v1320
  %v1322 = vpop.f32.mrf.mxu0
  %v1323 = vadd.f32 %v163, %v1322
  %1324 = vmatprep.mubr.bf16.mxu0 0
  %1325 = vmatmul.mubr.bf16.gmra.mxu0 %v599
  %v1326 = vpop.f32.mrf.mxu0
  %v1327 = vadd.f32 %v159, %v1326
  %v1328 = vpop.f32.mrf.mxu0
  %v1329 = vadd.f32 %v163, %v1328
  %v1330 = vpop.f32.mrf.mxu0
  %v1331 = vadd.f32 %v159, %v1330
  %v1332 = vpop.f32.mrf.mxu0
  %v1333 = vadd.f32 %v163, %v1332
  %1334 = vmatprep.mubr.bf16.mxu0 0
  %1335 = vmatmul.mubr.bf16.gmra.mxu0 %v602
  %v1336 = vpop.f32.mrf.mxu0
  %v1337 = vadd.f32 %v159, %v1336
  %v1338 = vpop.f32.mrf.mxu0
  %v1339 = vadd.f32 %v163, %v1338
  %v1340 = vpop.f32.mrf.mxu0
  %v1341 = vadd.f32 %v159, %v1340
  %v1342 = vpop.f32.mrf.mxu0
  %v1343 = vadd.f32 %v163, %v1342
  %1344 = vmatprep.mubr.bf16.mxu0 0
  %1345 = vmatmul.mubr.bf16.gmra.mxu0 %v605
  %v1346 = vpop.f32.mrf.mxu0
  %v1347 = vadd.f32 %v159, %v1346
  %v1348 = vpop.f32.mrf.mxu0
  %v1349 = vadd.f32 %v163, %v1348
  %v1350 = vpop.f32.mrf.mxu0
  %v1351 = vadd.f32 %v159, %v1350
  %v1352 = vpop.f32.mrf.mxu0
  %v1353 = vadd.f32 %v163, %v1352
  %1354 = vmatprep.mubr.bf16.mxu0 0
  %1355 = vmatmul.mubr.bf16.gmra.mxu0 %v608
  %v1356 = vpop.f32.mrf.mxu0
  %v1357 = vadd.f32 %v159, %v1356
  %v1358 = vpop.f32.mrf.mxu0
  %v1359 = vadd.f32 %v163, %v1358
  %v1360 = vpop.f32.mrf.mxu0
  %v1361 = vadd.f32 %v159, %v1360
  %v1362 = vpop.f32.mrf.mxu0
  %v1363 = vadd.f32 %v163, %v1362
  %1364 = vmatprep.mubr.bf16.mxu0 0
  %1365 = vmatmul.mubr.bf16.gmra.mxu0 %v611
  %v1366 = vpop.f32.mrf.mxu0
  %v1367 = vadd.f32 %v159, %v1366
  %v1368 = vpop.f32.mrf.mxu0
  %v1369 = vadd.f32 %v163, %v1368
  %v1370 = vpop.f32.mrf.mxu0
  %v1371 = vadd.f32 %v159, %v1370
  %v1372 = vpop.f32.mrf.mxu0
  %v1373 = vadd.f32 %v163, %v1372
  %1374 = vmatprep.mubr.bf16.mxu0 0
  %1375 = vmatmul.mubr.bf16.gmra.mxu0 %v614
  %v1376 = vpop.f32.mrf.mxu0
  %v1377 = vadd.f32 %v159, %v1376
  %v1378 = vpop.f32.mrf.mxu0
  %v1379 = vadd.f32 %v163, %v1378
  %v1380 = vpop.f32.mrf.mxu0
  %v1381 = vadd.f32 %v159, %v1380
  %v1382 = vpop.f32.mrf.mxu0
  %v1383 = vadd.f32 %v163, %v1382
  %1384 = vmatprep.mubr.bf16.mxu0 0
  %1385 = vmatmul.mubr.bf16.gmra.mxu0 %v617
  %v1386 = vpop.f32.mrf.mxu0
  %v1387 = vadd.f32 %v159, %v1386
  %v1388 = vpop.f32.mrf.mxu0
  %v1389 = vadd.f32 %v163, %v1388
  %v1390 = vpop.f32.mrf.mxu0
  %v1391 = vadd.f32 %v159, %v1390
  %v1392 = vpop.f32.mrf.mxu0
  %v1393 = vadd.f32 %v163, %v1392
  %1394 = vmatprep.mubr.bf16.mxu0 0
  %1395 = vmatmul.mubr.bf16.gmra.mxu0 %v620
  %v1396 = vpop.f32.mrf.mxu0
  %v1397 = vadd.f32 %v159, %v1396
  %v1398 = vpop.f32.mrf.mxu0
  %v1399 = vadd.f32 %v163, %v1398
  %v1400 = vpop.f32.mrf.mxu0
  %v1401 = vadd.f32 %v159, %v1400
  %v1402 = vpop.f32.mrf.mxu0
  %v1403 = vadd.f32 %v163, %v1402
  %1404 = vmatprep.mubr.bf16.mxu0 0
  %1405 = vmatmul.mubr.bf16.gmra.mxu0 %v623
  %v1406 = vpop.f32.mrf.mxu0
  %v1407 = vadd.f32 %v159, %v1406
  %v1408 = vpop.f32.mrf.mxu0
  %v1409 = vadd.f32 %v163, %v1408
  %v1410 = vpop.f32.mrf.mxu0
  %v1411 = vadd.f32 %v159, %v1410
  %v1412 = vpop.f32.mrf.mxu0
  %v1413 = vadd.f32 %v163, %v1412
  %1414 = vmatprep.mubr.bf16.mxu0 0
  %1415 = vmatmul.mubr.bf16.gmra.mxu0 %v626
  %v1416 = vpop.f32.mrf.mxu0
  %v1417 = vadd.f32 %v159, %v1416
  %v1418 = vpop.f32.mrf.mxu0
  %v1419 = vadd.f32 %v163, %v1418
  %v1420 = vpop.f32.mrf.mxu0
  %v1421 = vadd.f32 %v159, %v1420
  %v1422 = vpop.f32.mrf.mxu0
  %v1423 = vadd.f32 %v163, %v1422
  %1424 = vmatprep.mubr.bf16.mxu0 0
  %1425 = vmatmul.mubr.bf16.gmra.mxu0 %v629
  %v1426 = vpop.f32.mrf.mxu0
  %v1427 = vadd.f32 %v159, %v1426
  %v1428 = vpop.f32.mrf.mxu0
  %v1429 = vadd.f32 %v163, %v1428
  %v1430 = vpop.f32.mrf.mxu0
  %v1431 = vadd.f32 %v159, %v1430
  %v1432 = vpop.f32.mrf.mxu0
  %v1433 = vadd.f32 %v163, %v1432
  %1434 = vmatprep.mubr.bf16.mxu0 0
  %1435 = vmatmul.mubr.bf16.gmra.mxu0 %v632
  %v1436 = vpop.f32.mrf.mxu0
  %v1437 = vadd.f32 %v159, %v1436
  %v1438 = vpop.f32.mrf.mxu0
  %v1439 = vadd.f32 %v163, %v1438
  %v1440 = vpop.f32.mrf.mxu0
  %v1441 = vadd.f32 %v159, %v1440
  %v1442 = vpop.f32.mrf.mxu0
  %v1443 = vadd.f32 %v163, %v1442
  %1444 = vmatprep.mubr.bf16.mxu0 0
  %1445 = vmatmul.mubr.bf16.gmra.mxu0 %v635
  %v1446 = vpop.f32.mrf.mxu0
  %v1447 = vadd.f32 %v159, %v1446
  %v1448 = vpop.f32.mrf.mxu0
  %v1449 = vadd.f32 %v163, %v1448
  %v1450 = vpop.f32.mrf.mxu0
  %v1451 = vadd.f32 %v159, %v1450
  %v1452 = vpop.f32.mrf.mxu0
  %v1453 = vadd.f32 %v163, %v1452
  %1454 = vmatprep.mubr.bf16.mxu0 0
  %1455 = vmatmul.mubr.bf16.gmra.mxu0 %v638
  %v1456 = vpop.f32.mrf.mxu0
  %v1457 = vadd.f32 %v159, %v1456
  %v1458 = vpop.f32.mrf.mxu0
  %v1459 = vadd.f32 %v163, %v1458
  %v1460 = vpop.f32.mrf.mxu0
  %v1461 = vadd.f32 %v159, %v1460
  %v1462 = vpop.f32.mrf.mxu0
  %v1463 = vadd.f32 %v163, %v1462
  %1464 = vmatprep.mubr.bf16.mxu0 0
  %1465 = vmatmul.mubr.bf16.gmra.mxu0 %v641
  %v1466 = vpop.f32.mrf.mxu0
  %v1467 = vadd.f32 %v159, %v1466
  %v1468 = vpop.f32.mrf.mxu0
  %v1469 = vadd.f32 %v163, %v1468
  %v1470 = vpop.f32.mrf.mxu0
  %v1471 = vadd.f32 %v159, %v1470
  %v1472 = vpop.f32.mrf.mxu0
  %v1473 = vadd.f32 %v163, %v1472
  %1474 = vmatprep.mubr.bf16.mxu0 0
  %1475 = vmatmul.mubr.bf16.gmra.mxu0 %v644
  %v1476 = vpop.f32.mrf.mxu0
  %v1477 = vadd.f32 %v159, %v1476
  %v1478 = vpop.f32.mrf.mxu0
  %v1479 = vadd.f32 %v163, %v1478
  %v1480 = vpop.f32.mrf.mxu0
  %v1481 = vadd.f32 %v159, %v1480
  %v1482 = vpop.f32.mrf.mxu0
  %v1483 = vadd.f32 %v163, %v1482
  %1484 = vmatprep.mubr.bf16.mxu0 0
  %1485 = vmatmul.mubr.bf16.gmra.mxu0 %v647
  %v1486 = vpop.f32.mrf.mxu0
  %v1487 = vadd.f32 %v159, %v1486
  %v1488 = vpop.f32.mrf.mxu0
  %v1489 = vadd.f32 %v163, %v1488
  %v1490 = vpop.f32.mrf.mxu0
  %v1491 = vadd.f32 %v159, %v1490
  %v1492 = vpop.f32.mrf.mxu0
  %v1493 = vadd.f32 %v163, %v1492
  %1494 = vmatprep.mubr.bf16.mxu0 0
  %1495 = vmatmul.mubr.bf16.gmra.mxu0 %v650
  %v1496 = vpop.f32.mrf.mxu0
  %v1497 = vadd.f32 %v159, %v1496
  %v1498 = vpop.f32.mrf.mxu0
  %v1499 = vadd.f32 %v163, %v1498
  %v1500 = vpop.f32.mrf.mxu0
  %v1501 = vadd.f32 %v159, %v1500
  %v1502 = vpop.f32.mrf.mxu0
  %v1503 = vadd.f32 %v163, %v1502
  %1504 = vmatprep.mubr.bf16.mxu0 0
  %1505 = vmatmul.mubr.bf16.gmra.mxu0 %v653
  %v1506 = vpop.f32.mrf.mxu0
  %v1507 = vadd.f32 %v159, %v1506
  %v1508 = vpop.f32.mrf.mxu0
  %v1509 = vadd.f32 %v163, %v1508
  %v1510 = vpop.f32.mrf.mxu0
  %v1511 = vadd.f32 %v159, %v1510
  %v1512 = vpop.f32.mrf.mxu0
  %v1513 = vadd.f32 %v163, %v1512
  %1514 = vmatprep.mubr.bf16.mxu0 0
  %1515 = vmatmul.mubr.bf16.gmra.mxu0 %v656
  %v1516 = vpop.f32.mrf.mxu0
  %v1517 = vadd.f32 %v159, %v1516
  %v1518 = vpop.f32.mrf.mxu0
  %v1519 = vadd.f32 %v163, %v1518
  %v1520 = vpop.f32.mrf.mxu0
  %v1521 = vadd.f32 %v159, %v1520
  %v1522 = vpop.f32.mrf.mxu0
  %v1523 = vadd.f32 %v163, %v1522
  %1524 = vmatprep.mubr.bf16.mxu0 0
  %1525 = vmatmul.mubr.bf16.gmra.mxu0 %v659
  %v1526 = vpop.f32.mrf.mxu0
  %v1527 = vadd.f32 %v159, %v1526
  %v1528 = vpop.f32.mrf.mxu0
  %v1529 = vadd.f32 %v163, %v1528
  %v1530 = vpop.f32.mrf.mxu0
  %v1531 = vadd.f32 %v159, %v1530
  %v1532 = vpop.f32.mrf.mxu0
  %v1533 = vadd.f32 %v163, %v1532
  %1534 = vmatprep.mubr.bf16.mxu0 0
  %1535 = vmatmul.mubr.bf16.gmra.mxu0 %v662
  %v1536 = vpop.f32.mrf.mxu0
  %v1537 = vpop.f32.mrf.mxu0
  %v1538 = vpop.f32.mrf.mxu0
  %v1539 = vpop.f32.mrf.mxu0
  %1540 = vdwg.mxu0
  %1541 = vmatprep.subr.bf16.mxu0 0
  %1542 = vmatpush1.bf16.msra.mxu0 0
  %1543 = vmatprep.subr.bf16.mxu0 0
  %1544 = vmatpush1.bf16.msra.mxu0 0
  %1545 = vmatprep.subr.bf16.mxu0 %v681
  %1546 = vmatpush1.bf16.msra.mxu0 %v678
  %1547 = vmatprep.subr.bf16.mxu0 %v506
  %1548 = vmatpush1.bf16.msra.mxu0 %v505
  %1549 = vmatprep.subr.bf16.mxu0 %v500
  %1550 = vmatpush1.bf16.msra.mxu0 %v499
  %1551 = vmatprep.subr.bf16.mxu0 %v494
  %1552 = vmatpush1.bf16.msra.mxu0 %v493
  %1553 = vmatprep.subr.bf16.mxu0 %v488
  %1554 = vmatpush1.bf16.msra.mxu0 %v487
  %1555 = vmatprep.subr.bf16.mxu0 %v482
  %1556 = vmatpush1.bf16.msra.mxu0 %v481
  %1557 = vmatprep.subr.bf16.mxu0 0
  %1558 = vmatpush2.bf16.msra.mxu0 0
  %1559 = vmatprep.subr.bf16.mxu0 0
  %1560 = vmatpush2.bf16.msra.mxu0 0
  %1561 = vmatprep.subr.bf16.mxu0 0
  %1562 = vmatpush2.bf16.msra.mxu0 0
  %1563 = vmatprep.subr.bf16.mxu0 0
  %1564 = vmatpush2.bf16.msra.mxu0 0
  %1565 = vmatprep.subr.bf16.mxu0 0
  %1566 = vmatpush2.bf16.msra.mxu0 0
  %1567 = vmatprep.subr.bf16.mxu0 0
  %1568 = vmatpush2.bf16.msra.mxu0 0
  %1569 = vmatprep.subr.bf16.mxu0 0
  %1570 = vmatpush2.bf16.msra.mxu0 0
  %1571 = vmatprep.subr.bf16.mxu0 0
  %1572 = vmatpush2.bf16.msra.mxu0 0
  %1573 = vmatprep.mubr.bf16.mxu0 0
  %1574 = vmatmul.mubr.bf16.gmra.mxu0 %v545
  %v1575 = vpop.f32.mrf.mxu0
  %v1576 = vadd.f32 %v167, %v1575
  %v1577 = vpop.f32.mrf.mxu0
  %v1578 = vadd.f32 %v171, %v1577
  %v1579 = vpop.f32.mrf.mxu0
  %v1580 = vadd.f32 %v167, %v1579
  %v1581 = vpop.f32.mrf.mxu0
  %v1582 = vadd.f32 %v171, %v1581
  %1583 = vmatprep.mubr.bf16.mxu0 0
  %1584 = vmatmul.mubr.bf16.gmra.mxu0 %v548
  %v1585 = vpop.f32.mrf.mxu0
  %v1586 = vadd.f32 %v167, %v1585
  %v1587 = vpop.f32.mrf.mxu0
  %v1588 = vadd.f32 %v171, %v1587
  %v1589 = vpop.f32.mrf.mxu0
  %v1590 = vadd.f32 %v167, %v1589
  %v1591 = vpop.f32.mrf.mxu0
  %v1592 = vadd.f32 %v171, %v1591
  %1593 = vmatprep.mubr.bf16.mxu0 0
  %1594 = vmatmul.mubr.bf16.gmra.mxu0 %v551
  %v1595 = vpop.f32.mrf.mxu0
  %v1596 = vadd.f32 %v167, %v1595
  %v1597 = vpop.f32.mrf.mxu0
  %v1598 = vadd.f32 %v171, %v1597
  %v1599 = vpop.f32.mrf.mxu0
  %v1600 = vadd.f32 %v167, %v1599
  %v1601 = vpop.f32.mrf.mxu0
  %v1602 = vadd.f32 %v171, %v1601
  %1603 = vmatprep.mubr.bf16.mxu0 0
  %1604 = vmatmul.mubr.bf16.gmra.mxu0 %v554
  %v1605 = vpop.f32.mrf.mxu0
  %v1606 = vadd.f32 %v167, %v1605
  %v1607 = vpop.f32.mrf.mxu0
  %v1608 = vadd.f32 %v171, %v1607
  %v1609 = vpop.f32.mrf.mxu0
  %v1610 = vadd.f32 %v167, %v1609
  %v1611 = vpop.f32.mrf.mxu0
  %v1612 = vadd.f32 %v171, %v1611
  %1613 = vmatprep.mubr.bf16.mxu0 0
  %1614 = vmatmul.mubr.bf16.gmra.mxu0 %v557
  %v1615 = vpop.f32.mrf.mxu0
  %v1616 = vadd.f32 %v167, %v1615
  %v1617 = vpop.f32.mrf.mxu0
  %v1618 = vadd.f32 %v171, %v1617
  %v1619 = vpop.f32.mrf.mxu0
  %v1620 = vadd.f32 %v167, %v1619
  %v1621 = vpop.f32.mrf.mxu0
  %v1622 = vadd.f32 %v171, %v1621
  %1623 = vmatprep.mubr.bf16.mxu0 0
  %1624 = vmatmul.mubr.bf16.gmra.mxu0 %v560
  %v1625 = vpop.f32.mrf.mxu0
  %v1626 = vadd.f32 %v167, %v1625
  %v1627 = vpop.f32.mrf.mxu0
  %v1628 = vadd.f32 %v171, %v1627
  %v1629 = vpop.f32.mrf.mxu0
  %v1630 = vadd.f32 %v167, %v1629
  %v1631 = vpop.f32.mrf.mxu0
  %v1632 = vadd.f32 %v171, %v1631
  %1633 = vmatprep.mubr.bf16.mxu0 0
  %1634 = vmatmul.mubr.bf16.gmra.mxu0 %v563
  %v1635 = vpop.f32.mrf.mxu0
  %v1636 = vadd.f32 %v167, %v1635
  %v1637 = vpop.f32.mrf.mxu0
  %v1638 = vadd.f32 %v171, %v1637
  %v1639 = vpop.f32.mrf.mxu0
  %v1640 = vadd.f32 %v167, %v1639
  %v1641 = vpop.f32.mrf.mxu0
  %v1642 = vadd.f32 %v171, %v1641
  %1643 = vmatprep.mubr.bf16.mxu0 0
  %1644 = vmatmul.mubr.bf16.gmra.mxu0 %v566
  %v1645 = vpop.f32.mrf.mxu0
  %v1646 = vadd.f32 %v167, %v1645
  %v1647 = vpop.f32.mrf.mxu0
  %v1648 = vadd.f32 %v171, %v1647
  %v1649 = vpop.f32.mrf.mxu0
  %v1650 = vadd.f32 %v167, %v1649
  %v1651 = vpop.f32.mrf.mxu0
  %v1652 = vadd.f32 %v171, %v1651
  %1653 = vmatprep.mubr.bf16.mxu0 0
  %1654 = vmatmul.mubr.bf16.gmra.mxu0 %v569
  %v1655 = vpop.f32.mrf.mxu0
  %v1656 = vadd.f32 %v167, %v1655
  %v1657 = vpop.f32.mrf.mxu0
  %v1658 = vadd.f32 %v171, %v1657
  %v1659 = vpop.f32.mrf.mxu0
  %v1660 = vadd.f32 %v167, %v1659
  %v1661 = vpop.f32.mrf.mxu0
  %v1662 = vadd.f32 %v171, %v1661
  %1663 = vmatprep.mubr.bf16.mxu0 0
  %1664 = vmatmul.mubr.bf16.gmra.mxu0 %v572
  %v1665 = vpop.f32.mrf.mxu0
  %v1666 = vadd.f32 %v167, %v1665
  %v1667 = vpop.f32.mrf.mxu0
  %v1668 = vadd.f32 %v171, %v1667
  %v1669 = vpop.f32.mrf.mxu0
  %v1670 = vadd.f32 %v167, %v1669
  %v1671 = vpop.f32.mrf.mxu0
  %v1672 = vadd.f32 %v171, %v1671
  %1673 = vmatprep.mubr.bf16.mxu0 0
  %1674 = vmatmul.mubr.bf16.gmra.mxu0 %v575
  %v1675 = vpop.f32.mrf.mxu0
  %v1676 = vadd.f32 %v167, %v1675
  %v1677 = vpop.f32.mrf.mxu0
  %v1678 = vadd.f32 %v171, %v1677
  %v1679 = vpop.f32.mrf.mxu0
  %v1680 = vadd.f32 %v167, %v1679
  %v1681 = vpop.f32.mrf.mxu0
  %v1682 = vadd.f32 %v171, %v1681
  %1683 = vmatprep.mubr.bf16.mxu0 0
  %1684 = vmatmul.mubr.bf16.gmra.mxu0 %v578
  %v1685 = vpop.f32.mrf.mxu0
  %v1686 = vadd.f32 %v167, %v1685
  %v1687 = vpop.f32.mrf.mxu0
  %v1688 = vadd.f32 %v171, %v1687
  %v1689 = vpop.f32.mrf.mxu0
  %v1690 = vadd.f32 %v167, %v1689
  %v1691 = vpop.f32.mrf.mxu0
  %v1692 = vadd.f32 %v171, %v1691
  %1693 = vmatprep.mubr.bf16.mxu0 0
  %1694 = vmatmul.mubr.bf16.gmra.mxu0 %v581
  %v1695 = vpop.f32.mrf.mxu0
  %v1696 = vadd.f32 %v167, %v1695
  %v1697 = vpop.f32.mrf.mxu0
  %v1698 = vadd.f32 %v171, %v1697
  %v1699 = vpop.f32.mrf.mxu0
  %v1700 = vadd.f32 %v167, %v1699
  %v1701 = vpop.f32.mrf.mxu0
  %v1702 = vadd.f32 %v171, %v1701
  %1703 = vmatprep.mubr.bf16.mxu0 0
  %1704 = vmatmul.mubr.bf16.gmra.mxu0 %v584
  %v1705 = vpop.f32.mrf.mxu0
  %v1706 = vadd.f32 %v167, %v1705
  %v1707 = vpop.f32.mrf.mxu0
  %v1708 = vadd.f32 %v171, %v1707
  %v1709 = vpop.f32.mrf.mxu0
  %v1710 = vadd.f32 %v167, %v1709
  %v1711 = vpop.f32.mrf.mxu0
  %v1712 = vadd.f32 %v171, %v1711
  %1713 = vmatprep.mubr.bf16.mxu0 0
  %1714 = vmatmul.mubr.bf16.gmra.mxu0 %v587
  %v1715 = vpop.f32.mrf.mxu0
  %v1716 = vadd.f32 %v167, %v1715
  %v1717 = vpop.f32.mrf.mxu0
  %v1718 = vadd.f32 %v171, %v1717
  %v1719 = vpop.f32.mrf.mxu0
  %v1720 = vadd.f32 %v167, %v1719
  %v1721 = vpop.f32.mrf.mxu0
  %v1722 = vadd.f32 %v171, %v1721
  %1723 = vmatprep.mubr.bf16.mxu0 0
  %1724 = vmatmul.mubr.bf16.gmra.mxu0 %v590
  %v1725 = vpop.f32.mrf.mxu0
  %v1726 = vadd.f32 %v167, %v1725
  %v1727 = vpop.f32.mrf.mxu0
  %v1728 = vadd.f32 %v171, %v1727
  %v1729 = vpop.f32.mrf.mxu0
  %v1730 = vadd.f32 %v167, %v1729
  %v1731 = vpop.f32.mrf.mxu0
  %v1732 = vadd.f32 %v171, %v1731
  %1733 = vmatprep.mubr.bf16.mxu0 0
  %1734 = vmatmul.mubr.bf16.gmra.mxu0 %v593
  %v1735 = vpop.f32.mrf.mxu0
  %v1736 = vadd.f32 %v167, %v1735
  %v1737 = vpop.f32.mrf.mxu0
  %v1738 = vadd.f32 %v171, %v1737
  %v1739 = vpop.f32.mrf.mxu0
  %v1740 = vadd.f32 %v167, %v1739
  %v1741 = vpop.f32.mrf.mxu0
  %v1742 = vadd.f32 %v171, %v1741
  %1743 = vmatprep.mubr.bf16.mxu0 0
  %1744 = vmatmul.mubr.bf16.gmra.mxu0 %v596
  %v1745 = vpop.f32.mrf.mxu0
  %v1746 = vadd.f32 %v167, %v1745
  %v1747 = vpop.f32.mrf.mxu0
  %v1748 = vadd.f32 %v171, %v1747
  %v1749 = vpop.f32.mrf.mxu0
  %v1750 = vadd.f32 %v167, %v1749
  %v1751 = vpop.f32.mrf.mxu0
  %v1752 = vadd.f32 %v171, %v1751
  %1753 = vmatprep.mubr.bf16.mxu0 0
  %1754 = vmatmul.mubr.bf16.gmra.mxu0 %v599
  %v1755 = vpop.f32.mrf.mxu0
  %v1756 = vadd.f32 %v167, %v1755
  %v1757 = vpop.f32.mrf.mxu0
  %v1758 = vadd.f32 %v171, %v1757
  %v1759 = vpop.f32.mrf.mxu0
  %v1760 = vadd.f32 %v167, %v1759
  %v1761 = vpop.f32.mrf.mxu0
  %v1762 = vadd.f32 %v171, %v1761
  %1763 = vmatprep.mubr.bf16.mxu0 0
  %1764 = vmatmul.mubr.bf16.gmra.mxu0 %v602
  %v1765 = vpop.f32.mrf.mxu0
  %v1766 = vadd.f32 %v167, %v1765
  %v1767 = vpop.f32.mrf.mxu0
  %v1768 = vadd.f32 %v171, %v1767
  %v1769 = vpop.f32.mrf.mxu0
  %v1770 = vadd.f32 %v167, %v1769
  %v1771 = vpop.f32.mrf.mxu0
  %v1772 = vadd.f32 %v171, %v1771
  %1773 = vmatprep.mubr.bf16.mxu0 0
  %1774 = vmatmul.mubr.bf16.gmra.mxu0 %v605
  %v1775 = vpop.f32.mrf.mxu0
  %v1776 = vadd.f32 %v167, %v1775
  %v1777 = vpop.f32.mrf.mxu0
  %v1778 = vadd.f32 %v171, %v1777
  %v1779 = vpop.f32.mrf.mxu0
  %v1780 = vadd.f32 %v167, %v1779
  %v1781 = vpop.f32.mrf.mxu0
  %v1782 = vadd.f32 %v171, %v1781
  %1783 = vmatprep.mubr.bf16.mxu0 0
  %1784 = vmatmul.mubr.bf16.gmra.mxu0 %v608
  %v1785 = vpop.f32.mrf.mxu0
  %v1786 = vadd.f32 %v167, %v1785
  %v1787 = vpop.f32.mrf.mxu0
  %v1788 = vadd.f32 %v171, %v1787
  %v1789 = vpop.f32.mrf.mxu0
  %v1790 = vadd.f32 %v167, %v1789
  %v1791 = vpop.f32.mrf.mxu0
  %v1792 = vadd.f32 %v171, %v1791
  %1793 = vmatprep.mubr.bf16.mxu0 0
  %1794 = vmatmul.mubr.bf16.gmra.mxu0 %v611
  %v1795 = vpop.f32.mrf.mxu0
  %v1796 = vadd.f32 %v167, %v1795
  %v1797 = vpop.f32.mrf.mxu0
  %v1798 = vadd.f32 %v171, %v1797
  %v1799 = vpop.f32.mrf.mxu0
  %v1800 = vadd.f32 %v167, %v1799
  %v1801 = vpop.f32.mrf.mxu0
  %v1802 = vadd.f32 %v171, %v1801
  %1803 = vmatprep.mubr.bf16.mxu0 0
  %1804 = vmatmul.mubr.bf16.gmra.mxu0 %v614
  %v1805 = vpop.f32.mrf.mxu0
  %v1806 = vadd.f32 %v167, %v1805
  %v1807 = vpop.f32.mrf.mxu0
  %v1808 = vadd.f32 %v171, %v1807
  %v1809 = vpop.f32.mrf.mxu0
  %v1810 = vadd.f32 %v167, %v1809
  %v1811 = vpop.f32.mrf.mxu0
  %v1812 = vadd.f32 %v171, %v1811
  %1813 = vmatprep.mubr.bf16.mxu0 0
  %1814 = vmatmul.mubr.bf16.gmra.mxu0 %v617
  %v1815 = vpop.f32.mrf.mxu0
  %v1816 = vadd.f32 %v167, %v1815
  %v1817 = vpop.f32.mrf.mxu0
  %v1818 = vadd.f32 %v171, %v1817
  %v1819 = vpop.f32.mrf.mxu0
  %v1820 = vadd.f32 %v167, %v1819
  %v1821 = vpop.f32.mrf.mxu0
  %v1822 = vadd.f32 %v171, %v1821
  %1823 = vmatprep.mubr.bf16.mxu0 0
  %1824 = vmatmul.mubr.bf16.gmra.mxu0 %v620
  %v1825 = vpop.f32.mrf.mxu0
  %v1826 = vadd.f32 %v167, %v1825
  %v1827 = vpop.f32.mrf.mxu0
  %v1828 = vadd.f32 %v171, %v1827
  %v1829 = vpop.f32.mrf.mxu0
  %v1830 = vadd.f32 %v167, %v1829
  %v1831 = vpop.f32.mrf.mxu0
  %v1832 = vadd.f32 %v171, %v1831
  %1833 = vmatprep.mubr.bf16.mxu0 0
  %1834 = vmatmul.mubr.bf16.gmra.mxu0 %v623
  %v1835 = vpop.f32.mrf.mxu0
  %v1836 = vadd.f32 %v167, %v1835
  %v1837 = vpop.f32.mrf.mxu0
  %v1838 = vadd.f32 %v171, %v1837
  %v1839 = vpop.f32.mrf.mxu0
  %v1840 = vadd.f32 %v167, %v1839
  %v1841 = vpop.f32.mrf.mxu0
  %v1842 = vadd.f32 %v171, %v1841
  %1843 = vmatprep.mubr.bf16.mxu0 0
  %1844 = vmatmul.mubr.bf16.gmra.mxu0 %v626
  %v1845 = vpop.f32.mrf.mxu0
  %v1846 = vadd.f32 %v167, %v1845
  %v1847 = vpop.f32.mrf.mxu0
  %v1848 = vadd.f32 %v171, %v1847
  %v1849 = vpop.f32.mrf.mxu0
  %v1850 = vadd.f32 %v167, %v1849
  %v1851 = vpop.f32.mrf.mxu0
  %v1852 = vadd.f32 %v171, %v1851
  %1853 = vmatprep.mubr.bf16.mxu0 0
  %1854 = vmatmul.mubr.bf16.gmra.mxu0 %v629
  %v1855 = vpop.f32.mrf.mxu0
  %v1856 = vadd.f32 %v167, %v1855
  %v1857 = vpop.f32.mrf.mxu0
  %v1858 = vadd.f32 %v171, %v1857
  %v1859 = vpop.f32.mrf.mxu0
  %v1860 = vadd.f32 %v167, %v1859
  %v1861 = vpop.f32.mrf.mxu0
  %v1862 = vadd.f32 %v171, %v1861
  %1863 = vmatprep.mubr.bf16.mxu0 0
  %1864 = vmatmul.mubr.bf16.gmra.mxu0 %v632
  %v1865 = vpop.f32.mrf.mxu0
  %v1866 = vadd.f32 %v167, %v1865
  %v1867 = vpop.f32.mrf.mxu0
  %v1868 = vadd.f32 %v171, %v1867
  %v1869 = vpop.f32.mrf.mxu0
  %v1870 = vadd.f32 %v167, %v1869
  %v1871 = vpop.f32.mrf.mxu0
  %v1872 = vadd.f32 %v171, %v1871
  %1873 = vmatprep.mubr.bf16.mxu0 0
  %1874 = vmatmul.mubr.bf16.gmra.mxu0 %v635
  %v1875 = vpop.f32.mrf.mxu0
  %v1876 = vadd.f32 %v167, %v1875
  %v1877 = vpop.f32.mrf.mxu0
  %v1878 = vadd.f32 %v171, %v1877
  %v1879 = vpop.f32.mrf.mxu0
  %v1880 = vadd.f32 %v167, %v1879
  %v1881 = vpop.f32.mrf.mxu0
  %v1882 = vadd.f32 %v171, %v1881
  %1883 = vmatprep.mubr.bf16.mxu0 0
  %1884 = vmatmul.mubr.bf16.gmra.mxu0 %v638
  %v1885 = vpop.f32.mrf.mxu0
  %v1886 = vadd.f32 %v167, %v1885
  %v1887 = vpop.f32.mrf.mxu0
  %v1888 = vadd.f32 %v171, %v1887
  %v1889 = vpop.f32.mrf.mxu0
  %v1890 = vadd.f32 %v167, %v1889
  %v1891 = vpop.f32.mrf.mxu0
  %v1892 = vadd.f32 %v171, %v1891
  %1893 = vmatprep.mubr.bf16.mxu0 0
  %1894 = vmatmul.mubr.bf16.gmra.mxu0 %v641
  %v1895 = vpop.f32.mrf.mxu0
  %v1896 = vadd.f32 %v167, %v1895
  %v1897 = vpop.f32.mrf.mxu0
  %v1898 = vadd.f32 %v171, %v1897
  %v1899 = vpop.f32.mrf.mxu0
  %v1900 = vadd.f32 %v167, %v1899
  %v1901 = vpop.f32.mrf.mxu0
  %v1902 = vadd.f32 %v171, %v1901
  %1903 = vmatprep.mubr.bf16.mxu0 0
  %1904 = vmatmul.mubr.bf16.gmra.mxu0 %v644
  %v1905 = vpop.f32.mrf.mxu0
  %v1906 = vadd.f32 %v167, %v1905
  %v1907 = vpop.f32.mrf.mxu0
  %v1908 = vadd.f32 %v171, %v1907
  %v1909 = vpop.f32.mrf.mxu0
  %v1910 = vadd.f32 %v167, %v1909
  %v1911 = vpop.f32.mrf.mxu0
  %v1912 = vadd.f32 %v171, %v1911
  %1913 = vmatprep.mubr.bf16.mxu0 0
  %1914 = vmatmul.mubr.bf16.gmra.mxu0 %v647
  %v1915 = vpop.f32.mrf.mxu0
  %v1916 = vadd.f32 %v167, %v1915
  %v1917 = vpop.f32.mrf.mxu0
  %v1918 = vadd.f32 %v171, %v1917
  %v1919 = vpop.f32.mrf.mxu0
  %v1920 = vadd.f32 %v167, %v1919
  %v1921 = vpop.f32.mrf.mxu0
  %v1922 = vadd.f32 %v171, %v1921
  %1923 = vmatprep.mubr.bf16.mxu0 0
  %1924 = vmatmul.mubr.bf16.gmra.mxu0 %v650
  %v1925 = vpop.f32.mrf.mxu0
  %v1926 = vadd.f32 %v167, %v1925
  %v1927 = vpop.f32.mrf.mxu0
  %v1928 = vadd.f32 %v171, %v1927
  %v1929 = vpop.f32.mrf.mxu0
  %v1930 = vadd.f32 %v167, %v1929
  %v1931 = vpop.f32.mrf.mxu0
  %v1932 = vadd.f32 %v171, %v1931
  %1933 = vmatprep.mubr.bf16.mxu0 0
  %1934 = vmatmul.mubr.bf16.gmra.mxu0 %v653
  %v1935 = vpop.f32.mrf.mxu0
  %v1936 = vadd.f32 %v167, %v1935
  %v1937 = vpop.f32.mrf.mxu0
  %v1938 = vadd.f32 %v171, %v1937
  %v1939 = vpop.f32.mrf.mxu0
  %v1940 = vadd.f32 %v167, %v1939
  %v1941 = vpop.f32.mrf.mxu0
  %v1942 = vadd.f32 %v171, %v1941
  %1943 = vmatprep.mubr.bf16.mxu0 0
  %1944 = vmatmul.mubr.bf16.gmra.mxu0 %v656
  %v1945 = vpop.f32.mrf.mxu0
  %v1946 = vadd.f32 %v167, %v1945
  %v1947 = vpop.f32.mrf.mxu0
  %v1948 = vadd.f32 %v171, %v1947
  %v1949 = vpop.f32.mrf.mxu0
  %v1950 = vadd.f32 %v167, %v1949
  %v1951 = vpop.f32.mrf.mxu0
  %v1952 = vadd.f32 %v171, %v1951
  %1953 = vmatprep.mubr.bf16.mxu0 0
  %1954 = vmatmul.mubr.bf16.gmra.mxu0 %v659
  %v1955 = vpop.f32.mrf.mxu0
  %v1956 = vadd.f32 %v167, %v1955
  %v1957 = vpop.f32.mrf.mxu0
  %v1958 = vadd.f32 %v171, %v1957
  %v1959 = vpop.f32.mrf.mxu0
  %v1960 = vadd.f32 %v167, %v1959
  %v1961 = vpop.f32.mrf.mxu0
  %v1962 = vadd.f32 %v171, %v1961
  %1963 = vmatprep.mubr.bf16.mxu0 0
  %1964 = vmatmul.mubr.bf16.gmra.mxu0 %v662
  %v1965 = vpop.f32.mrf.mxu0
  %v1966 = vpop.f32.mrf.mxu0
  %v1967 = vpop.f32.mrf.mxu0
  %v1968 = vpop.f32.mrf.mxu0
  %1969 = vdwg.mxu0
  %v1970 = vmax.f32 %v718, 0.0
  %v1971 = vmax.f32 %v720, 0.0
  %v1972 = vmax.f32 %v1147, 0.0
  %v1973 = vmax.f32 %v1149, 0.0
  %v1974 = vmax.f32 %v1576, 0.0
  %v1975 = vmax.f32 %v1578, 0.0
  %v1976 = vmax.f32 %v722, 0.0
  %v1977 = vmax.f32 %v724, 0.0
  %v1978 = vmax.f32 %v1151, 0.0
  %v1979 = vmax.f32 %v1153, 0.0
  %v1980 = vmax.f32 %v1580, 0.0
  %v1981 = vmax.f32 %v1582, 0.0
  %v1982 = vmax.f32 %v728, 0.0
  %v1983 = vmax.f32 %v730, 0.0
  %v1984 = vmax.f32 %v1157, 0.0
  %v1985 = vmax.f32 %v1159, 0.0
  %v1986 = vmax.f32 %v1586, 0.0
  %v1987 = vmax.f32 %v1588, 0.0
  %v1988 = vmax.f32 %v732, 0.0
  %v1989 = vmax.f32 %v734, 0.0
  %v1990 = vmax.f32 %v1161, 0.0
  %v1991 = vmax.f32 %v1163, 0.0
  %v1992 = vmax.f32 %v1590, 0.0
  %v1993 = vmax.f32 %v1592, 0.0
  %v1994 = vmax.f32 %v738, 0.0
  %v1995 = vmax.f32 %v740, 0.0
  %v1996 = vmax.f32 %v1167, 0.0
  %v1997 = vmax.f32 %v1169, 0.0
  %v1998 = vmax.f32 %v1596, 0.0
  %v1999 = vmax.f32 %v1598, 0.0
  %v2000 = vmax.f32 %v742, 0.0
  %v2001 = vmax.f32 %v744, 0.0
  %v2002 = vmax.f32 %v1171, 0.0
  %v2003 = vmax.f32 %v1173, 0.0
  %v2004 = vmax.f32 %v1600, 0.0
  %v2005 = vmax.f32 %v1602, 0.0
  %v2006 = vmax.f32 %v748, 0.0
  %v2007 = vmax.f32 %v750, 0.0
  %v2008 = vmax.f32 %v1177, 0.0
  %v2009 = vmax.f32 %v1179, 0.0
  %v2010 = vmax.f32 %v1606, 0.0
  %v2011 = vmax.f32 %v1608, 0.0
  %v2012 = vmax.f32 %v752, 0.0
  %v2013 = vmax.f32 %v754, 0.0
  %v2014 = vmax.f32 %v1181, 0.0
  %v2015 = vmax.f32 %v1183, 0.0
  %v2016 = vmax.f32 %v1610, 0.0
  %v2017 = vmax.f32 %v1612, 0.0
  %v2018 = vmax.f32 %v758, 0.0
  %v2019 = vmax.f32 %v760, 0.0
  %v2020 = vmax.f32 %v1187, 0.0
  %v2021 = vmax.f32 %v1189, 0.0
  %v2022 = vmax.f32 %v1616, 0.0
  %v2023 = vmax.f32 %v1618, 0.0
  %v2024 = vmax.f32 %v762, 0.0
  %v2025 = vmax.f32 %v764, 0.0
  %v2026 = vmax.f32 %v1191, 0.0
  %v2027 = vmax.f32 %v1193, 0.0
  %v2028 = vmax.f32 %v1620, 0.0
  %v2029 = vmax.f32 %v1622, 0.0
  %v2030 = vmax.f32 %v768, 0.0
  %v2031 = vmax.f32 %v770, 0.0
  %v2032 = vmax.f32 %v1197, 0.0
  %v2033 = vmax.f32 %v1199, 0.0
  %v2034 = vmax.f32 %v1626, 0.0
  %v2035 = vmax.f32 %v1628, 0.0
  %v2036 = vmax.f32 %v772, 0.0
  %v2037 = vmax.f32 %v774, 0.0
  %v2038 = vmax.f32 %v1201, 0.0
  %v2039 = vmax.f32 %v1203, 0.0
  %v2040 = vmax.f32 %v1630, 0.0
  %v2041 = vmax.f32 %v1632, 0.0
  %v2042 = vmax.f32 %v778, 0.0
  %v2043 = vmax.f32 %v780, 0.0
  %v2044 = vmax.f32 %v1207, 0.0
  %v2045 = vmax.f32 %v1209, 0.0
  %v2046 = vmax.f32 %v1636, 0.0
  %v2047 = vmax.f32 %v1638, 0.0
  %v2048 = vmax.f32 %v782, 0.0
  %v2049 = vmax.f32 %v784, 0.0
  %v2050 = vmax.f32 %v1211, 0.0
  %v2051 = vmax.f32 %v1213, 0.0
  %v2052 = vmax.f32 %v1640, 0.0
  %v2053 = vmax.f32 %v1642, 0.0
  %v2054 = vmax.f32 %v788, 0.0
  %v2055 = vmax.f32 %v790, 0.0
  %v2056 = vmax.f32 %v1217, 0.0
  %v2057 = vmax.f32 %v1219, 0.0
  %v2058 = vmax.f32 %v1646, 0.0
  %v2059 = vmax.f32 %v1648, 0.0
  %v2060 = vmax.f32 %v792, 0.0
  %v2061 = vmax.f32 %v794, 0.0
  %v2062 = vmax.f32 %v1221, 0.0
  %v2063 = vmax.f32 %v1223, 0.0
  %v2064 = vmax.f32 %v1650, 0.0
  %v2065 = vmax.f32 %v1652, 0.0
  %v2066 = vmax.f32 %v798, 0.0
  %v2067 = vmax.f32 %v800, 0.0
  %v2068 = vmax.f32 %v1227, 0.0
  %v2069 = vmax.f32 %v1229, 0.0
  %v2070 = vmax.f32 %v1656, 0.0
  %v2071 = vmax.f32 %v1658, 0.0
  %v2072 = vmax.f32 %v802, 0.0
  %v2073 = vmax.f32 %v804, 0.0
  %v2074 = vmax.f32 %v1231, 0.0
  %v2075 = vmax.f32 %v1233, 0.0
  %v2076 = vmax.f32 %v1660, 0.0
  %v2077 = vmax.f32 %v1662, 0.0
  %v2078 = vmax.f32 %v808, 0.0
  %v2079 = vmax.f32 %v810, 0.0
  %v2080 = vmax.f32 %v1237, 0.0
  %v2081 = vmax.f32 %v1239, 0.0
  %v2082 = vmax.f32 %v1666, 0.0
  %v2083 = vmax.f32 %v1668, 0.0
  %v2084 = vmax.f32 %v812, 0.0
  %v2085 = vmax.f32 %v814, 0.0
  %v2086 = vmax.f32 %v1241, 0.0
  %v2087 = vmax.f32 %v1243, 0.0
  %v2088 = vmax.f32 %v1670, 0.0
  %v2089 = vmax.f32 %v1672, 0.0
  %v2090 = vmax.f32 %v818, 0.0
  %v2091 = vmax.f32 %v820, 0.0
  %v2092 = vmax.f32 %v1247, 0.0
  %v2093 = vmax.f32 %v1249, 0.0
  %v2094 = vmax.f32 %v1676, 0.0
  %v2095 = vmax.f32 %v1678, 0.0
  %v2096 = vmax.f32 %v822, 0.0
  %v2097 = vmax.f32 %v824, 0.0
  %v2098 = vmax.f32 %v1251, 0.0
  %v2099 = vmax.f32 %v1253, 0.0
  %v2100 = vmax.f32 %v1680, 0.0
  %v2101 = vmax.f32 %v1682, 0.0
  %v2102 = vmax.f32 %v828, 0.0
  %v2103 = vmax.f32 %v830, 0.0
  %v2104 = vmax.f32 %v1257, 0.0
  %v2105 = vmax.f32 %v1259, 0.0
  %v2106 = vmax.f32 %v1686, 0.0
  %v2107 = vmax.f32 %v1688, 0.0
  %v2108 = vmax.f32 %v832, 0.0
  %v2109 = vmax.f32 %v834, 0.0
  %v2110 = vmax.f32 %v1261, 0.0
  %v2111 = vmax.f32 %v1263, 0.0
  %v2112 = vmax.f32 %v1690, 0.0
  %v2113 = vmax.f32 %v1692, 0.0
  %v2114 = vmax.f32 %v838, 0.0
  %v2115 = vmax.f32 %v840, 0.0
  %v2116 = vmax.f32 %v1267, 0.0
  %v2117 = vmax.f32 %v1269, 0.0
  %v2118 = vmax.f32 %v1696, 0.0
  %v2119 = vmax.f32 %v1698, 0.0
  %v2120 = vmax.f32 %v842, 0.0
  %v2121 = vmax.f32 %v844, 0.0
  %v2122 = vmax.f32 %v1271, 0.0
  %v2123 = vmax.f32 %v1273, 0.0
  %v2124 = vmax.f32 %v1700, 0.0
  %v2125 = vmax.f32 %v1702, 0.0
  %v2126 = vmax.f32 %v848, 0.0
  %v2127 = vmax.f32 %v850, 0.0
  %v2128 = vmax.f32 %v1277, 0.0
  %v2129 = vmax.f32 %v1279, 0.0
  %v2130 = vmax.f32 %v1706, 0.0
  %v2131 = vmax.f32 %v1708, 0.0
  %v2132 = vmax.f32 %v852, 0.0
  %v2133 = vmax.f32 %v854, 0.0
  %v2134 = vmax.f32 %v1281, 0.0
  %v2135 = vmax.f32 %v1283, 0.0
  %v2136 = vmax.f32 %v1710, 0.0
  %v2137 = vmax.f32 %v1712, 0.0
  %v2138 = vmax.f32 %v858, 0.0
  %v2139 = vmax.f32 %v860, 0.0
  %v2140 = vmax.f32 %v1287, 0.0
  %v2141 = vmax.f32 %v1289, 0.0
  %v2142 = vmax.f32 %v1716, 0.0
  %v2143 = vmax.f32 %v1718, 0.0
  %v2144 = vmax.f32 %v862, 0.0
  %v2145 = vmax.f32 %v864, 0.0
  %v2146 = vmax.f32 %v1291, 0.0
  %v2147 = vmax.f32 %v1293, 0.0
  %v2148 = vmax.f32 %v1720, 0.0
  %v2149 = vmax.f32 %v1722, 0.0
  %v2150 = vmax.f32 %v868, 0.0
  %v2151 = vmax.f32 %v870, 0.0
  %v2152 = vmax.f32 %v1297, 0.0
  %v2153 = vmax.f32 %v1299, 0.0
  %v2154 = vmax.f32 %v1726, 0.0
  %v2155 = vmax.f32 %v1728, 0.0
  %v2156 = vmax.f32 %v872, 0.0
  %v2157 = vmax.f32 %v874, 0.0
  %v2158 = vmax.f32 %v1301, 0.0
  %v2159 = vmax.f32 %v1303, 0.0
  %v2160 = vmax.f32 %v1730, 0.0
  %v2161 = vmax.f32 %v1732, 0.0
  %v2162 = vmax.f32 %v878, 0.0
  %v2163 = vmax.f32 %v880, 0.0
  %v2164 = vmax.f32 %v1307, 0.0
  %v2165 = vmax.f32 %v1309, 0.0
  %v2166 = vmax.f32 %v1736, 0.0
  %v2167 = vmax.f32 %v1738, 0.0
  %v2168 = vmax.f32 %v882, 0.0
  %v2169 = vmax.f32 %v884, 0.0
  %v2170 = vmax.f32 %v1311, 0.0
  %v2171 = vmax.f32 %v1313, 0.0
  %v2172 = vmax.f32 %v1740, 0.0
  %v2173 = vmax.f32 %v1742, 0.0
  %v2174 = vmax.f32 %v888, 0.0
  %v2175 = vmax.f32 %v890, 0.0
  %v2176 = vmax.f32 %v1317, 0.0
  %v2177 = vmax.f32 %v1319, 0.0
  %v2178 = vmax.f32 %v1746, 0.0
  %v2179 = vmax.f32 %v1748, 0.0
  %v2180 = vmax.f32 %v892, 0.0
  %v2181 = vmax.f32 %v894, 0.0
  %v2182 = vmax.f32 %v1321, 0.0
  %v2183 = vmax.f32 %v1323, 0.0
  %v2184 = vmax.f32 %v1750, 0.0
  %v2185 = vmax.f32 %v1752, 0.0
  %v2186 = vmax.f32 %v898, 0.0
  %v2187 = vmax.f32 %v900, 0.0
  %v2188 = vmax.f32 %v1327, 0.0
  %v2189 = vmax.f32 %v1329, 0.0
  %v2190 = vmax.f32 %v1756, 0.0
  %v2191 = vmax.f32 %v1758, 0.0
  %v2192 = vmax.f32 %v902, 0.0
  %v2193 = vmax.f32 %v904, 0.0
  %v2194 = vmax.f32 %v1331, 0.0
  %v2195 = vmax.f32 %v1333, 0.0
  %v2196 = vmax.f32 %v1760, 0.0
  %v2197 = vmax.f32 %v1762, 0.0
  %v2198 = vmax.f32 %v908, 0.0
  %v2199 = vmax.f32 %v910, 0.0
  %v2200 = vmax.f32 %v1337, 0.0
  %v2201 = vmax.f32 %v1339, 0.0
  %v2202 = vmax.f32 %v1766, 0.0
  %v2203 = vmax.f32 %v1768, 0.0
  %v2204 = vmax.f32 %v912, 0.0
  %v2205 = vmax.f32 %v914, 0.0
  %v2206 = vmax.f32 %v1341, 0.0
  %v2207 = vmax.f32 %v1343, 0.0
  %v2208 = vmax.f32 %v1770, 0.0
  %v2209 = vmax.f32 %v1772, 0.0
  %v2210 = vmax.f32 %v918, 0.0
  %v2211 = vmax.f32 %v920, 0.0
  %v2212 = vmax.f32 %v1347, 0.0
  %v2213 = vmax.f32 %v1349, 0.0
  %v2214 = vmax.f32 %v1776, 0.0
  %v2215 = vmax.f32 %v1778, 0.0
  %v2216 = vmax.f32 %v922, 0.0
  %v2217 = vmax.f32 %v924, 0.0
  %v2218 = vmax.f32 %v1351, 0.0
  %v2219 = vmax.f32 %v1353, 0.0
  %v2220 = vmax.f32 %v1780, 0.0
  %v2221 = vmax.f32 %v1782, 0.0
  %v2222 = vmax.f32 %v928, 0.0
  %v2223 = vmax.f32 %v930, 0.0
  %v2224 = vmax.f32 %v1357, 0.0
  %v2225 = vmax.f32 %v1359, 0.0
  %v2226 = vmax.f32 %v1786, 0.0
  %v2227 = vmax.f32 %v1788, 0.0
  %v2228 = vmax.f32 %v932, 0.0
  %v2229 = vmax.f32 %v934, 0.0
  %v2230 = vmax.f32 %v1361, 0.0
  %v2231 = vmax.f32 %v1363, 0.0
  %v2232 = vmax.f32 %v1790, 0.0
  %v2233 = vmax.f32 %v1792, 0.0
  %v2234 = vmax.f32 %v938, 0.0
  %v2235 = vmax.f32 %v940, 0.0
  %v2236 = vmax.f32 %v1367, 0.0
  %v2237 = vmax.f32 %v1369, 0.0
  %v2238 = vmax.f32 %v1796, 0.0
  %v2239 = vmax.f32 %v1798, 0.0
  %v2240 = vmax.f32 %v942, 0.0
  %v2241 = vmax.f32 %v944, 0.0
  %v2242 = vmax.f32 %v1371, 0.0
  %v2243 = vmax.f32 %v1373, 0.0
  %v2244 = vmax.f32 %v1800, 0.0
  %v2245 = vmax.f32 %v1802, 0.0
  %v2246 = vmax.f32 %v948, 0.0
  %v2247 = vmax.f32 %v950, 0.0
  %v2248 = vmax.f32 %v1377, 0.0
  %v2249 = vmax.f32 %v1379, 0.0
  %v2250 = vmax.f32 %v1806, 0.0
  %v2251 = vmax.f32 %v1808, 0.0
  %v2252 = vmax.f32 %v952, 0.0
  %v2253 = vmax.f32 %v954, 0.0
  %v2254 = vmax.f32 %v1381, 0.0
  %v2255 = vmax.f32 %v1383, 0.0
  %v2256 = vmax.f32 %v1810, 0.0
  %v2257 = vmax.f32 %v1812, 0.0
  %v2258 = vmax.f32 %v958, 0.0
  %v2259 = vmax.f32 %v960, 0.0
  %v2260 = vmax.f32 %v1387, 0.0
  %v2261 = vmax.f32 %v1389, 0.0
  %v2262 = vmax.f32 %v1816, 0.0
  %v2263 = vmax.f32 %v1818, 0.0
  %v2264 = vmax.f32 %v962, 0.0
  %v2265 = vmax.f32 %v964, 0.0
  %v2266 = vmax.f32 %v1391, 0.0
  %v2267 = vmax.f32 %v1393, 0.0
  %v2268 = vmax.f32 %v1820, 0.0
  %v2269 = vmax.f32 %v1822, 0.0
  %v2270 = vmax.f32 %v968, 0.0
  %v2271 = vmax.f32 %v970, 0.0
  %v2272 = vmax.f32 %v1397, 0.0
  %v2273 = vmax.f32 %v1399, 0.0
  %v2274 = vmax.f32 %v1826, 0.0
  %v2275 = vmax.f32 %v1828, 0.0
  %v2276 = vmax.f32 %v972, 0.0
  %v2277 = vmax.f32 %v974, 0.0
  %v2278 = vmax.f32 %v1401, 0.0
  %v2279 = vmax.f32 %v1403, 0.0
  %v2280 = vmax.f32 %v1830, 0.0
  %v2281 = vmax.f32 %v1832, 0.0
  %v2282 = vmax.f32 %v978, 0.0
  %v2283 = vmax.f32 %v980, 0.0
  %v2284 = vmax.f32 %v1407, 0.0
  %v2285 = vmax.f32 %v1409, 0.0
  %v2286 = vmax.f32 %v1836, 0.0
  %v2287 = vmax.f32 %v1838, 0.0
  %v2288 = vmax.f32 %v982, 0.0
  %v2289 = vmax.f32 %v984, 0.0
  %v2290 = vmax.f32 %v1411, 0.0
  %v2291 = vmax.f32 %v1413, 0.0
  %v2292 = vmax.f32 %v1840, 0.0
  %v2293 = vmax.f32 %v1842, 0.0
  %v2294 = vmax.f32 %v988, 0.0
  %v2295 = vmax.f32 %v990, 0.0
  %v2296 = vmax.f32 %v1417, 0.0
  %v2297 = vmax.f32 %v1419, 0.0
  %v2298 = vmax.f32 %v1846, 0.0
  %v2299 = vmax.f32 %v1848, 0.0
  %v2300 = vmax.f32 %v992, 0.0
  %v2301 = vmax.f32 %v994, 0.0
  %v2302 = vmax.f32 %v1421, 0.0
  %v2303 = vmax.f32 %v1423, 0.0
  %v2304 = vmax.f32 %v1850, 0.0
  %v2305 = vmax.f32 %v1852, 0.0
  %v2306 = vmax.f32 %v998, 0.0
  %v2307 = vmax.f32 %v1000, 0.0
  %v2308 = vmax.f32 %v1427, 0.0
  %v2309 = vmax.f32 %v1429, 0.0
  %v2310 = vmax.f32 %v1856, 0.0
  %v2311 = vmax.f32 %v1858, 0.0
  %v2312 = vmax.f32 %v1002, 0.0
  %v2313 = vmax.f32 %v1004, 0.0
  %v2314 = vmax.f32 %v1431, 0.0
  %v2315 = vmax.f32 %v1433, 0.0
  %v2316 = vmax.f32 %v1860, 0.0
  %v2317 = vmax.f32 %v1862, 0.0
  %v2318 = vmax.f32 %v1008, 0.0
  %v2319 = vmax.f32 %v1010, 0.0
  %v2320 = vmax.f32 %v1437, 0.0
  %v2321 = vmax.f32 %v1439, 0.0
  %v2322 = vmax.f32 %v1866, 0.0
  %v2323 = vmax.f32 %v1868, 0.0
  %v2324 = vmax.f32 %v1012, 0.0
  %v2325 = vmax.f32 %v1014, 0.0
  %v2326 = vmax.f32 %v1441, 0.0
  %v2327 = vmax.f32 %v1443, 0.0
  %v2328 = vmax.f32 %v1870, 0.0
  %v2329 = vmax.f32 %v1872, 0.0
  %v2330 = vmax.f32 %v1018, 0.0
  %v2331 = vmax.f32 %v1020, 0.0
  %v2332 = vmax.f32 %v1447, 0.0
  %v2333 = vmax.f32 %v1449, 0.0
  %v2334 = vmax.f32 %v1876, 0.0
  %v2335 = vmax.f32 %v1878, 0.0
  %v2336 = vmax.f32 %v1022, 0.0
  %v2337 = vmax.f32 %v1024, 0.0
  %v2338 = vmax.f32 %v1451, 0.0
  %v2339 = vmax.f32 %v1453, 0.0
  %v2340 = vmax.f32 %v1880, 0.0
  %v2341 = vmax.f32 %v1882, 0.0
  %v2342 = vmax.f32 %v1028, 0.0
  %v2343 = vmax.f32 %v1030, 0.0
  %v2344 = vmax.f32 %v1457, 0.0
  %v2345 = vmax.f32 %v1459, 0.0
  %v2346 = vmax.f32 %v1886, 0.0
  %v2347 = vmax.f32 %v1888, 0.0
  %v2348 = vmax.f32 %v1032, 0.0
  %v2349 = vmax.f32 %v1034, 0.0
  %v2350 = vmax.f32 %v1461, 0.0
  %v2351 = vmax.f32 %v1463, 0.0
  %v2352 = vmax.f32 %v1890, 0.0
  %v2353 = vmax.f32 %v1892, 0.0
  %v2354 = vmax.f32 %v1038, 0.0
  %v2355 = vmax.f32 %v1040, 0.0
  %v2356 = vmax.f32 %v1467, 0.0
  %v2357 = vmax.f32 %v1469, 0.0
  %v2358 = vmax.f32 %v1896, 0.0
  %v2359 = vmax.f32 %v1898, 0.0
  %v2360 = vmax.f32 %v1042, 0.0
  %v2361 = vmax.f32 %v1044, 0.0
  %v2362 = vmax.f32 %v1471, 0.0
  %v2363 = vmax.f32 %v1473, 0.0
  %v2364 = vmax.f32 %v1900, 0.0
  %v2365 = vmax.f32 %v1902, 0.0
  %v2366 = vmax.f32 %v1048, 0.0
  %v2367 = vmax.f32 %v1050, 0.0
  %v2368 = vmax.f32 %v1477, 0.0
  %v2369 = vmax.f32 %v1479, 0.0
  %v2370 = vmax.f32 %v1906, 0.0
  %v2371 = vmax.f32 %v1908, 0.0
  %v2372 = vmax.f32 %v1052, 0.0
  %v2373 = vmax.f32 %v1054, 0.0
  %v2374 = vmax.f32 %v1481, 0.0
  %v2375 = vmax.f32 %v1483, 0.0
  %v2376 = vmax.f32 %v1910, 0.0
  %v2377 = vmax.f32 %v1912, 0.0
  %v2378 = vmax.f32 %v1058, 0.0
  %v2379 = vmax.f32 %v1060, 0.0
  %v2380 = vmax.f32 %v1487, 0.0
  %v2381 = vmax.f32 %v1489, 0.0
  %v2382 = vmax.f32 %v1916, 0.0
  %v2383 = vmax.f32 %v1918, 0.0
  %v2384 = vmax.f32 %v1062, 0.0
  %v2385 = vmax.f32 %v1064, 0.0
  %v2386 = vmax.f32 %v1491, 0.0
  %v2387 = vmax.f32 %v1493, 0.0
  %v2388 = vmax.f32 %v1920, 0.0
  %v2389 = vmax.f32 %v1922, 0.0
  %v2390 = vmax.f32 %v1068, 0.0
  %v2391 = vmax.f32 %v1070, 0.0
  %v2392 = vmax.f32 %v1497, 0.0
  %v2393 = vmax.f32 %v1499, 0.0
  %v2394 = vmax.f32 %v1926, 0.0
  %v2395 = vmax.f32 %v1928, 0.0
  %v2396 = vmax.f32 %v1072, 0.0
  %v2397 = vmax.f32 %v1074, 0.0
  %v2398 = vmax.f32 %v1501, 0.0
  %v2399 = vmax.f32 %v1503, 0.0
  %v2400 = vmax.f32 %v1930, 0.0
  %v2401 = vmax.f32 %v1932, 0.0
  %v2402 = vmax.f32 %v1078, 0.0
  %v2403 = vmax.f32 %v1080, 0.0
  %v2404 = vmax.f32 %v1507, 0.0
  %v2405 = vmax.f32 %v1509, 0.0
  %v2406 = vmax.f32 %v1936, 0.0
  %v2407 = vmax.f32 %v1938, 0.0
  %v2408 = vmax.f32 %v1082, 0.0
  %v2409 = vmax.f32 %v1084, 0.0
  %v2410 = vmax.f32 %v1511, 0.0
  %v2411 = vmax.f32 %v1513, 0.0
  %v2412 = vmax.f32 %v1940, 0.0
  %v2413 = vmax.f32 %v1942, 0.0
  %v2414 = vmax.f32 %v1088, 0.0
  %v2415 = vmax.f32 %v1090, 0.0
  %v2416 = vmax.f32 %v1517, 0.0
  %v2417 = vmax.f32 %v1519, 0.0
  %v2418 = vmax.f32 %v1946, 0.0
  %v2419 = vmax.f32 %v1948, 0.0
  %v2420 = vmax.f32 %v1092, 0.0
  %v2421 = vmax.f32 %v1094, 0.0
  %v2422 = vmax.f32 %v1521, 0.0
  %v2423 = vmax.f32 %v1523, 0.0
  %v2424 = vmax.f32 %v1950, 0.0
  %v2425 = vmax.f32 %v1952, 0.0
  %v2426 = vmax.f32 %v1098, 0.0
  %v2427 = vmax.f32 %v1100, 0.0
  %v2428 = vmax.f32 %v1527, 0.0
  %v2429 = vmax.f32 %v1529, 0.0
  %v2430 = vmax.f32 %v1956, 0.0
  %v2431 = vmax.f32 %v1958, 0.0
  %v2432 = vmax.f32 %v1102, 0.0
  %v2433 = vmax.f32 %v1104, 0.0
  %v2434 = vmax.f32 %v1531, 0.0
  %v2435 = vmax.f32 %v1533, 0.0
  %v2436 = vmax.f32 %v1960, 0.0
  %v2437 = vmax.f32 %v1962, 0.0
  %v2438 = vmax.f32 %v1970, %v1982
  %v2439 = vmax.f32 %v1971, %v1983
  %v2440 = vmax.f32 %v1972, %v1984
  %v2441 = vmax.f32 %v1973, %v1985
  %v2442 = vmax.f32 %v1974, %v1986
  %v2443 = vmax.f32 %v1975, %v1987
  %v2444 = vmax.f32 %v1976, %v1988
  %v2445 = vmax.f32 %v1977, %v1989
  %v2446 = vmax.f32 %v1978, %v1990
  %v2447 = vmax.f32 %v1979, %v1991
  %v2448 = vmax.f32 %v1980, %v1992
  %v2449 = vmax.f32 %v1981, %v1993
  %v2450 = vmax.f32 %v2438, %v1994
  %v2451 = vmax.f32 %v2439, %v1995
  %v2452 = vmax.f32 %v2440, %v1996
  %v2453 = vmax.f32 %v2441, %v1997
  %v2454 = vmax.f32 %v2442, %v1998
  %v2455 = vmax.f32 %v2443, %v1999
  %v2456 = vmax.f32 %v2444, %v2000
  %v2457 = vmax.f32 %v2445, %v2001
  %v2458 = vmax.f32 %v2446, %v2002
  %v2459 = vmax.f32 %v2447, %v2003
  %v2460 = vmax.f32 %v2448, %v2004
  %v2461 = vmax.f32 %v2449, %v2005
  %v2462 = vmax.f32 %v2450, %v2452
  %v2463 = vmax.f32 %v2451, %v2453
  %v2464 = vmax.f32 %v2456, %v2458
  %v2465 = vmax.f32 %v2457, %v2459
  %v2466 = vmax.f32 %v2462, %v2454
  %v2467 = vmax.f32 %v2463, %v2455
  %v2468 = vmax.f32 %v2464, %v2460
  %v2469 = vmax.f32 %v2465, %v2461
  %v2470 = vpack.c.bf16 %v2468, %v2466
  %v2471 = vpack.c.bf16 %v2469, %v2467
  %v2472 = vmax.f32 %v2006, %v2018
  %v2473 = vmax.f32 %v2007, %v2019
  %v2474 = vmax.f32 %v2008, %v2020
  %v2475 = vmax.f32 %v2009, %v2021
  %v2476 = vmax.f32 %v2010, %v2022
  %v2477 = vmax.f32 %v2011, %v2023
  %v2478 = vmax.f32 %v2012, %v2024
  %v2479 = vmax.f32 %v2013, %v2025
  %v2480 = vmax.f32 %v2014, %v2026
  %v2481 = vmax.f32 %v2015, %v2027
  %v2482 = vmax.f32 %v2016, %v2028
  %v2483 = vmax.f32 %v2017, %v2029
  %v2484 = vmax.f32 %v2472, %v2030
  %v2485 = vmax.f32 %v2473, %v2031
  %v2486 = vmax.f32 %v2474, %v2032
  %v2487 = vmax.f32 %v2475, %v2033
  %v2488 = vmax.f32 %v2476, %v2034
  %v2489 = vmax.f32 %v2477, %v2035
  %v2490 = vmax.f32 %v2478, %v2036
  %v2491 = vmax.f32 %v2479, %v2037
  %v2492 = vmax.f32 %v2480, %v2038
  %v2493 = vmax.f32 %v2481, %v2039
  %v2494 = vmax.f32 %v2482, %v2040
  %v2495 = vmax.f32 %v2483, %v2041
  %v2496 = vmax.f32 %v2484, %v2486
  %v2497 = vmax.f32 %v2485, %v2487
  %v2498 = vmax.f32 %v2490, %v2492
  %v2499 = vmax.f32 %v2491, %v2493
  %v2500 = vmax.f32 %v2496, %v2488
  %v2501 = vmax.f32 %v2497, %v2489
  %v2502 = vmax.f32 %v2498, %v2494
  %v2503 = vmax.f32 %v2499, %v2495
  %v2504 = vpack.c.bf16 %v2502, %v2500
  %v2505 = vpack.c.bf16 %v2503, %v2501
  %v2506 = vmax.f32 %v2042, %v2054
  %v2507 = vmax.f32 %v2043, %v2055
  %v2508 = vmax.f32 %v2044, %v2056
  %v2509 = vmax.f32 %v2045, %v2057
  %v2510 = vmax.f32 %v2046, %v2058
  %v2511 = vmax.f32 %v2047, %v2059
  %v2512 = vmax.f32 %v2048, %v2060
  %v2513 = vmax.f32 %v2049, %v2061
  %v2514 = vmax.f32 %v2050, %v2062
  %v2515 = vmax.f32 %v2051, %v2063
  %v2516 = vmax.f32 %v2052, %v2064
  %v2517 = vmax.f32 %v2053, %v2065
  %v2518 = vmax.f32 %v2506, %v2066
  %v2519 = vmax.f32 %v2507, %v2067
  %v2520 = vmax.f32 %v2508, %v2068
  %v2521 = vmax.f32 %v2509, %v2069
  %v2522 = vmax.f32 %v2510, %v2070
  %v2523 = vmax.f32 %v2511, %v2071
  %v2524 = vmax.f32 %v2512, %v2072
  %v2525 = vmax.f32 %v2513, %v2073
  %v2526 = vmax.f32 %v2514, %v2074
  %v2527 = vmax.f32 %v2515, %v2075
  %v2528 = vmax.f32 %v2516, %v2076
  %v2529 = vmax.f32 %v2517, %v2077
  %v2530 = vmax.f32 %v2518, %v2520
  %v2531 = vmax.f32 %v2519, %v2521
  %v2532 = vmax.f32 %v2524, %v2526
  %v2533 = vmax.f32 %v2525, %v2527
  %v2534 = vmax.f32 %v2530, %v2522
  %v2535 = vmax.f32 %v2531, %v2523
  %v2536 = vmax.f32 %v2532, %v2528
  %v2537 = vmax.f32 %v2533, %v2529
  %v2538 = vpack.c.bf16 %v2536, %v2534
  %v2539 = vpack.c.bf16 %v2537, %v2535
  %v2540 = vmax.f32 %v2078, %v2090
  %v2541 = vmax.f32 %v2079, %v2091
  %v2542 = vmax.f32 %v2080, %v2092
  %v2543 = vmax.f32 %v2081, %v2093
  %v2544 = vmax.f32 %v2082, %v2094
  %v2545 = vmax.f32 %v2083, %v2095
  %v2546 = vmax.f32 %v2084, %v2096
  %v2547 = vmax.f32 %v2085, %v2097
  %v2548 = vmax.f32 %v2086, %v2098
  %v2549 = vmax.f32 %v2087, %v2099
  %v2550 = vmax.f32 %v2088, %v2100
  %v2551 = vmax.f32 %v2089, %v2101
  %v2552 = vmax.f32 %v2540, %v2102
  %v2553 = vmax.f32 %v2541, %v2103
  %v2554 = vmax.f32 %v2542, %v2104
  %v2555 = vmax.f32 %v2543, %v2105
  %v2556 = vmax.f32 %v2544, %v2106
  %v2557 = vmax.f32 %v2545, %v2107
  %v2558 = vmax.f32 %v2546, %v2108
  %v2559 = vmax.f32 %v2547, %v2109
  %v2560 = vmax.f32 %v2548, %v2110
  %v2561 = vmax.f32 %v2549, %v2111
  %v2562 = vmax.f32 %v2550, %v2112
  %v2563 = vmax.f32 %v2551, %v2113
  %v2564 = vmax.f32 %v2552, %v2554
  %v2565 = vmax.f32 %v2553, %v2555
  %v2566 = vmax.f32 %v2558, %v2560
  %v2567 = vmax.f32 %v2559, %v2561
  %v2568 = vmax.f32 %v2564, %v2556
  %v2569 = vmax.f32 %v2565, %v2557
  %v2570 = vmax.f32 %v2566, %v2562
  %v2571 = vmax.f32 %v2567, %v2563
  %v2572 = vpack.c.bf16 %v2570, %v2568
  %v2573 = vpack.c.bf16 %v2571, %v2569
  %v2574 = vmax.f32 %v2114, %v2126
  %v2575 = vmax.f32 %v2115, %v2127
  %v2576 = vmax.f32 %v2116, %v2128
  %v2577 = vmax.f32 %v2117, %v2129
  %v2578 = vmax.f32 %v2118, %v2130
  %v2579 = vmax.f32 %v2119, %v2131
  %v2580 = vmax.f32 %v2120, %v2132
  %v2581 = vmax.f32 %v2121, %v2133
  %v2582 = vmax.f32 %v2122, %v2134
  %v2583 = vmax.f32 %v2123, %v2135
  %v2584 = vmax.f32 %v2124, %v2136
  %v2585 = vmax.f32 %v2125, %v2137
  %v2586 = vmax.f32 %v2574, %v2138
  %v2587 = vmax.f32 %v2575, %v2139
  %v2588 = vmax.f32 %v2576, %v2140
  %v2589 = vmax.f32 %v2577, %v2141
  %v2590 = vmax.f32 %v2578, %v2142
  %v2591 = vmax.f32 %v2579, %v2143
  %v2592 = vmax.f32 %v2580, %v2144
  %v2593 = vmax.f32 %v2581, %v2145
  %v2594 = vmax.f32 %v2582, %v2146
  %v2595 = vmax.f32 %v2583, %v2147
  %v2596 = vmax.f32 %v2584, %v2148
  %v2597 = vmax.f32 %v2585, %v2149
  %v2598 = vmax.f32 %v2586, %v2588
  %v2599 = vmax.f32 %v2587, %v2589
  %v2600 = vmax.f32 %v2592, %v2594
  %v2601 = vmax.f32 %v2593, %v2595
  %v2602 = vmax.f32 %v2598, %v2590
  %v2603 = vmax.f32 %v2599, %v2591
  %v2604 = vmax.f32 %v2600, %v2596
  %v2605 = vmax.f32 %v2601, %v2597
  %v2606 = vpack.c.bf16 %v2604, %v2602
  %v2607 = vpack.c.bf16 %v2605, %v2603
  %v2608 = vmax.f32 %v2150, %v2162
  %v2609 = vmax.f32 %v2151, %v2163
  %v2610 = vmax.f32 %v2152, %v2164
  %v2611 = vmax.f32 %v2153, %v2165
  %v2612 = vmax.f32 %v2154, %v2166
  %v2613 = vmax.f32 %v2155, %v2167
  %v2614 = vmax.f32 %v2156, %v2168
  %v2615 = vmax.f32 %v2157, %v2169
  %v2616 = vmax.f32 %v2158, %v2170
  %v2617 = vmax.f32 %v2159, %v2171
  %v2618 = vmax.f32 %v2160, %v2172
  %v2619 = vmax.f32 %v2161, %v2173
  %v2620 = vmax.f32 %v2608, %v2174
  %v2621 = vmax.f32 %v2609, %v2175
  %v2622 = vmax.f32 %v2610, %v2176
  %v2623 = vmax.f32 %v2611, %v2177
  %v2624 = vmax.f32 %v2612, %v2178
  %v2625 = vmax.f32 %v2613, %v2179
  %v2626 = vmax.f32 %v2614, %v2180
  %v2627 = vmax.f32 %v2615, %v2181
  %v2628 = vmax.f32 %v2616, %v2182
  %v2629 = vmax.f32 %v2617, %v2183
  %v2630 = vmax.f32 %v2618, %v2184
  %v2631 = vmax.f32 %v2619, %v2185
  %v2632 = vmax.f32 %v2620, %v2622
  %v2633 = vmax.f32 %v2621, %v2623
  %v2634 = vmax.f32 %v2626, %v2628
  %v2635 = vmax.f32 %v2627, %v2629
  %v2636 = vmax.f32 %v2632, %v2624
  %v2637 = vmax.f32 %v2633, %v2625
  %v2638 = vmax.f32 %v2634, %v2630
  %v2639 = vmax.f32 %v2635, %v2631
  %v2640 = vpack.c.bf16 %v2638, %v2636
  %v2641 = vpack.c.bf16 %v2639, %v2637
  %v2642 = vmax.f32 %v2186, %v2198
  %v2643 = vmax.f32 %v2187, %v2199
  %v2644 = vmax.f32 %v2188, %v2200
  %v2645 = vmax.f32 %v2189, %v2201
  %v2646 = vmax.f32 %v2190, %v2202
  %v2647 = vmax.f32 %v2191, %v2203
  %v2648 = vmax.f32 %v2192, %v2204
  %v2649 = vmax.f32 %v2193, %v2205
  %v2650 = vmax.f32 %v2194, %v2206
  %v2651 = vmax.f32 %v2195, %v2207
  %v2652 = vmax.f32 %v2196, %v2208
  %v2653 = vmax.f32 %v2197, %v2209
  %v2654 = vmax.f32 %v2642, %v2210
  %v2655 = vmax.f32 %v2643, %v2211
  %v2656 = vmax.f32 %v2644, %v2212
  %v2657 = vmax.f32 %v2645, %v2213
  %v2658 = vmax.f32 %v2646, %v2214
  %v2659 = vmax.f32 %v2647, %v2215
  %v2660 = vmax.f32 %v2648, %v2216
  %v2661 = vmax.f32 %v2649, %v2217
  %v2662 = vmax.f32 %v2650, %v2218
  %v2663 = vmax.f32 %v2651, %v2219
  %v2664 = vmax.f32 %v2652, %v2220
  %v2665 = vmax.f32 %v2653, %v2221
  %v2666 = vmax.f32 %v2654, %v2656
  %v2667 = vmax.f32 %v2655, %v2657
  %v2668 = vmax.f32 %v2660, %v2662
  %v2669 = vmax.f32 %v2661, %v2663
  %v2670 = vmax.f32 %v2666, %v2658
  %v2671 = vmax.f32 %v2667, %v2659
  %v2672 = vmax.f32 %v2668, %v2664
  %v2673 = vmax.f32 %v2669, %v2665
  %v2674 = vpack.c.bf16 %v2672, %v2670
  %v2675 = vpack.c.bf16 %v2673, %v2671
  %v2676 = vmax.f32 %v2222, %v2234
  %v2677 = vmax.f32 %v2223, %v2235
  %v2678 = vmax.f32 %v2224, %v2236
  %v2679 = vmax.f32 %v2225, %v2237
  %v2680 = vmax.f32 %v2226, %v2238
  %v2681 = vmax.f32 %v2227, %v2239
  %v2682 = vmax.f32 %v2228, %v2240
  %v2683 = vmax.f32 %v2229, %v2241
  %v2684 = vmax.f32 %v2230, %v2242
  %v2685 = vmax.f32 %v2231, %v2243
  %v2686 = vmax.f32 %v2232, %v2244
  %v2687 = vmax.f32 %v2233, %v2245
  %v2688 = vmax.f32 %v2676, %v2246
  %v2689 = vmax.f32 %v2677, %v2247
  %v2690 = vmax.f32 %v2678, %v2248
  %v2691 = vmax.f32 %v2679, %v2249
  %v2692 = vmax.f32 %v2680, %v2250
  %v2693 = vmax.f32 %v2681, %v2251
  %v2694 = vmax.f32 %v2682, %v2252
  %v2695 = vmax.f32 %v2683, %v2253
  %v2696 = vmax.f32 %v2684, %v2254
  %v2697 = vmax.f32 %v2685, %v2255
  %v2698 = vmax.f32 %v2686, %v2256
  %v2699 = vmax.f32 %v2687, %v2257
  %v2700 = vmax.f32 %v2688, %v2690
  %v2701 = vmax.f32 %v2689, %v2691
  %v2702 = vmax.f32 %v2694, %v2696
  %v2703 = vmax.f32 %v2695, %v2697
  %v2704 = vmax.f32 %v2700, %v2692
  %v2705 = vmax.f32 %v2701, %v2693
  %v2706 = vmax.f32 %v2702, %v2698
  %v2707 = vmax.f32 %v2703, %v2699
  %v2708 = vpack.c.bf16 %v2706, %v2704
  %v2709 = vpack.c.bf16 %v2707, %v2705
  %v2710 = vmax.f32 %v2258, %v2270
  %v2711 = vmax.f32 %v2259, %v2271
  %v2712 = vmax.f32 %v2260, %v2272
  %v2713 = vmax.f32 %v2261, %v2273
  %v2714 = vmax.f32 %v2262, %v2274
  %v2715 = vmax.f32 %v2263, %v2275
  %v2716 = vmax.f32 %v2264, %v2276
  %v2717 = vmax.f32 %v2265, %v2277
  %v2718 = vmax.f32 %v2266, %v2278
  %v2719 = vmax.f32 %v2267, %v2279
  %v2720 = vmax.f32 %v2268, %v2280
  %v2721 = vmax.f32 %v2269, %v2281
  %v2722 = vmax.f32 %v2710, %v2282
  %v2723 = vmax.f32 %v2711, %v2283
  %v2724 = vmax.f32 %v2712, %v2284
  %v2725 = vmax.f32 %v2713, %v2285
  %v2726 = vmax.f32 %v2714, %v2286
  %v2727 = vmax.f32 %v2715, %v2287
  %v2728 = vmax.f32 %v2716, %v2288
  %v2729 = vmax.f32 %v2717, %v2289
  %v2730 = vmax.f32 %v2718, %v2290
  %v2731 = vmax.f32 %v2719, %v2291
  %v2732 = vmax.f32 %v2720, %v2292
  %v2733 = vmax.f32 %v2721, %v2293
  %v2734 = vmax.f32 %v2722, %v2724
  %v2735 = vmax.f32 %v2723, %v2725
  %v2736 = vmax.f32 %v2728, %v2730
  %v2737 = vmax.f32 %v2729, %v2731
  %v2738 = vmax.f32 %v2734, %v2726
  %v2739 = vmax.f32 %v2735, %v2727
  %v2740 = vmax.f32 %v2736, %v2732
  %v2741 = vmax.f32 %v2737, %v2733
  %v2742 = vpack.c.bf16 %v2740, %v2738
  %v2743 = vpack.c.bf16 %v2741, %v2739
  %v2744 = vmax.f32 %v2294, %v2306
  %v2745 = vmax.f32 %v2295, %v2307
  %v2746 = vmax.f32 %v2296, %v2308
  %v2747 = vmax.f32 %v2297, %v2309
  %v2748 = vmax.f32 %v2298, %v2310
  %v2749 = vmax.f32 %v2299, %v2311
  %v2750 = vmax.f32 %v2300, %v2312
  %v2751 = vmax.f32 %v2301, %v2313
  %v2752 = vmax.f32 %v2302, %v2314
  %v2753 = vmax.f32 %v2303, %v2315
  %v2754 = vmax.f32 %v2304, %v2316
  %v2755 = vmax.f32 %v2305, %v2317
  %v2756 = vmax.f32 %v2744, %v2318
  %v2757 = vmax.f32 %v2745, %v2319
  %v2758 = vmax.f32 %v2746, %v2320
  %v2759 = vmax.f32 %v2747, %v2321
  %v2760 = vmax.f32 %v2748, %v2322
  %v2761 = vmax.f32 %v2749, %v2323
  %v2762 = vmax.f32 %v2750, %v2324
  %v2763 = vmax.f32 %v2751, %v2325
  %v2764 = vmax.f32 %v2752, %v2326
  %v2765 = vmax.f32 %v2753, %v2327
  %v2766 = vmax.f32 %v2754, %v2328
  %v2767 = vmax.f32 %v2755, %v2329
  %v2768 = vmax.f32 %v2756, %v2758
  %v2769 = vmax.f32 %v2757, %v2759
  %v2770 = vmax.f32 %v2762, %v2764
  %v2771 = vmax.f32 %v2763, %v2765
  %v2772 = vmax.f32 %v2768, %v2760
  %v2773 = vmax.f32 %v2769, %v2761
  %v2774 = vmax.f32 %v2770, %v2766
  %v2775 = vmax.f32 %v2771, %v2767
  %v2776 = vpack.c.bf16 %v2774, %v2772
  %v2777 = vpack.c.bf16 %v2775, %v2773
  %v2778 = vmax.f32 %v2330, %v2342
  %v2779 = vmax.f32 %v2331, %v2343
  %v2780 = vmax.f32 %v2332, %v2344
  %v2781 = vmax.f32 %v2333, %v2345
  %v2782 = vmax.f32 %v2334, %v2346
  %v2783 = vmax.f32 %v2335, %v2347
  %v2784 = vmax.f32 %v2336, %v2348
  %v2785 = vmax.f32 %v2337, %v2349
  %v2786 = vmax.f32 %v2338, %v2350
  %v2787 = vmax.f32 %v2339, %v2351
  %v2788 = vmax.f32 %v2340, %v2352
  %v2789 = vmax.f32 %v2341, %v2353
  %v2790 = vmax.f32 %v2778, %v2354
  %v2791 = vmax.f32 %v2779, %v2355
  %v2792 = vmax.f32 %v2780, %v2356
  %v2793 = vmax.f32 %v2781, %v2357
  %v2794 = vmax.f32 %v2782, %v2358
  %v2795 = vmax.f32 %v2783, %v2359
  %v2796 = vmax.f32 %v2784, %v2360
  %v2797 = vmax.f32 %v2785, %v2361
  %v2798 = vmax.f32 %v2786, %v2362
  %v2799 = vmax.f32 %v2787, %v2363
  %v2800 = vmax.f32 %v2788, %v2364
  %v2801 = vmax.f32 %v2789, %v2365
  %v2802 = vmax.f32 %v2790, %v2792
  %v2803 = vmax.f32 %v2791, %v2793
  %v2804 = vmax.f32 %v2796, %v2798
  %v2805 = vmax.f32 %v2797, %v2799
  %v2806 = vmax.f32 %v2802, %v2794
  %v2807 = vmax.f32 %v2803, %v2795
  %v2808 = vmax.f32 %v2804, %v2800
  %v2809 = vmax.f32 %v2805, %v2801
  %v2810 = vpack.c.bf16 %v2808, %v2806
  %v2811 = vpack.c.bf16 %v2809, %v2807
  %v2812 = vmax.f32 %v2366, %v2378
  %v2813 = vmax.f32 %v2367, %v2379
  %v2814 = vmax.f32 %v2368, %v2380
  %v2815 = vmax.f32 %v2369, %v2381
  %v2816 = vmax.f32 %v2370, %v2382
  %v2817 = vmax.f32 %v2371, %v2383
  %v2818 = vmax.f32 %v2372, %v2384
  %v2819 = vmax.f32 %v2373, %v2385
  %v2820 = vmax.f32 %v2374, %v2386
  %v2821 = vmax.f32 %v2375, %v2387
  %v2822 = vmax.f32 %v2376, %v2388
  %v2823 = vmax.f32 %v2377, %v2389
  %v2824 = vmax.f32 %v2812, %v2390
  %v2825 = vmax.f32 %v2813, %v2391
  %v2826 = vmax.f32 %v2814, %v2392
  %v2827 = vmax.f32 %v2815, %v2393
  %v2828 = vmax.f32 %v2816, %v2394
  %v2829 = vmax.f32 %v2817, %v2395
  %v2830 = vmax.f32 %v2818, %v2396
  %v2831 = vmax.f32 %v2819, %v2397
  %v2832 = vmax.f32 %v2820, %v2398
  %v2833 = vmax.f32 %v2821, %v2399
  %v2834 = vmax.f32 %v2822, %v2400
  %v2835 = vmax.f32 %v2823, %v2401
  %v2836 = vmax.f32 %v2824, %v2826
  %v2837 = vmax.f32 %v2825, %v2827
  %v2838 = vmax.f32 %v2830, %v2832
  %v2839 = vmax.f32 %v2831, %v2833
  %v2840 = vmax.f32 %v2836, %v2828
  %v2841 = vmax.f32 %v2837, %v2829
  %v2842 = vmax.f32 %v2838, %v2834
  %v2843 = vmax.f32 %v2839, %v2835
  %v2844 = vpack.c.bf16 %v2842, %v2840
  %v2845 = vpack.c.bf16 %v2843, %v2841
  %v2846 = vmax.f32 %v2402, %v2414
  %v2847 = vmax.f32 %v2403, %v2415
  %v2848 = vmax.f32 %v2404, %v2416
  %v2849 = vmax.f32 %v2405, %v2417
  %v2850 = vmax.f32 %v2406, %v2418
  %v2851 = vmax.f32 %v2407, %v2419
  %v2852 = vmax.f32 %v2408, %v2420
  %v2853 = vmax.f32 %v2409, %v2421
  %v2854 = vmax.f32 %v2410, %v2422
  %v2855 = vmax.f32 %v2411, %v2423
  %v2856 = vmax.f32 %v2412, %v2424
  %v2857 = vmax.f32 %v2413, %v2425
  %v2858 = vmax.f32 %v2846, %v2426
  %v2859 = vmax.f32 %v2847, %v2427
  %v2860 = vmax.f32 %v2848, %v2428
  %v2861 = vmax.f32 %v2849, %v2429
  %v2862 = vmax.f32 %v2850, %v2430
  %v2863 = vmax.f32 %v2851, %v2431
  %v2864 = vmax.f32 %v2852, %v2432
  %v2865 = vmax.f32 %v2853, %v2433
  %v2866 = vmax.f32 %v2854, %v2434
  %v2867 = vmax.f32 %v2855, %v2435
  %v2868 = vmax.f32 %v2856, %v2436
  %v2869 = vmax.f32 %v2857, %v2437
  %v2870 = vmax.f32 %v2858, %v2860
  %v2871 = vmax.f32 %v2859, %v2861
  %v2872 = vmax.f32 %v2864, %v2866
  %v2873 = vmax.f32 %v2865, %v2867
  %v2874 = vmax.f32 %v2870, %v2862
  %v2875 = vmax.f32 %v2871, %v2863
  %v2876 = vmax.f32 %v2872, %v2868
  %v2877 = vmax.f32 %v2873, %v2869
  %v2878 = vpack.c.bf16 %v2876, %v2874
  %v2879 = vpack.c.bf16 %v2877, %v2875
  %v2880 = vld [vmem:[%s4] sm:$0x3]
  %v2881 = vld [vmem:[%s3] sm:$0xff]
  %v2882 = vld [vmem:[%s3 + $0x8] sm:$0xff]
  %v2883 = vld [vmem:[%s3 + $0x10] sm:$0xff]
  %v2884 = vld [vmem:[%s3 + $0x18] sm:$0xff]
  %v2885 = vld [vmem:[%s3 + $0x20] sm:$0xff]
  %v2886 = vld [vmem:[%s3 + $0x28] sm:$0xff]
  %v2887 = vld [vmem:[%s3 + $0x30] sm:$0xff]
  %v2888 = vld [vmem:[%s3 + $0x38] sm:$0xff]
  %v2889 = vld [vmem:[%s3 + $0x40] sm:$0xff]
  %v2890 = vld [vmem:[%s3 + $0x48] sm:$0xff]
  %v2891 = vld [vmem:[%s3 + $0x50] sm:$0xff]
  %v2892 = vld [vmem:[%s3 + $0x58] sm:$0xff]
  %v2893 = vld [vmem:[%s3 + $0x60] sm:$0xff]
  %v2894 = vld [vmem:[%s3 + $0x68] sm:$0xff]
  %v2895 = vld [vmem:[%s3 + $0x70] sm:$0xff]
  %v2896 = vld [vmem:[%s3 + $0x78] sm:$0xff]
  %v2897 = vld [vmem:[%s3 + $0x80] sm:$0xff]
  %v2898 = vld [vmem:[%s3 + $0x88] sm:$0xff]
  %v2899 = vld [vmem:[%s3 + $0x90] sm:$0xff]
  %v2900 = vld [vmem:[%s3 + $0x98] sm:$0xff]
  %v2901 = vld [vmem:[%s3 + $0xa0] sm:$0xff]
  %v2902 = vld [vmem:[%s3 + $0xa8] sm:$0xff]
  %v2903 = vld [vmem:[%s3 + $0xb0] sm:$0xff]
  %v2904 = vld [vmem:[%s3 + $0xb8] sm:$0xff]
  %v2905 = vld [vmem:[%s3 + $0xc0] sm:$0xff]
  %v2906 = vld [vmem:[%s3 + $0xc8] sm:$0xff]
  %v2907 = vld [vmem:[%s3 + $0xd0] sm:$0xff]
  %v2908 = vld [vmem:[%s3 + $0xd8] sm:$0xff]
  %v2909 = vld [vmem:[%s3 + $0xe0] sm:$0xff]
  %v2910 = vld [vmem:[%s3 + $0xe8] sm:$0xff]
  %v2911 = vld [vmem:[%s3 + $0xf0] sm:$0xff]
  %v2912 = vld [vmem:[%s3 + $0xf8] sm:$0xff]
  %v2945 = vunpack.c.l.b16 %v2881
  %v2946 = vunpack.c.h.b16 %v2881
  %v2947 = vunpack.c.l.b16 %v2882
  %v2948 = vunpack.c.h.b16 %v2882
  %v2949 = vunpack.c.l.b16 %v2883
  %v2950 = vunpack.c.h.b16 %v2883
  %v2951 = vunpack.c.l.b16 %v2884
  %v2952 = vunpack.c.h.b16 %v2884
  %v2953 = vunpack.c.l.b16 %v2885
  %v2954 = vunpack.c.h.b16 %v2885
  %v2955 = vunpack.c.l.b16 %v2886
  %v2956 = vunpack.c.h.b16 %v2886
  %v2957 = vunpack.c.l.b16 %v2887
  %v2958 = vunpack.c.h.b16 %v2887
  %v2959 = vunpack.c.l.b16 %v2888
  %v2960 = vunpack.c.h.b16 %v2888
  %v2961 = vunpack.c.l.b16 %v2889
  %v2962 = vunpack.c.h.b16 %v2889
  %v2963 = vunpack.c.l.b16 %v2890
  %v2964 = vunpack.c.h.b16 %v2890
  %v2965 = vunpack.c.l.b16 %v2891
  %v2966 = vunpack.c.h.b16 %v2891
  %v2967 = vunpack.c.l.b16 %v2892
  %v2968 = vunpack.c.h.b16 %v2892
  %v2969 = vunpack.c.l.b16 %v2893
  %v2970 = vunpack.c.h.b16 %v2893
  %v2971 = vunpack.c.l.b16 %v2894
  %v2972 = vunpack.c.h.b16 %v2894
  %v2973 = vunpack.c.l.b16 %v2895
  %v2974 = vunpack.c.h.b16 %v2895
  %v2975 = vunpack.c.l.b16 %v2896
  %v2976 = vunpack.c.h.b16 %v2896
  %v2977 = vunpack.c.l.b16 %v2897
  %v2978 = vunpack.c.h.b16 %v2897
  %v2979 = vunpack.c.l.b16 %v2898
  %v2980 = vunpack.c.h.b16 %v2898
  %v2981 = vunpack.c.l.b16 %v2899
  %v2982 = vunpack.c.h.b16 %v2899
  %v2983 = vunpack.c.l.b16 %v2900
  %v2984 = vunpack.c.h.b16 %v2900
  %v2985 = vunpack.c.l.b16 %v2901
  %v2986 = vunpack.c.h.b16 %v2901
  %v2987 = vunpack.c.l.b16 %v2902
  %v2988 = vunpack.c.h.b16 %v2902
  %v2989 = vunpack.c.l.b16 %v2903
  %v2990 = vunpack.c.h.b16 %v2903
  %v2991 = vunpack.c.l.b16 %v2904
  %v2992 = vunpack.c.h.b16 %v2904
  %v2993 = vunpack.c.l.b16 %v2905
  %v2994 = vunpack.c.h.b16 %v2905
  %v2995 = vunpack.c.l.b16 %v2906
  %v2996 = vunpack.c.h.b16 %v2906
  %v2997 = vunpack.c.l.b16 %v2907
  %v2998 = vunpack.c.h.b16 %v2907
  %v2999 = vunpack.c.l.b16 %v2908
  %v3000 = vunpack.c.h.b16 %v2908
  %v3001 = vunpack.c.l.b16 %v2909
  %v3002 = vunpack.c.h.b16 %v2909
  %v3003 = vunpack.c.l.b16 %v2910
  %v3004 = vunpack.c.h.b16 %v2910
  %v3005 = vunpack.c.l.b16 %v2911
  %v3006 = vunpack.c.h.b16 %v2911
  %v3007 = vunpack.c.l.b16 %v2912
  %v3008 = vunpack.c.h.b16 %v2912
  %v3009 = vpack.c.b16 %v2947, %v2945
  %v3010 = vpack.c.b16 %v2948, %v2946
  %v3011 = vpack.c.b16 %v2951, %v2949
  %v3012 = vpack.c.b16 %v2952, %v2950
  %v3013 = vpack.c.b16 %v2955, %v2953
  %v3014 = vpack.c.b16 %v2956, %v2954
  %v3015 = vpack.c.b16 %v2959, %v2957
  %v3016 = vpack.c.b16 %v2960, %v2958
  %v3017 = vpack.c.b16 %v2963, %v2961
  %v3018 = vpack.c.b16 %v2964, %v2962
  %v3019 = vpack.c.b16 %v2967, %v2965
  %v3020 = vpack.c.b16 %v2968, %v2966
  %v3021 = vpack.c.b16 %v2971, %v2969
  %v3022 = vpack.c.b16 %v2972, %v2970
  %v3023 = vpack.c.b16 %v2975, %v2973
  %v3024 = vpack.c.b16 %v2976, %v2974
  %v3025 = vpack.c.b16 %v2979, %v2977
  %v3026 = vpack.c.b16 %v2980, %v2978
  %v3027 = vpack.c.b16 %v2983, %v2981
  %v3028 = vpack.c.b16 %v2984, %v2982
  %v3029 = vpack.c.b16 %v2987, %v2985
  %v3030 = vpack.c.b16 %v2988, %v2986
  %v3031 = vpack.c.b16 %v2991, %v2989
  %v3032 = vpack.c.b16 %v2992, %v2990
  %v3033 = vpack.c.b16 %v2995, %v2993
  %v3034 = vpack.c.b16 %v2996, %v2994
  %v3035 = vpack.c.b16 %v2999, %v2997
  %v3036 = vpack.c.b16 %v3000, %v2998
  %v3037 = vpack.c.b16 %v3003, %v3001
  %v3038 = vpack.c.b16 %v3004, %v3002
  %v3039 = vpack.c.b16 %v3007, %v3005
  %v3040 = vpack.c.b16 %v3008, %v3006
  %3073 = vmatprep.subr.bf16.mxu0 %v3024
  %3074 = vmatpush1.bf16.msra.mxu0 %v3023
  %3075 = vmatprep.subr.bf16.mxu0 %v3022
  %3076 = vmatpush1.bf16.msra.mxu0 %v3021
  %3077 = vmatprep.subr.bf16.mxu0 %v3020
  %3078 = vmatpush1.bf16.msra.mxu0 %v3019
  %3079 = vmatprep.subr.bf16.mxu0 %v3018
  %3080 = vmatpush1.bf16.msra.mxu0 %v3017
  %3081 = vmatprep.subr.bf16.mxu0 %v3016
  %3082 = vmatpush1.bf16.msra.mxu0 %v3015
  %3083 = vmatprep.subr.bf16.mxu0 %v3014
  %3084 = vmatpush1.bf16.msra.mxu0 %v3013
  %3085 = vmatprep.subr.bf16.mxu0 %v3012
  %3086 = vmatpush1.bf16.msra.mxu0 %v3011
  %3087 = vmatprep.subr.bf16.mxu0 %v3010
  %3088 = vmatpush1.bf16.msra.mxu0 %v3009
  %3089 = vmatprep.subr.bf16.mxu0 %v3040
  %3090 = vmatpush2.bf16.msra.mxu0 %v3039
  %3091 = vmatprep.subr.bf16.mxu0 %v3038
  %3092 = vmatpush2.bf16.msra.mxu0 %v3037
  %3093 = vmatprep.subr.bf16.mxu0 %v3036
  %3094 = vmatpush2.bf16.msra.mxu0 %v3035
  %3095 = vmatprep.subr.bf16.mxu0 %v3034
  %3096 = vmatpush2.bf16.msra.mxu0 %v3033
  %3097 = vmatprep.subr.bf16.mxu0 %v3032
  %3098 = vmatpush2.bf16.msra.mxu0 %v3031
  %3099 = vmatprep.subr.bf16.mxu0 %v3030
  %3100 = vmatpush2.bf16.msra.mxu0 %v3029
  %3101 = vmatprep.subr.bf16.mxu0 %v3028
  %3102 = vmatpush2.bf16.msra.mxu0 %v3027
  %3103 = vmatprep.subr.bf16.mxu0 %v3026
  %3104 = vmatpush2.bf16.msra.mxu0 %v3025
  %3105 = vmatprep.mubr.bf16.mxu0 %v2471
  %3106 = vmatmul.mubr.bf16.gmra.mxu0 %v2470
  %v3107 = vpop.f32.mrf.mxu0
  %v3108 = vadd.f32 0.0, %v3107
  %v3109 = vpop.f32.mrf.mxu0
  %v3110 = vadd.f32 0.0, %v3109
  %v3111 = vpop.f32.mrf.mxu0
  %v3112 = vadd.f32 0.0, %v3111
  %v3113 = vpop.f32.mrf.mxu0
  %v3114 = vadd.f32 0.0, %v3113
  %3115 = vmatprep.mubr.bf16.mxu0 %v2505
  %3116 = vmatmul.mubr.bf16.gmra.mxu0 %v2504
  %v3117 = vpop.f32.mrf.mxu0
  %v3118 = vadd.f32 0.0, %v3117
  %v3119 = vpop.f32.mrf.mxu0
  %v3120 = vadd.f32 0.0, %v3119
  %v3121 = vpop.f32.mrf.mxu0
  %v3122 = vadd.f32 0.0, %v3121
  %v3123 = vpop.f32.mrf.mxu0
  %v3124 = vadd.f32 0.0, %v3123
  %3125 = vmatprep.mubr.bf16.mxu0 %v2539
  %3126 = vmatmul.mubr.bf16.gmra.mxu0 %v2538
  %v3127 = vpop.f32.mrf.mxu0
  %v3128 = vadd.f32 0.0, %v3127
  %v3129 = vpop.f32.mrf.mxu0
  %v3130 = vadd.f32 0.0, %v3129
  %v3131 = vpop.f32.mrf.mxu0
  %v3132 = vadd.f32 0.0, %v3131
  %v3133 = vpop.f32.mrf.mxu0
  %v3134 = vadd.f32 0.0, %v3133
  %3135 = vmatprep.mubr.bf16.mxu0 %v2573
  %3136 = vmatmul.mubr.bf16.gmra.mxu0 %v2572
  %v3137 = vpop.f32.mrf.mxu0
  %v3138 = vadd.f32 0.0, %v3137
  %v3139 = vpop.f32.mrf.mxu0
  %v3140 = vadd.f32 0.0, %v3139
  %v3141 = vpop.f32.mrf.mxu0
  %v3142 = vadd.f32 0.0, %v3141
  %v3143 = vpop.f32.mrf.mxu0
  %v3144 = vadd.f32 0.0, %v3143
  %3145 = vmatprep.mubr.bf16.mxu0 %v2607
  %3146 = vmatmul.mubr.bf16.gmra.mxu0 %v2606
  %v3147 = vpop.f32.mrf.mxu0
  %v3148 = vadd.f32 0.0, %v3147
  %v3149 = vpop.f32.mrf.mxu0
  %v3150 = vadd.f32 0.0, %v3149
  %v3151 = vpop.f32.mrf.mxu0
  %v3152 = vadd.f32 0.0, %v3151
  %v3153 = vpop.f32.mrf.mxu0
  %v3154 = vadd.f32 0.0, %v3153
  %3155 = vmatprep.mubr.bf16.mxu0 %v2641
  %3156 = vmatmul.mubr.bf16.gmra.mxu0 %v2640
  %v3157 = vpop.f32.mrf.mxu0
  %v3158 = vadd.f32 0.0, %v3157
  %v3159 = vpop.f32.mrf.mxu0
  %v3160 = vadd.f32 0.0, %v3159
  %v3161 = vpop.f32.mrf.mxu0
  %v3162 = vadd.f32 0.0, %v3161
  %v3163 = vpop.f32.mrf.mxu0
  %v3164 = vadd.f32 0.0, %v3163
  %3165 = vmatprep.mubr.bf16.mxu0 %v2675
  %3166 = vmatmul.mubr.bf16.gmra.mxu0 %v2674
  %v3167 = vpop.f32.mrf.mxu0
  %v3168 = vadd.f32 0.0, %v3167
  %v3169 = vpop.f32.mrf.mxu0
  %v3170 = vadd.f32 0.0, %v3169
  %v3171 = vpop.f32.mrf.mxu0
  %v3172 = vadd.f32 0.0, %v3171
  %v3173 = vpop.f32.mrf.mxu0
  %v3174 = vadd.f32 0.0, %v3173
  %3175 = vmatprep.mubr.bf16.mxu0 %v2709
  %3176 = vmatmul.mubr.bf16.gmra.mxu0 %v2708
  %v3177 = vpop.f32.mrf.mxu0
  %v3178 = vadd.f32 0.0, %v3177
  %v3179 = vpop.f32.mrf.mxu0
  %v3180 = vadd.f32 0.0, %v3179
  %v3181 = vpop.f32.mrf.mxu0
  %v3182 = vadd.f32 0.0, %v3181
  %v3183 = vpop.f32.mrf.mxu0
  %v3184 = vadd.f32 0.0, %v3183
  %3185 = vmatprep.mubr.bf16.mxu0 %v2743
  %3186 = vmatmul.mubr.bf16.gmra.mxu0 %v2742
  %v3187 = vpop.f32.mrf.mxu0
  %v3188 = vadd.f32 0.0, %v3187
  %v3189 = vpop.f32.mrf.mxu0
  %v3190 = vadd.f32 0.0, %v3189
  %v3191 = vpop.f32.mrf.mxu0
  %v3192 = vadd.f32 0.0, %v3191
  %v3193 = vpop.f32.mrf.mxu0
  %v3194 = vadd.f32 0.0, %v3193
  %3195 = vmatprep.mubr.bf16.mxu0 %v2777
  %3196 = vmatmul.mubr.bf16.gmra.mxu0 %v2776
  %v3197 = vpop.f32.mrf.mxu0
  %v3198 = vpop.f32.mrf.mxu0
  %v3199 = vpop.f32.mrf.mxu0
  %v3200 = vpop.f32.mrf.mxu0
  %3201 = vmatprep.mubr.bf16.mxu0 %v2811
  %3202 = vmatmul.mubr.bf16.gmra.mxu0 %v2810
  %v3203 = vpop.f32.mrf.mxu0
  %v3204 = vpop.f32.mrf.mxu0
  %v3205 = vpop.f32.mrf.mxu0
  %v3206 = vpop.f32.mrf.mxu0
  %3207 = vdwg.mxu0
  %v3209 = vlaneseq
  %v3210 = vshrl.u32 %v3209, 7
  %v3211 = vsub.s32 0, %v3210
  %v3212 = vrot.slane %v2880, %v3211
  %v3213 = vlaneseq
  %v3214 = vshrl.u32 %v3213, 7
  %v3215 = vsub.s32 1, %v3214
  %v3216 = vrot.slane %v2880, %v3215
  %v3219 = vadd.f32 %v3212, %v3108
  %v3220 = vadd.f32 %v3216, %v3110
  %v3221 = vadd.f32 %v3212, %v3112
  %v3222 = vadd.f32 %v3216, %v3114
  %v3223 = vadd.f32 %v3212, %v3118
  %v3224 = vadd.f32 %v3216, %v3120
  %v3225 = vadd.f32 %v3212, %v3122
  %v3226 = vadd.f32 %v3216, %v3124
  %v3227 = vadd.f32 %v3212, %v3128
  %v3228 = vadd.f32 %v3216, %v3130
  %v3229 = vadd.f32 %v3212, %v3132
  %v3230 = vadd.f32 %v3216, %v3134
  %v3231 = vadd.f32 %v3212, %v3138
  %v3232 = vadd.f32 %v3216, %v3140
  %v3233 = vadd.f32 %v3212, %v3142
  %v3234 = vadd.f32 %v3216, %v3144
  %v3235 = vadd.f32 %v3212, %v3148
  %v3236 = vadd.f32 %v3216, %v3150
  %v3237 = vadd.f32 %v3212, %v3152
  %v3238 = vadd.f32 %v3216, %v3154
  %v3239 = vadd.f32 %v3212, %v3158
  %v3240 = vadd.f32 %v3216, %v3160
  %v3241 = vadd.f32 %v3212, %v3162
  %v3242 = vadd.f32 %v3216, %v3164
  %v3243 = vadd.f32 %v3212, %v3168
  %v3244 = vadd.f32 %v3216, %v3170
  %v3245 = vadd.f32 %v3212, %v3172
  %v3246 = vadd.f32 %v3216, %v3174
  %v3247 = vadd.f32 %v3212, %v3178
  %v3248 = vadd.f32 %v3216, %v3180
  %v3249 = vadd.f32 %v3212, %v3182
  %v3250 = vadd.f32 %v3216, %v3184
  %v3251 = vadd.f32 %v3212, %v3188
  %v3252 = vadd.f32 %v3216, %v3190
  %v3253 = vadd.f32 %v3212, %v3192
  %v3254 = vadd.f32 %v3216, %v3194
  %s3255 = scalar_lea.vmem %s3, 256
  %v3256 = vld [vmem:[%s3255] sm:$0xff]
  %v3257 = vld [vmem:[%s3255 + $0x8] sm:$0xff]
  %v3258 = vld [vmem:[%s3255 + $0x10] sm:$0xff]
  %v3259 = vld [vmem:[%s3255 + $0x18] sm:$0xff]
  %v3260 = vld [vmem:[%s3255 + $0x20] sm:$0xff]
  %v3261 = vld [vmem:[%s3255 + $0x28] sm:$0xff]
  %v3262 = vld [vmem:[%s3255 + $0x30] sm:$0xff]
  %v3263 = vld [vmem:[%s3255 + $0x38] sm:$0xff]
  %v3264 = vld [vmem:[%s3255 + $0x40] sm:$0xff]
  %v3265 = vld [vmem:[%s3255 + $0x48] sm:$0xff]
  %v3266 = vld [vmem:[%s3255 + $0x50] sm:$0xff]
  %v3267 = vld [vmem:[%s3255 + $0x58] sm:$0xff]
  %v3268 = vld [vmem:[%s3255 + $0x60] sm:$0xff]
  %v3269 = vld [vmem:[%s3255 + $0x68] sm:$0xff]
  %v3270 = vld [vmem:[%s3255 + $0x70] sm:$0xff]
  %v3271 = vld [vmem:[%s3255 + $0x78] sm:$0xff]
  %v3272 = vld [vmem:[%s3255 + $0x80] sm:$0xff]
  %v3273 = vld [vmem:[%s3255 + $0x88] sm:$0xff]
  %v3274 = vld [vmem:[%s3255 + $0x90] sm:$0xff]
  %v3275 = vld [vmem:[%s3255 + $0x98] sm:$0xff]
  %v3276 = vld [vmem:[%s3255 + $0xa0] sm:$0xff]
  %v3277 = vld [vmem:[%s3255 + $0xa8] sm:$0xff]
  %v3278 = vld [vmem:[%s3255 + $0xb0] sm:$0xff]
  %v3279 = vld [vmem:[%s3255 + $0xb8] sm:$0xff]
  %v3280 = vld [vmem:[%s3255 + $0xc0] sm:$0xff]
  %v3281 = vld [vmem:[%s3255 + $0xc8] sm:$0xff]
  %v3282 = vld [vmem:[%s3255 + $0xd0] sm:$0xff]
  %v3283 = vld [vmem:[%s3255 + $0xd8] sm:$0xff]
  %v3284 = vld [vmem:[%s3255 + $0xe0] sm:$0xff]
  %v3285 = vld [vmem:[%s3255 + $0xe8] sm:$0xff]
  %v3286 = vld [vmem:[%s3255 + $0xf0] sm:$0xff]
  %v3287 = vld [vmem:[%s3255 + $0xf8] sm:$0xff]
  %v3320 = vunpack.c.l.b16 %v3256
  %v3321 = vunpack.c.h.b16 %v3256
  %v3322 = vunpack.c.l.b16 %v3257
  %v3323 = vunpack.c.h.b16 %v3257
  %v3324 = vunpack.c.l.b16 %v3258
  %v3325 = vunpack.c.h.b16 %v3258
  %v3326 = vunpack.c.l.b16 %v3259
  %v3327 = vunpack.c.h.b16 %v3259
  %v3328 = vunpack.c.l.b16 %v3260
  %v3329 = vunpack.c.h.b16 %v3260
  %v3330 = vunpack.c.l.b16 %v3261
  %v3331 = vunpack.c.h.b16 %v3261
  %v3332 = vunpack.c.l.b16 %v3262
  %v3333 = vunpack.c.h.b16 %v3262
  %v3334 = vunpack.c.l.b16 %v3263
  %v3335 = vunpack.c.h.b16 %v3263
  %v3336 = vunpack.c.l.b16 %v3264
  %v3337 = vunpack.c.h.b16 %v3264
  %v3338 = vunpack.c.l.b16 %v3265
  %v3339 = vunpack.c.h.b16 %v3265
  %v3340 = vunpack.c.l.b16 %v3266
  %v3341 = vunpack.c.h.b16 %v3266
  %v3342 = vunpack.c.l.b16 %v3267
  %v3343 = vunpack.c.h.b16 %v3267
  %v3344 = vunpack.c.l.b16 %v3268
  %v3345 = vunpack.c.h.b16 %v3268
  %v3346 = vunpack.c.l.b16 %v3269
  %v3347 = vunpack.c.h.b16 %v3269
  %v3348 = vunpack.c.l.b16 %v3270
  %v3349 = vunpack.c.h.b16 %v3270
  %v3350 = vunpack.c.l.b16 %v3271
  %v3351 = vunpack.c.h.b16 %v3271
  %v3352 = vunpack.c.l.b16 %v3272
  %v3353 = vunpack.c.h.b16 %v3272
  %v3354 = vunpack.c.l.b16 %v3273
  %v3355 = vunpack.c.h.b16 %v3273
  %v3356 = vunpack.c.l.b16 %v3274
  %v3357 = vunpack.c.h.b16 %v3274
  %v3358 = vunpack.c.l.b16 %v3275
  %v3359 = vunpack.c.h.b16 %v3275
  %v3360 = vunpack.c.l.b16 %v3276
  %v3361 = vunpack.c.h.b16 %v3276
  %v3362 = vunpack.c.l.b16 %v3277
  %v3363 = vunpack.c.h.b16 %v3277
  %v3364 = vunpack.c.l.b16 %v3278
  %v3365 = vunpack.c.h.b16 %v3278
  %v3366 = vunpack.c.l.b16 %v3279
  %v3367 = vunpack.c.h.b16 %v3279
  %v3368 = vunpack.c.l.b16 %v3280
  %v3369 = vunpack.c.h.b16 %v3280
  %v3370 = vunpack.c.l.b16 %v3281
  %v3371 = vunpack.c.h.b16 %v3281
  %v3372 = vunpack.c.l.b16 %v3282
  %v3373 = vunpack.c.h.b16 %v3282
  %v3374 = vunpack.c.l.b16 %v3283
  %v3375 = vunpack.c.h.b16 %v3283
  %v3376 = vunpack.c.l.b16 %v3284
  %v3377 = vunpack.c.h.b16 %v3284
  %v3378 = vunpack.c.l.b16 %v3285
  %v3379 = vunpack.c.h.b16 %v3285
  %v3380 = vunpack.c.l.b16 %v3286
  %v3381 = vunpack.c.h.b16 %v3286
  %v3382 = vunpack.c.l.b16 %v3287
  %v3383 = vunpack.c.h.b16 %v3287
  %v3384 = vpack.c.b16 %v3322, %v3320
  %v3385 = vpack.c.b16 %v3323, %v3321
  %v3386 = vpack.c.b16 %v3326, %v3324
  %v3387 = vpack.c.b16 %v3327, %v3325
  %v3388 = vpack.c.b16 %v3330, %v3328
  %v3389 = vpack.c.b16 %v3331, %v3329
  %v3390 = vpack.c.b16 %v3334, %v3332
  %v3391 = vpack.c.b16 %v3335, %v3333
  %v3392 = vpack.c.b16 %v3338, %v3336
  %v3393 = vpack.c.b16 %v3339, %v3337
  %v3394 = vpack.c.b16 %v3342, %v3340
  %v3395 = vpack.c.b16 %v3343, %v3341
  %v3396 = vpack.c.b16 %v3346, %v3344
  %v3397 = vpack.c.b16 %v3347, %v3345
  %v3398 = vpack.c.b16 %v3350, %v3348
  %v3399 = vpack.c.b16 %v3351, %v3349
  %v3400 = vpack.c.b16 %v3354, %v3352
  %v3401 = vpack.c.b16 %v3355, %v3353
  %v3402 = vpack.c.b16 %v3358, %v3356
  %v3403 = vpack.c.b16 %v3359, %v3357
  %v3404 = vpack.c.b16 %v3362, %v3360
  %v3405 = vpack.c.b16 %v3363, %v3361
  %v3406 = vpack.c.b16 %v3366, %v3364
  %v3407 = vpack.c.b16 %v3367, %v3365
  %v3408 = vpack.c.b16 %v3370, %v3368
  %v3409 = vpack.c.b16 %v3371, %v3369
  %v3410 = vpack.c.b16 %v3374, %v3372
  %v3411 = vpack.c.b16 %v3375, %v3373
  %v3412 = vpack.c.b16 %v3378, %v3376
  %v3413 = vpack.c.b16 %v3379, %v3377
  %v3414 = vpack.c.b16 %v3382, %v3380
  %v3415 = vpack.c.b16 %v3383, %v3381
  %3448 = vmatprep.subr.bf16.mxu0 %v3399
  %3449 = vmatpush1.bf16.msra.mxu0 %v3398
  %3450 = vmatprep.subr.bf16.mxu0 %v3397
  %3451 = vmatpush1.bf16.msra.mxu0 %v3396
  %3452 = vmatprep.subr.bf16.mxu0 %v3395
  %3453 = vmatpush1.bf16.msra.mxu0 %v3394
  %3454 = vmatprep.subr.bf16.mxu0 %v3393
  %3455 = vmatpush1.bf16.msra.mxu0 %v3392
  %3456 = vmatprep.subr.bf16.mxu0 %v3391
  %3457 = vmatpush1.bf16.msra.mxu0 %v3390
  %3458 = vmatprep.subr.bf16.mxu0 %v3389
  %3459 = vmatpush1.bf16.msra.mxu0 %v3388
  %3460 = vmatprep.subr.bf16.mxu0 %v3387
  %3461 = vmatpush1.bf16.msra.mxu0 %v3386
  %3462 = vmatprep.subr.bf16.mxu0 %v3385
  %3463 = vmatpush1.bf16.msra.mxu0 %v3384
  %3464 = vmatprep.subr.bf16.mxu0 %v3415
  %3465 = vmatpush2.bf16.msra.mxu0 %v3414
  %3466 = vmatprep.subr.bf16.mxu0 %v3413
  %3467 = vmatpush2.bf16.msra.mxu0 %v3412
  %3468 = vmatprep.subr.bf16.mxu0 %v3411
  %3469 = vmatpush2.bf16.msra.mxu0 %v3410
  %3470 = vmatprep.subr.bf16.mxu0 %v3409
  %3471 = vmatpush2.bf16.msra.mxu0 %v3408
  %3472 = vmatprep.subr.bf16.mxu0 %v3407
  %3473 = vmatpush2.bf16.msra.mxu0 %v3406
  %3474 = vmatprep.subr.bf16.mxu0 %v3405
  %3475 = vmatpush2.bf16.msra.mxu0 %v3404
  %3476 = vmatprep.subr.bf16.mxu0 %v3403
  %3477 = vmatpush2.bf16.msra.mxu0 %v3402
  %3478 = vmatprep.subr.bf16.mxu0 %v3401
  %3479 = vmatpush2.bf16.msra.mxu0 %v3400
  %3480 = vmatprep.mubr.bf16.mxu0 %v2505
  %3481 = vmatmul.mubr.bf16.gmra.mxu0 %v2504
  %v3482 = vpop.f32.mrf.mxu0
  %v3483 = vadd.f32 0.0, %v3482
  %v3484 = vpop.f32.mrf.mxu0
  %v3485 = vadd.f32 0.0, %v3484
  %v3486 = vpop.f32.mrf.mxu0
  %v3487 = vadd.f32 0.0, %v3486
  %v3488 = vpop.f32.mrf.mxu0
  %v3489 = vadd.f32 0.0, %v3488
  %3490 = vmatprep.mubr.bf16.mxu0 %v2539
  %3491 = vmatmul.mubr.bf16.gmra.mxu0 %v2538
  %v3492 = vpop.f32.mrf.mxu0
  %v3493 = vadd.f32 0.0, %v3492
  %v3494 = vpop.f32.mrf.mxu0
  %v3495 = vadd.f32 0.0, %v3494
  %v3496 = vpop.f32.mrf.mxu0
  %v3497 = vadd.f32 0.0, %v3496
  %v3498 = vpop.f32.mrf.mxu0
  %v3499 = vadd.f32 0.0, %v3498
  %3500 = vmatprep.mubr.bf16.mxu0 %v2573
  %3501 = vmatmul.mubr.bf16.gmra.mxu0 %v2572
  %v3502 = vpop.f32.mrf.mxu0
  %v3503 = vadd.f32 0.0, %v3502
  %v3504 = vpop.f32.mrf.mxu0
  %v3505 = vadd.f32 0.0, %v3504
  %v3506 = vpop.f32.mrf.mxu0
  %v3507 = vadd.f32 0.0, %v3506
  %v3508 = vpop.f32.mrf.mxu0
  %v3509 = vadd.f32 0.0, %v3508
  %3510 = vmatprep.mubr.bf16.mxu0 %v2607
  %3511 = vmatmul.mubr.bf16.gmra.mxu0 %v2606
  %v3512 = vpop.f32.mrf.mxu0
  %v3513 = vadd.f32 0.0, %v3512
  %v3514 = vpop.f32.mrf.mxu0
  %v3515 = vadd.f32 0.0, %v3514
  %v3516 = vpop.f32.mrf.mxu0
  %v3517 = vadd.f32 0.0, %v3516
  %v3518 = vpop.f32.mrf.mxu0
  %v3519 = vadd.f32 0.0, %v3518
  %3520 = vmatprep.mubr.bf16.mxu0 %v2641
  %3521 = vmatmul.mubr.bf16.gmra.mxu0 %v2640
  %v3522 = vpop.f32.mrf.mxu0
  %v3523 = vadd.f32 0.0, %v3522
  %v3524 = vpop.f32.mrf.mxu0
  %v3525 = vadd.f32 0.0, %v3524
  %v3526 = vpop.f32.mrf.mxu0
  %v3527 = vadd.f32 0.0, %v3526
  %v3528 = vpop.f32.mrf.mxu0
  %v3529 = vadd.f32 0.0, %v3528
  %3530 = vmatprep.mubr.bf16.mxu0 %v2675
  %3531 = vmatmul.mubr.bf16.gmra.mxu0 %v2674
  %v3532 = vpop.f32.mrf.mxu0
  %v3533 = vadd.f32 0.0, %v3532
  %v3534 = vpop.f32.mrf.mxu0
  %v3535 = vadd.f32 0.0, %v3534
  %v3536 = vpop.f32.mrf.mxu0
  %v3537 = vadd.f32 0.0, %v3536
  %v3538 = vpop.f32.mrf.mxu0
  %v3539 = vadd.f32 0.0, %v3538
  %3540 = vmatprep.mubr.bf16.mxu0 %v2709
  %3541 = vmatmul.mubr.bf16.gmra.mxu0 %v2708
  %v3542 = vpop.f32.mrf.mxu0
  %v3543 = vadd.f32 0.0, %v3542
  %v3544 = vpop.f32.mrf.mxu0
  %v3545 = vadd.f32 0.0, %v3544
  %v3546 = vpop.f32.mrf.mxu0
  %v3547 = vadd.f32 0.0, %v3546
  %v3548 = vpop.f32.mrf.mxu0
  %v3549 = vadd.f32 0.0, %v3548
  %3550 = vmatprep.mubr.bf16.mxu0 %v2743
  %3551 = vmatmul.mubr.bf16.gmra.mxu0 %v2742
  %v3552 = vpop.f32.mrf.mxu0
  %v3553 = vadd.f32 0.0, %v3552
  %v3554 = vpop.f32.mrf.mxu0
  %v3555 = vadd.f32 0.0, %v3554
  %v3556 = vpop.f32.mrf.mxu0
  %v3557 = vadd.f32 0.0, %v3556
  %v3558 = vpop.f32.mrf.mxu0
  %v3559 = vadd.f32 0.0, %v3558
  %3560 = vmatprep.mubr.bf16.mxu0 %v2777
  %3561 = vmatmul.mubr.bf16.gmra.mxu0 %v2776
  %v3562 = vpop.f32.mrf.mxu0
  %v3563 = vadd.f32 0.0, %v3562
  %v3564 = vpop.f32.mrf.mxu0
  %v3565 = vadd.f32 0.0, %v3564
  %v3566 = vpop.f32.mrf.mxu0
  %v3567 = vadd.f32 0.0, %v3566
  %v3568 = vpop.f32.mrf.mxu0
  %v3569 = vadd.f32 0.0, %v3568
  %3570 = vmatprep.mubr.bf16.mxu0 %v2811
  %3571 = vmatmul.mubr.bf16.gmra.mxu0 %v2810
  %v3572 = vpop.f32.mrf.mxu0
  %v3573 = vpop.f32.mrf.mxu0
  %v3574 = vpop.f32.mrf.mxu0
  %v3575 = vpop.f32.mrf.mxu0
  %3576 = vmatprep.mubr.bf16.mxu0 %v2845
  %3577 = vmatmul.mubr.bf16.gmra.mxu0 %v2844
  %v3578 = vpop.f32.mrf.mxu0
  %v3579 = vpop.f32.mrf.mxu0
  %v3580 = vpop.f32.mrf.mxu0
  %v3581 = vpop.f32.mrf.mxu0
  %3582 = vdwg.mxu0
  %v3583 = vadd.f32 %v3219, %v3483
  %v3584 = vadd.f32 %v3220, %v3485
  %v3585 = vadd.f32 %v3221, %v3487
  %v3586 = vadd.f32 %v3222, %v3489
  %v3587 = vadd.f32 %v3223, %v3493
  %v3588 = vadd.f32 %v3224, %v3495
  %v3589 = vadd.f32 %v3225, %v3497
  %v3590 = vadd.f32 %v3226, %v3499
  %v3591 = vadd.f32 %v3227, %v3503
  %v3592 = vadd.f32 %v3228, %v3505
  %v3593 = vadd.f32 %v3229, %v3507
  %v3594 = vadd.f32 %v3230, %v3509
  %v3595 = vadd.f32 %v3231, %v3513
  %v3596 = vadd.f32 %v3232, %v3515
  %v3597 = vadd.f32 %v3233, %v3517
  %v3598 = vadd.f32 %v3234, %v3519
  %v3599 = vadd.f32 %v3235, %v3523
  %v3600 = vadd.f32 %v3236, %v3525
  %v3601 = vadd.f32 %v3237, %v3527
  %v3602 = vadd.f32 %v3238, %v3529
  %v3603 = vadd.f32 %v3239, %v3533
  %v3604 = vadd.f32 %v3240, %v3535
  %v3605 = vadd.f32 %v3241, %v3537
  %v3606 = vadd.f32 %v3242, %v3539
  %v3607 = vadd.f32 %v3243, %v3543
  %v3608 = vadd.f32 %v3244, %v3545
  %v3609 = vadd.f32 %v3245, %v3547
  %v3610 = vadd.f32 %v3246, %v3549
  %v3611 = vadd.f32 %v3247, %v3553
  %v3612 = vadd.f32 %v3248, %v3555
  %v3613 = vadd.f32 %v3249, %v3557
  %v3614 = vadd.f32 %v3250, %v3559
  %v3615 = vadd.f32 %v3251, %v3563
  %v3616 = vadd.f32 %v3252, %v3565
  %v3617 = vadd.f32 %v3253, %v3567
  %v3618 = vadd.f32 %v3254, %v3569
  %s3619 = scalar_lea.vmem %s3, 512
  %v3620 = vld [vmem:[%s3619] sm:$0xff]
  %v3621 = vld [vmem:[%s3619 + $0x8] sm:$0xff]
  %v3622 = vld [vmem:[%s3619 + $0x10] sm:$0xff]
  %v3623 = vld [vmem:[%s3619 + $0x18] sm:$0xff]
  %v3624 = vld [vmem:[%s3619 + $0x20] sm:$0xff]
  %v3625 = vld [vmem:[%s3619 + $0x28] sm:$0xff]
  %v3626 = vld [vmem:[%s3619 + $0x30] sm:$0xff]
  %v3627 = vld [vmem:[%s3619 + $0x38] sm:$0xff]
  %v3628 = vld [vmem:[%s3619 + $0x40] sm:$0xff]
  %v3629 = vld [vmem:[%s3619 + $0x48] sm:$0xff]
  %v3630 = vld [vmem:[%s3619 + $0x50] sm:$0xff]
  %v3631 = vld [vmem:[%s3619 + $0x58] sm:$0xff]
  %v3632 = vld [vmem:[%s3619 + $0x60] sm:$0xff]
  %v3633 = vld [vmem:[%s3619 + $0x68] sm:$0xff]
  %v3634 = vld [vmem:[%s3619 + $0x70] sm:$0xff]
  %v3635 = vld [vmem:[%s3619 + $0x78] sm:$0xff]
  %v3636 = vld [vmem:[%s3619 + $0x80] sm:$0xff]
  %v3637 = vld [vmem:[%s3619 + $0x88] sm:$0xff]
  %v3638 = vld [vmem:[%s3619 + $0x90] sm:$0xff]
  %v3639 = vld [vmem:[%s3619 + $0x98] sm:$0xff]
  %v3640 = vld [vmem:[%s3619 + $0xa0] sm:$0xff]
  %v3641 = vld [vmem:[%s3619 + $0xa8] sm:$0xff]
  %v3642 = vld [vmem:[%s3619 + $0xb0] sm:$0xff]
  %v3643 = vld [vmem:[%s3619 + $0xb8] sm:$0xff]
  %v3644 = vld [vmem:[%s3619 + $0xc0] sm:$0xff]
  %v3645 = vld [vmem:[%s3619 + $0xc8] sm:$0xff]
  %v3646 = vld [vmem:[%s3619 + $0xd0] sm:$0xff]
  %v3647 = vld [vmem:[%s3619 + $0xd8] sm:$0xff]
  %v3648 = vld [vmem:[%s3619 + $0xe0] sm:$0xff]
  %v3649 = vld [vmem:[%s3619 + $0xe8] sm:$0xff]
  %v3650 = vld [vmem:[%s3619 + $0xf0] sm:$0xff]
  %v3651 = vld [vmem:[%s3619 + $0xf8] sm:$0xff]
  %v3684 = vunpack.c.l.b16 %v3620
  %v3685 = vunpack.c.h.b16 %v3620
  %v3686 = vunpack.c.l.b16 %v3621
  %v3687 = vunpack.c.h.b16 %v3621
  %v3688 = vunpack.c.l.b16 %v3622
  %v3689 = vunpack.c.h.b16 %v3622
  %v3690 = vunpack.c.l.b16 %v3623
  %v3691 = vunpack.c.h.b16 %v3623
  %v3692 = vunpack.c.l.b16 %v3624
  %v3693 = vunpack.c.h.b16 %v3624
  %v3694 = vunpack.c.l.b16 %v3625
  %v3695 = vunpack.c.h.b16 %v3625
  %v3696 = vunpack.c.l.b16 %v3626
  %v3697 = vunpack.c.h.b16 %v3626
  %v3698 = vunpack.c.l.b16 %v3627
  %v3699 = vunpack.c.h.b16 %v3627
  %v3700 = vunpack.c.l.b16 %v3628
  %v3701 = vunpack.c.h.b16 %v3628
  %v3702 = vunpack.c.l.b16 %v3629
  %v3703 = vunpack.c.h.b16 %v3629
  %v3704 = vunpack.c.l.b16 %v3630
  %v3705 = vunpack.c.h.b16 %v3630
  %v3706 = vunpack.c.l.b16 %v3631
  %v3707 = vunpack.c.h.b16 %v3631
  %v3708 = vunpack.c.l.b16 %v3632
  %v3709 = vunpack.c.h.b16 %v3632
  %v3710 = vunpack.c.l.b16 %v3633
  %v3711 = vunpack.c.h.b16 %v3633
  %v3712 = vunpack.c.l.b16 %v3634
  %v3713 = vunpack.c.h.b16 %v3634
  %v3714 = vunpack.c.l.b16 %v3635
  %v3715 = vunpack.c.h.b16 %v3635
  %v3716 = vunpack.c.l.b16 %v3636
  %v3717 = vunpack.c.h.b16 %v3636
  %v3718 = vunpack.c.l.b16 %v3637
  %v3719 = vunpack.c.h.b16 %v3637
  %v3720 = vunpack.c.l.b16 %v3638
  %v3721 = vunpack.c.h.b16 %v3638
  %v3722 = vunpack.c.l.b16 %v3639
  %v3723 = vunpack.c.h.b16 %v3639
  %v3724 = vunpack.c.l.b16 %v3640
  %v3725 = vunpack.c.h.b16 %v3640
  %v3726 = vunpack.c.l.b16 %v3641
  %v3727 = vunpack.c.h.b16 %v3641
  %v3728 = vunpack.c.l.b16 %v3642
  %v3729 = vunpack.c.h.b16 %v3642
  %v3730 = vunpack.c.l.b16 %v3643
  %v3731 = vunpack.c.h.b16 %v3643
  %v3732 = vunpack.c.l.b16 %v3644
  %v3733 = vunpack.c.h.b16 %v3644
  %v3734 = vunpack.c.l.b16 %v3645
  %v3735 = vunpack.c.h.b16 %v3645
  %v3736 = vunpack.c.l.b16 %v3646
  %v3737 = vunpack.c.h.b16 %v3646
  %v3738 = vunpack.c.l.b16 %v3647
  %v3739 = vunpack.c.h.b16 %v3647
  %v3740 = vunpack.c.l.b16 %v3648
  %v3741 = vunpack.c.h.b16 %v3648
  %v3742 = vunpack.c.l.b16 %v3649
  %v3743 = vunpack.c.h.b16 %v3649
  %v3744 = vunpack.c.l.b16 %v3650
  %v3745 = vunpack.c.h.b16 %v3650
  %v3746 = vunpack.c.l.b16 %v3651
  %v3747 = vunpack.c.h.b16 %v3651
  %v3748 = vpack.c.b16 %v3686, %v3684
  %v3749 = vpack.c.b16 %v3687, %v3685
  %v3750 = vpack.c.b16 %v3690, %v3688
  %v3751 = vpack.c.b16 %v3691, %v3689
  %v3752 = vpack.c.b16 %v3694, %v3692
  %v3753 = vpack.c.b16 %v3695, %v3693
  %v3754 = vpack.c.b16 %v3698, %v3696
  %v3755 = vpack.c.b16 %v3699, %v3697
  %v3756 = vpack.c.b16 %v3702, %v3700
  %v3757 = vpack.c.b16 %v3703, %v3701
  %v3758 = vpack.c.b16 %v3706, %v3704
  %v3759 = vpack.c.b16 %v3707, %v3705
  %v3760 = vpack.c.b16 %v3710, %v3708
  %v3761 = vpack.c.b16 %v3711, %v3709
  %v3762 = vpack.c.b16 %v3714, %v3712
  %v3763 = vpack.c.b16 %v3715, %v3713
  %v3764 = vpack.c.b16 %v3718, %v3716
  %v3765 = vpack.c.b16 %v3719, %v3717
  %v3766 = vpack.c.b16 %v3722, %v3720
  %v3767 = vpack.c.b16 %v3723, %v3721
  %v3768 = vpack.c.b16 %v3726, %v3724
  %v3769 = vpack.c.b16 %v3727, %v3725
  %v3770 = vpack.c.b16 %v3730, %v3728
  %v3771 = vpack.c.b16 %v3731, %v3729
  %v3772 = vpack.c.b16 %v3734, %v3732
  %v3773 = vpack.c.b16 %v3735, %v3733
  %v3774 = vpack.c.b16 %v3738, %v3736
  %v3775 = vpack.c.b16 %v3739, %v3737
  %v3776 = vpack.c.b16 %v3742, %v3740
  %v3777 = vpack.c.b16 %v3743, %v3741
  %v3778 = vpack.c.b16 %v3746, %v3744
  %v3779 = vpack.c.b16 %v3747, %v3745
  %3812 = vmatprep.subr.bf16.mxu0 %v3763
  %3813 = vmatpush1.bf16.msra.mxu0 %v3762
  %3814 = vmatprep.subr.bf16.mxu0 %v3761
  %3815 = vmatpush1.bf16.msra.mxu0 %v3760
  %3816 = vmatprep.subr.bf16.mxu0 %v3759
  %3817 = vmatpush1.bf16.msra.mxu0 %v3758
  %3818 = vmatprep.subr.bf16.mxu0 %v3757
  %3819 = vmatpush1.bf16.msra.mxu0 %v3756
  %3820 = vmatprep.subr.bf16.mxu0 %v3755
  %3821 = vmatpush1.bf16.msra.mxu0 %v3754
  %3822 = vmatprep.subr.bf16.mxu0 %v3753
  %3823 = vmatpush1.bf16.msra.mxu0 %v3752
  %3824 = vmatprep.subr.bf16.mxu0 %v3751
  %3825 = vmatpush1.bf16.msra.mxu0 %v3750
  %3826 = vmatprep.subr.bf16.mxu0 %v3749
  %3827 = vmatpush1.bf16.msra.mxu0 %v3748
  %3828 = vmatprep.subr.bf16.mxu0 %v3779
  %3829 = vmatpush2.bf16.msra.mxu0 %v3778
  %3830 = vmatprep.subr.bf16.mxu0 %v3777
  %3831 = vmatpush2.bf16.msra.mxu0 %v3776
  %3832 = vmatprep.subr.bf16.mxu0 %v3775
  %3833 = vmatpush2.bf16.msra.mxu0 %v3774
  %3834 = vmatprep.subr.bf16.mxu0 %v3773
  %3835 = vmatpush2.bf16.msra.mxu0 %v3772
  %3836 = vmatprep.subr.bf16.mxu0 %v3771
  %3837 = vmatpush2.bf16.msra.mxu0 %v3770
  %3838 = vmatprep.subr.bf16.mxu0 %v3769
  %3839 = vmatpush2.bf16.msra.mxu0 %v3768
  %3840 = vmatprep.subr.bf16.mxu0 %v3767
  %3841 = vmatpush2.bf16.msra.mxu0 %v3766
  %3842 = vmatprep.subr.bf16.mxu0 %v3765
  %3843 = vmatpush2.bf16.msra.mxu0 %v3764
  %3844 = vmatprep.mubr.bf16.mxu0 %v2539
  %3845 = vmatmul.mubr.bf16.gmra.mxu0 %v2538
  %v3846 = vpop.f32.mrf.mxu0
  %v3847 = vadd.f32 0.0, %v3846
  %v3848 = vpop.f32.mrf.mxu0
  %v3849 = vadd.f32 0.0, %v3848
  %v3850 = vpop.f32.mrf.mxu0
  %v3851 = vadd.f32 0.0, %v3850
  %v3852 = vpop.f32.mrf.mxu0
  %v3853 = vadd.f32 0.0, %v3852
  %3854 = vmatprep.mubr.bf16.mxu0 %v2573
  %3855 = vmatmul.mubr.bf16.gmra.mxu0 %v2572
  %v3856 = vpop.f32.mrf.mxu0
  %v3857 = vadd.f32 0.0, %v3856
  %v3858 = vpop.f32.mrf.mxu0
  %v3859 = vadd.f32 0.0, %v3858
  %v3860 = vpop.f32.mrf.mxu0
  %v3861 = vadd.f32 0.0, %v3860
  %v3862 = vpop.f32.mrf.mxu0
  %v3863 = vadd.f32 0.0, %v3862
  %3864 = vmatprep.mubr.bf16.mxu0 %v2607
  %3865 = vmatmul.mubr.bf16.gmra.mxu0 %v2606
  %v3866 = vpop.f32.mrf.mxu0
  %v3867 = vadd.f32 0.0, %v3866
  %v3868 = vpop.f32.mrf.mxu0
  %v3869 = vadd.f32 0.0, %v3868
  %v3870 = vpop.f32.mrf.mxu0
  %v3871 = vadd.f32 0.0, %v3870
  %v3872 = vpop.f32.mrf.mxu0
  %v3873 = vadd.f32 0.0, %v3872
  %3874 = vmatprep.mubr.bf16.mxu0 %v2641
  %3875 = vmatmul.mubr.bf16.gmra.mxu0 %v2640
  %v3876 = vpop.f32.mrf.mxu0
  %v3877 = vadd.f32 0.0, %v3876
  %v3878 = vpop.f32.mrf.mxu0
  %v3879 = vadd.f32 0.0, %v3878
  %v3880 = vpop.f32.mrf.mxu0
  %v3881 = vadd.f32 0.0, %v3880
  %v3882 = vpop.f32.mrf.mxu0
  %v3883 = vadd.f32 0.0, %v3882
  %3884 = vmatprep.mubr.bf16.mxu0 %v2675
  %3885 = vmatmul.mubr.bf16.gmra.mxu0 %v2674
  %v3886 = vpop.f32.mrf.mxu0
  %v3887 = vadd.f32 0.0, %v3886
  %v3888 = vpop.f32.mrf.mxu0
  %v3889 = vadd.f32 0.0, %v3888
  %v3890 = vpop.f32.mrf.mxu0
  %v3891 = vadd.f32 0.0, %v3890
  %v3892 = vpop.f32.mrf.mxu0
  %v3893 = vadd.f32 0.0, %v3892
  %3894 = vmatprep.mubr.bf16.mxu0 %v2709
  %3895 = vmatmul.mubr.bf16.gmra.mxu0 %v2708
  %v3896 = vpop.f32.mrf.mxu0
  %v3897 = vadd.f32 0.0, %v3896
  %v3898 = vpop.f32.mrf.mxu0
  %v3899 = vadd.f32 0.0, %v3898
  %v3900 = vpop.f32.mrf.mxu0
  %v3901 = vadd.f32 0.0, %v3900
  %v3902 = vpop.f32.mrf.mxu0
  %v3903 = vadd.f32 0.0, %v3902
  %3904 = vmatprep.mubr.bf16.mxu0 %v2743
  %3905 = vmatmul.mubr.bf16.gmra.mxu0 %v2742
  %v3906 = vpop.f32.mrf.mxu0
  %v3907 = vadd.f32 0.0, %v3906
  %v3908 = vpop.f32.mrf.mxu0
  %v3909 = vadd.f32 0.0, %v3908
  %v3910 = vpop.f32.mrf.mxu0
  %v3911 = vadd.f32 0.0, %v3910
  %v3912 = vpop.f32.mrf.mxu0
  %v3913 = vadd.f32 0.0, %v3912
  %3914 = vmatprep.mubr.bf16.mxu0 %v2777
  %3915 = vmatmul.mubr.bf16.gmra.mxu0 %v2776
  %v3916 = vpop.f32.mrf.mxu0
  %v3917 = vadd.f32 0.0, %v3916
  %v3918 = vpop.f32.mrf.mxu0
  %v3919 = vadd.f32 0.0, %v3918
  %v3920 = vpop.f32.mrf.mxu0
  %v3921 = vadd.f32 0.0, %v3920
  %v3922 = vpop.f32.mrf.mxu0
  %v3923 = vadd.f32 0.0, %v3922
  %3924 = vmatprep.mubr.bf16.mxu0 %v2811
  %3925 = vmatmul.mubr.bf16.gmra.mxu0 %v2810
  %v3926 = vpop.f32.mrf.mxu0
  %v3927 = vadd.f32 0.0, %v3926
  %v3928 = vpop.f32.mrf.mxu0
  %v3929 = vadd.f32 0.0, %v3928
  %v3930 = vpop.f32.mrf.mxu0
  %v3931 = vadd.f32 0.0, %v3930
  %v3932 = vpop.f32.mrf.mxu0
  %v3933 = vadd.f32 0.0, %v3932
  %3934 = vmatprep.mubr.bf16.mxu0 %v2845
  %3935 = vmatmul.mubr.bf16.gmra.mxu0 %v2844
  %v3936 = vpop.f32.mrf.mxu0
  %v3937 = vpop.f32.mrf.mxu0
  %v3938 = vpop.f32.mrf.mxu0
  %v3939 = vpop.f32.mrf.mxu0
  %3940 = vmatprep.mubr.bf16.mxu0 %v2879
  %3941 = vmatmul.mubr.bf16.gmra.mxu0 %v2878
  %v3942 = vpop.f32.mrf.mxu0
  %v3943 = vpop.f32.mrf.mxu0
  %v3944 = vpop.f32.mrf.mxu0
  %v3945 = vpop.f32.mrf.mxu0
  %3946 = vdwg.mxu0
  %v3947 = vadd.f32 %v3583, %v3847
  %v3948 = vadd.f32 %v3584, %v3849
  %v3949 = vadd.f32 %v3585, %v3851
  %v3950 = vadd.f32 %v3586, %v3853
  %v3951 = vadd.f32 %v3587, %v3857
  %v3952 = vadd.f32 %v3588, %v3859
  %v3953 = vadd.f32 %v3589, %v3861
  %v3954 = vadd.f32 %v3590, %v3863
  %v3955 = vadd.f32 %v3591, %v3867
  %v3956 = vadd.f32 %v3592, %v3869
  %v3957 = vadd.f32 %v3593, %v3871
  %v3958 = vadd.f32 %v3594, %v3873
  %v3959 = vadd.f32 %v3595, %v3877
  %v3960 = vadd.f32 %v3596, %v3879
  %v3961 = vadd.f32 %v3597, %v3881
  %v3962 = vadd.f32 %v3598, %v3883
  %v3963 = vadd.f32 %v3599, %v3887
  %v3964 = vadd.f32 %v3600, %v3889
  %v3965 = vadd.f32 %v3601, %v3891
  %v3966 = vadd.f32 %v3602, %v3893
  %v3967 = vadd.f32 %v3603, %v3897
  %v3968 = vadd.f32 %v3604, %v3899
  %v3969 = vadd.f32 %v3605, %v3901
  %v3970 = vadd.f32 %v3606, %v3903
  %v3971 = vadd.f32 %v3607, %v3907
  %v3972 = vadd.f32 %v3608, %v3909
  %v3973 = vadd.f32 %v3609, %v3911
  %v3974 = vadd.f32 %v3610, %v3913
  %v3975 = vadd.f32 %v3611, %v3917
  %v3976 = vadd.f32 %v3612, %v3919
  %v3977 = vadd.f32 %v3613, %v3921
  %v3978 = vadd.f32 %v3614, %v3923
  %v3979 = vadd.f32 %v3615, %v3927
  %v3980 = vadd.f32 %v3616, %v3929
  %v3981 = vadd.f32 %v3617, %v3931
  %v3982 = vadd.f32 %v3618, %v3933
  %v3983 = vmax.f32 %v3947, 0.0
  %v3984 = vmax.f32 %v3948, 0.0
  %v3985 = vmax.f32 %v3949, 0.0
  %v3986 = vmax.f32 %v3950, 0.0
  %v3987 = vmax.f32 %v3951, 0.0
  %v3988 = vmax.f32 %v3952, 0.0
  %v3989 = vmax.f32 %v3953, 0.0
  %v3990 = vmax.f32 %v3954, 0.0
  %v3991 = vmax.f32 %v3955, 0.0
  %v3992 = vmax.f32 %v3956, 0.0
  %v3993 = vmax.f32 %v3957, 0.0
  %v3994 = vmax.f32 %v3958, 0.0
  %v3995 = vmax.f32 %v3959, 0.0
  %v3996 = vmax.f32 %v3960, 0.0
  %v3997 = vmax.f32 %v3961, 0.0
  %v3998 = vmax.f32 %v3962, 0.0
  %v3999 = vmax.f32 %v3963, 0.0
  %v4000 = vmax.f32 %v3964, 0.0
  %v4001 = vmax.f32 %v3965, 0.0
  %v4002 = vmax.f32 %v3966, 0.0
  %v4003 = vmax.f32 %v3967, 0.0
  %v4004 = vmax.f32 %v3968, 0.0
  %v4005 = vmax.f32 %v3969, 0.0
  %v4006 = vmax.f32 %v3970, 0.0
  %v4007 = vmax.f32 %v3971, 0.0
  %v4008 = vmax.f32 %v3972, 0.0
  %v4009 = vmax.f32 %v3973, 0.0
  %v4010 = vmax.f32 %v3974, 0.0
  %v4011 = vmax.f32 %v3975, 0.0
  %v4012 = vmax.f32 %v3976, 0.0
  %v4013 = vmax.f32 %v3977, 0.0
  %v4014 = vmax.f32 %v3978, 0.0
  %v4015 = vmax.f32 %v3979, 0.0
  %v4016 = vmax.f32 %v3980, 0.0
  %v4017 = vmax.f32 %v3981, 0.0
  %v4018 = vmax.f32 %v3982, 0.0
  %4037 = vrot.lane.b32.xlu0 %v3983, 64
  %v4038 = vpop.permute.xlu0 %4037
  %4039 = vrot.lane.b32.xlu0 %v3985, 64
  %v4040 = vpop.permute.xlu0 %4039
  %4041 = vrot.lane.b32.xlu0 %v3987, 64
  %v4042 = vpop.permute.xlu0 %4041
  %4043 = vrot.lane.b32.xlu0 %v3989, 64
  %v4044 = vpop.permute.xlu0 %4043
  %4045 = vrot.lane.b32.xlu0 %v3991, 64
  %v4046 = vpop.permute.xlu0 %4045
  %4047 = vrot.lane.b32.xlu0 %v3993, 64
  %v4048 = vpop.permute.xlu0 %4047
  %4049 = vrot.lane.b32.xlu0 %v3995, 64
  %v4050 = vpop.permute.xlu0 %4049
  %4051 = vrot.lane.b32.xlu0 %v3997, 64
  %v4052 = vpop.permute.xlu0 %4051
  %4053 = vrot.lane.b32.xlu0 %v3999, 64
  %v4054 = vpop.permute.xlu0 %4053
  %4055 = vrot.lane.b32.xlu0 %v4001, 64
  %v4056 = vpop.permute.xlu0 %4055
  %4057 = vrot.lane.b32.xlu0 %v4003, 64
  %v4058 = vpop.permute.xlu0 %4057
  %4059 = vrot.lane.b32.xlu0 %v4005, 64
  %v4060 = vpop.permute.xlu0 %4059
  %4061 = vrot.lane.b32.xlu0 %v4007, 64
  %v4062 = vpop.permute.xlu0 %4061
  %4063 = vrot.lane.b32.xlu0 %v4009, 64
  %v4064 = vpop.permute.xlu0 %4063
  %4065 = vrot.lane.b32.xlu0 %v4011, 64
  %v4066 = vpop.permute.xlu0 %4065
  %4067 = vrot.lane.b32.xlu0 %v4013, 64
  %v4068 = vpop.permute.xlu0 %4067
  %4069 = vrot.lane.b32.xlu0 %v4015, 64
  %v4070 = vpop.permute.xlu0 %4069
  %4071 = vrot.lane.b32.xlu0 %v4017, 64
  %v4072 = vpop.permute.xlu0 %4071
  %v4091 = vmax.f32 %v3983, %v4038
  %v4092 = vmax.f32 %v3985, %v4040
  %v4093 = vmax.f32 %v3987, %v4042
  %v4094 = vmax.f32 %v3989, %v4044
  %v4095 = vmax.f32 %v3991, %v4046
  %v4096 = vmax.f32 %v3993, %v4048
  %v4097 = vmax.f32 %v3995, %v4050
  %v4098 = vmax.f32 %v3997, %v4052
  %v4099 = vmax.f32 %v3999, %v4054
  %v4100 = vmax.f32 %v4001, %v4056
  %v4101 = vmax.f32 %v4003, %v4058
  %v4102 = vmax.f32 %v4005, %v4060
  %v4103 = vmax.f32 %v4007, %v4062
  %v4104 = vmax.f32 %v4009, %v4064
  %v4105 = vmax.f32 %v4011, %v4066
  %v4106 = vmax.f32 %v4013, %v4068
  %v4107 = vmax.f32 %v4015, %v4070
  %v4108 = vmax.f32 %v4017, %v4072
  %v4109 = vmax.f32 %v4091, %v3984
  %v4110 = vmax.f32 %v4092, %v3986
  %v4111 = vmax.f32 %v4093, %v3988
  %v4112 = vmax.f32 %v4094, %v3990
  %v4113 = vmax.f32 %v4095, %v3992
  %v4114 = vmax.f32 %v4096, %v3994
  %v4115 = vmax.f32 %v4097, %v3996
  %v4116 = vmax.f32 %v4098, %v3998
  %v4117 = vmax.f32 %v4099, %v4000
  %v4118 = vmax.f32 %v4100, %v4002
  %v4119 = vmax.f32 %v4101, %v4004
  %v4120 = vmax.f32 %v4102, %v4006
  %v4121 = vmax.f32 %v4103, %v4008
  %v4122 = vmax.f32 %v4104, %v4010
  %v4123 = vmax.f32 %v4105, %v4012
  %v4124 = vmax.f32 %v4106, %v4014
  %v4125 = vmax.f32 %v4107, %v4016
  %v4126 = vmax.f32 %v4108, %v4018
  %v4127 = vld [vmem:[%s6] sm:$0x1]
  %v4128 = vmax.f32 %v4109, %v4111
  %v4129 = vmax.f32 %v4110, %v4112
  %v4130 = vmax.f32 %v4128, %v4113
  %v4131 = vmax.f32 %v4129, %v4114
  %v4132 = vpack.c.bf16 %v4131, %v4130
  %v4133 = vld [vmem:[%s5] sm:$0xf]
  %v4134 = vld [vmem:[%s5 + $0x4] sm:$0xf]
  %v4135 = vld [vmem:[%s5 + $0x8] sm:$0xf]
  %v4136 = vld [vmem:[%s5 + $0xc] sm:$0xf]
  %v4137 = vld [vmem:[%s5 + $0x10] sm:$0xf]
  %v4138 = vld [vmem:[%s5 + $0x14] sm:$0xf]
  %v4139 = vld [vmem:[%s5 + $0x18] sm:$0xf]
  %v4140 = vld [vmem:[%s5 + $0x1c] sm:$0xf]
  %v4149 = vunpack.c.l.b16 %v4133
  %v4150 = vunpack.c.l.b16 %v4134
  %v4151 = vunpack.c.l.b16 %v4135
  %v4152 = vunpack.c.l.b16 %v4136
  %v4153 = vunpack.c.l.b16 %v4137
  %v4154 = vunpack.c.l.b16 %v4138
  %v4155 = vunpack.c.l.b16 %v4139
  %v4156 = vunpack.c.l.b16 %v4140
  %v4157 = vpack.c.b16 %v4150, %v4149
  %v4158 = vpack.c.b16 %v4152, %v4151
  %v4159 = vpack.c.b16 %v4154, %v4153
  %v4160 = vpack.c.b16 %v4156, %v4155
  %vm4165 = vcmask 523264
  %v4167 = vsel %vm4165, %v4132, 0
  %4169 = vmatprep.subr.bf16.mxu0 0
  %4170 = vmatpush1.bf16.msra.mxu0 0
  %4171 = vmatprep.subr.bf16.mxu0 0
  %4172 = vmatpush1.bf16.msra.mxu0 0
  %4173 = vmatprep.subr.bf16.mxu0 0
  %4174 = vmatpush1.bf16.msra.mxu0 0
  %4175 = vmatprep.subr.bf16.mxu0 0
  %4176 = vmatpush1.bf16.msra.mxu0 0
  %4177 = vmatprep.subr.bf16.mxu0 0
  %4178 = vmatpush1.bf16.msra.mxu0 %v4160
  %4179 = vmatprep.subr.bf16.mxu0 0
  %4180 = vmatpush1.bf16.msra.mxu0 %v4159
  %4181 = vmatprep.subr.bf16.mxu0 0
  %4182 = vmatpush1.bf16.msra.mxu0 %v4158
  %4183 = vmatprep.subr.bf16.mxu0 0
  %4184 = vmatpush1.bf16.msra.mxu0 %v4157
  %4185 = vmatprep.subr.bf16.mxu0 0
  %4186 = vmatpush2.bf16.msra.mxu0 0
  %4187 = vmatprep.subr.bf16.mxu0 0
  %4188 = vmatpush2.bf16.msra.mxu0 0
  %4189 = vmatprep.subr.bf16.mxu0 0
  %4190 = vmatpush2.bf16.msra.mxu0 0
  %4191 = vmatprep.subr.bf16.mxu0 0
  %4192 = vmatpush2.bf16.msra.mxu0 0
  %4193 = vmatprep.subr.bf16.mxu0 0
  %4194 = vmatpush2.bf16.msra.mxu0 0
  %4195 = vmatprep.subr.bf16.mxu0 0
  %4196 = vmatpush2.bf16.msra.mxu0 0
  %4197 = vmatprep.subr.bf16.mxu0 0
  %4198 = vmatpush2.bf16.msra.mxu0 0
  %4199 = vmatprep.subr.bf16.mxu0 0
  %4200 = vmatpush2.bf16.msra.mxu0 0
  %4201 = vmatprep.mubr.bf16.mxu0 0
  %4202 = vmatmul.mubr.bf16.gmra.mxu0 %v4167
  %v4203 = vpop.f32.mrf.mxu0
  %v4204 = vadd.f32 0.0, %v4203
  %v4205 = vpop.f32.mrf.mxu0
  %v4206 = vpop.f32.mrf.mxu0
  %v4207 = vadd.f32 0.0, %v4206
  %v4208 = vpop.f32.mrf.mxu0
  %4209 = vdwg.mxu0
  %v4211 = vlaneseq
  %v4212 = vshrl.u32 %v4211, 7
  %v4213 = vsub.s32 0, %v4212
  %v4214 = vrot.slane %v4127, %v4213
  %v4216 = vadd.f32 %v4214, %v4204
  %v4217 = vadd.f32 %v4214, %v4207
  %v4218 = vmax.f32 %v4115, %v4117
  %v4219 = vmax.f32 %v4116, %v4118
  %v4220 = vmax.f32 %v4218, %v4119
  %v4221 = vmax.f32 %v4219, %v4120
  %v4222 = vpack.c.bf16 %v4221, %v4220
  %s4223 = scalar_lea.vmem %s5, 32
  %v4224 = vld [vmem:[%s4223] sm:$0xf]
  %v4225 = vld [vmem:[%s4223 + $0x4] sm:$0xf]
  %v4226 = vld [vmem:[%s4223 + $0x8] sm:$0xf]
  %v4227 = vld [vmem:[%s4223 + $0xc] sm:$0xf]
  %v4228 = vld [vmem:[%s4223 + $0x10] sm:$0xf]
  %v4229 = vld [vmem:[%s4223 + $0x14] sm:$0xf]
  %v4230 = vld [vmem:[%s4223 + $0x18] sm:$0xf]
  %v4231 = vld [vmem:[%s4223 + $0x1c] sm:$0xf]
  %v4240 = vunpack.c.l.b16 %v4224
  %v4241 = vunpack.c.l.b16 %v4225
  %v4242 = vunpack.c.l.b16 %v4226
  %v4243 = vunpack.c.l.b16 %v4227
  %v4244 = vunpack.c.l.b16 %v4228
  %v4245 = vunpack.c.l.b16 %v4229
  %v4246 = vunpack.c.l.b16 %v4230
  %v4247 = vunpack.c.l.b16 %v4231
  %v4248 = vpack.c.b16 %v4241, %v4240
  %v4249 = vpack.c.b16 %v4243, %v4242
  %v4250 = vpack.c.b16 %v4245, %v4244
  %v4251 = vpack.c.b16 %v4247, %v4246
  %v4257 = vsel %vm4165, %v4222, 0
  %4259 = vmatprep.subr.bf16.mxu0 0
  %4260 = vmatpush1.bf16.msra.mxu0 0
  %4261 = vmatprep.subr.bf16.mxu0 0
  %4262 = vmatpush1.bf16.msra.mxu0 0
  %4263 = vmatprep.subr.bf16.mxu0 0
  %4264 = vmatpush1.bf16.msra.mxu0 0
  %4265 = vmatprep.subr.bf16.mxu0 0
  %4266 = vmatpush1.bf16.msra.mxu0 0
  %4267 = vmatprep.subr.bf16.mxu0 0
  %4268 = vmatpush1.bf16.msra.mxu0 %v4251
  %4269 = vmatprep.subr.bf16.mxu0 0
  %4270 = vmatpush1.bf16.msra.mxu0 %v4250
  %4271 = vmatprep.subr.bf16.mxu0 0
  %4272 = vmatpush1.bf16.msra.mxu0 %v4249
  %4273 = vmatprep.subr.bf16.mxu0 0
  %4274 = vmatpush1.bf16.msra.mxu0 %v4248
  %4275 = vmatprep.subr.bf16.mxu0 0
  %4276 = vmatpush2.bf16.msra.mxu0 0
  %4277 = vmatprep.subr.bf16.mxu0 0
  %4278 = vmatpush2.bf16.msra.mxu0 0
  %4279 = vmatprep.subr.bf16.mxu0 0
  %4280 = vmatpush2.bf16.msra.mxu0 0
  %4281 = vmatprep.subr.bf16.mxu0 0
  %4282 = vmatpush2.bf16.msra.mxu0 0
  %4283 = vmatprep.subr.bf16.mxu0 0
  %4284 = vmatpush2.bf16.msra.mxu0 0
  %4285 = vmatprep.subr.bf16.mxu0 0
  %4286 = vmatpush2.bf16.msra.mxu0 0
  %4287 = vmatprep.subr.bf16.mxu0 0
  %4288 = vmatpush2.bf16.msra.mxu0 0
  %4289 = vmatprep.subr.bf16.mxu0 0
  %4290 = vmatpush2.bf16.msra.mxu0 0
  %4291 = vmatprep.mubr.bf16.mxu0 0
  %4292 = vmatmul.mubr.bf16.gmra.mxu0 %v4257
  %v4293 = vpop.f32.mrf.mxu0
  %v4294 = vadd.f32 0.0, %v4293
  %v4295 = vpop.f32.mrf.mxu0
  %v4296 = vpop.f32.mrf.mxu0
  %v4297 = vadd.f32 0.0, %v4296
  %v4298 = vpop.f32.mrf.mxu0
  %4299 = vdwg.mxu0
  %v4300 = vadd.f32 %v4216, %v4294
  %v4301 = vadd.f32 %v4217, %v4297
  %v4302 = vmax.f32 %v4121, %v4123
  %v4303 = vmax.f32 %v4122, %v4124
  %v4304 = vmax.f32 %v4302, %v4125
  %v4305 = vmax.f32 %v4303, %v4126
  %v4306 = vpack.c.bf16 %v4305, %v4304
  %s4307 = scalar_lea.vmem %s5, 64
  %v4308 = vld [vmem:[%s4307] sm:$0xf]
  %v4309 = vld [vmem:[%s4307 + $0x4] sm:$0xf]
  %v4310 = vld [vmem:[%s4307 + $0x8] sm:$0xf]
  %v4311 = vld [vmem:[%s4307 + $0xc] sm:$0xf]
  %v4312 = vld [vmem:[%s4307 + $0x10] sm:$0xf]
  %v4313 = vld [vmem:[%s4307 + $0x14] sm:$0xf]
  %v4314 = vld [vmem:[%s4307 + $0x18] sm:$0xf]
  %v4315 = vld [vmem:[%s4307 + $0x1c] sm:$0xf]
  %v4324 = vunpack.c.l.b16 %v4308
  %v4325 = vunpack.c.l.b16 %v4309
  %v4326 = vunpack.c.l.b16 %v4310
  %v4327 = vunpack.c.l.b16 %v4311
  %v4328 = vunpack.c.l.b16 %v4312
  %v4329 = vunpack.c.l.b16 %v4313
  %v4330 = vunpack.c.l.b16 %v4314
  %v4331 = vunpack.c.l.b16 %v4315
  %v4332 = vpack.c.b16 %v4325, %v4324
  %v4333 = vpack.c.b16 %v4327, %v4326
  %v4334 = vpack.c.b16 %v4329, %v4328
  %v4335 = vpack.c.b16 %v4331, %v4330
  %v4341 = vsel %vm4165, %v4306, 0
  %4343 = vmatprep.subr.bf16.mxu0 0
  %4344 = vmatpush1.bf16.msra.mxu0 0
  %4345 = vmatprep.subr.bf16.mxu0 0
  %4346 = vmatpush1.bf16.msra.mxu0 0
  %4347 = vmatprep.subr.bf16.mxu0 0
  %4348 = vmatpush1.bf16.msra.mxu0 0
  %4349 = vmatprep.subr.bf16.mxu0 0
  %4350 = vmatpush1.bf16.msra.mxu0 0
  %4351 = vmatprep.subr.bf16.mxu0 0
  %4352 = vmatpush1.bf16.msra.mxu0 %v4335
  %4353 = vmatprep.subr.bf16.mxu0 0
  %4354 = vmatpush1.bf16.msra.mxu0 %v4334
  %4355 = vmatprep.subr.bf16.mxu0 0
  %4356 = vmatpush1.bf16.msra.mxu0 %v4333
  %4357 = vmatprep.subr.bf16.mxu0 0
  %4358 = vmatpush1.bf16.msra.mxu0 %v4332
  %4359 = vmatprep.subr.bf16.mxu0 0
  %4360 = vmatpush2.bf16.msra.mxu0 0
  %4361 = vmatprep.subr.bf16.mxu0 0
  %4362 = vmatpush2.bf16.msra.mxu0 0
  %4363 = vmatprep.subr.bf16.mxu0 0
  %4364 = vmatpush2.bf16.msra.mxu0 0
  %4365 = vmatprep.subr.bf16.mxu0 0
  %4366 = vmatpush2.bf16.msra.mxu0 0
  %4367 = vmatprep.subr.bf16.mxu0 0
  %4368 = vmatpush2.bf16.msra.mxu0 0
  %4369 = vmatprep.subr.bf16.mxu0 0
  %4370 = vmatpush2.bf16.msra.mxu0 0
  %4371 = vmatprep.subr.bf16.mxu0 0
  %4372 = vmatpush2.bf16.msra.mxu0 0
  %4373 = vmatprep.subr.bf16.mxu0 0
  %4374 = vmatpush2.bf16.msra.mxu0 0
  %4375 = vmatprep.mubr.bf16.mxu0 0
  %4376 = vmatmul.mubr.bf16.gmra.mxu0 %v4341
  %v4377 = vpop.f32.mrf.mxu0
  %v4378 = vadd.f32 0.0, %v4377
  %v4379 = vpop.f32.mrf.mxu0
  %v4380 = vpop.f32.mrf.mxu0
  %v4381 = vadd.f32 0.0, %v4380
  %v4382 = vpop.f32.mrf.mxu0
  %4383 = vdwg.mxu0
  %v4384 = vadd.f32 %v4300, %v4378
  %v4385 = vadd.f32 %v4301, %v4381
  %v4386 = vpack.c.bf16 %v4385, %v4384
  %v4387 = vld [vmem:[%s7] sm:$0xf]
  %v4388 = vld [vmem:[%s7 + $0x4] sm:$0xf]
  %v4389 = vld [vmem:[%s7 + $0x8] sm:$0xf]
  %v4390 = vld [vmem:[%s7 + $0xc] sm:$0xf]
  %v4391 = vld [vmem:[%s7 + $0x10] sm:$0xf]
  %v4392 = vld [vmem:[%s7 + $0x14] sm:$0xf]
  %v4393 = vld [vmem:[%s7 + $0x18] sm:$0xf]
  %v4394 = vld [vmem:[%s7 + $0x1c] sm:$0xf]
  %v4395 = vld [vmem:[%s7 + $0x20] sm:$0xf]
  %v4396 = vld [vmem:[%s7 + $0x24] sm:$0xf]
  %v4397 = vld [vmem:[%s7 + $0x28] sm:$0xf]
  %v4398 = vld [vmem:[%s7 + $0x2c] sm:$0xf]
  %v4399 = vld [vmem:[%s7 + $0x30] sm:$0xf]
  %v4400 = vld [vmem:[%s7 + $0x34] sm:$0xf]
  %v4401 = vld [vmem:[%s7 + $0x38] sm:$0xf]
  %v4402 = vld [vmem:[%s7 + $0x3c] sm:$0xf]
  %v4403 = vld [vmem:[%s8] sm:$0x1]
  %v4405 = vlaneseq
  %v4406 = vshrl.u32 %v4405, 7
  %v4407 = vsub.s32 0, %v4406
  %v4408 = vrot.slane %v4403, %v4407
  %v4426 = vunpack.c.l.b16 %v4387
  %v4427 = vunpack.c.l.b16 %v4388
  %v4428 = vunpack.c.l.b16 %v4389
  %v4429 = vunpack.c.l.b16 %v4390
  %v4430 = vunpack.c.l.b16 %v4391
  %v4431 = vunpack.c.l.b16 %v4392
  %v4432 = vunpack.c.l.b16 %v4393
  %v4433 = vunpack.c.l.b16 %v4394
  %v4434 = vunpack.c.l.b16 %v4395
  %v4435 = vunpack.c.l.b16 %v4396
  %v4436 = vunpack.c.l.b16 %v4397
  %v4437 = vunpack.c.l.b16 %v4398
  %v4438 = vunpack.c.l.b16 %v4399
  %v4439 = vunpack.c.l.b16 %v4400
  %v4440 = vunpack.c.l.b16 %v4401
  %v4441 = vunpack.c.l.b16 %v4402
  %v4442 = vpack.c.b16 %v4427, %v4426
  %v4443 = vpack.c.b16 %v4429, %v4428
  %v4444 = vpack.c.b16 %v4431, %v4430
  %v4445 = vpack.c.b16 %v4433, %v4432
  %v4446 = vpack.c.b16 %v4435, %v4434
  %v4447 = vpack.c.b16 %v4437, %v4436
  %v4448 = vpack.c.b16 %v4439, %v4438
  %v4449 = vpack.c.b16 %v4441, %v4440
  %4458 = vmatprep.subr.bf16.mxu0 0
  %4459 = vmatpush1.bf16.msra.mxu0 %v4449
  %4460 = vmatprep.subr.bf16.mxu0 0
  %4461 = vmatpush1.bf16.msra.mxu0 %v4448
  %4462 = vmatprep.subr.bf16.mxu0 0
  %4463 = vmatpush1.bf16.msra.mxu0 %v4447
  %4464 = vmatprep.subr.bf16.mxu0 0
  %4465 = vmatpush1.bf16.msra.mxu0 %v4446
  %4466 = vmatprep.subr.bf16.mxu0 0
  %4467 = vmatpush1.bf16.msra.mxu0 %v4445
  %4468 = vmatprep.subr.bf16.mxu0 0
  %4469 = vmatpush1.bf16.msra.mxu0 %v4444
  %4470 = vmatprep.subr.bf16.mxu0 0
  %4471 = vmatpush1.bf16.msra.mxu0 %v4443
  %4472 = vmatprep.subr.bf16.mxu0 0
  %4473 = vmatpush1.bf16.msra.mxu0 %v4442
  %4474 = vmatprep.subr.bf16.mxu0 0
  %4475 = vmatpush2.bf16.msra.mxu0 0
  %4476 = vmatprep.subr.bf16.mxu0 0
  %4477 = vmatpush2.bf16.msra.mxu0 0
  %4478 = vmatprep.subr.bf16.mxu0 0
  %4479 = vmatpush2.bf16.msra.mxu0 0
  %4480 = vmatprep.subr.bf16.mxu0 0
  %4481 = vmatpush2.bf16.msra.mxu0 0
  %4482 = vmatprep.subr.bf16.mxu0 0
  %4483 = vmatpush2.bf16.msra.mxu0 0
  %4484 = vmatprep.subr.bf16.mxu0 0
  %4485 = vmatpush2.bf16.msra.mxu0 0
  %4486 = vmatprep.subr.bf16.mxu0 0
  %4487 = vmatpush2.bf16.msra.mxu0 0
  %4488 = vmatprep.subr.bf16.mxu0 0
  %4489 = vmatpush2.bf16.msra.mxu0 0
  %4490 = vmatprep.mubr.bf16.mxu0 0
  %4491 = vmatmul.mubr.bf16.gmra.mxu0 %v4386
  %v4492 = vpop.f32.mrf.mxu0
  %v4493 = vadd.f32 %v4408, %v4492
  %v4494 = vpop.f32.mrf.mxu0
  %v4495 = vpop.f32.mrf.mxu0
  %v4496 = vadd.f32 %v4408, %v4495
  %v4497 = vpop.f32.mrf.mxu0
  %4498 = vdwg.mxu0
  %4499 = vst [vmem:[%s9] sm:$0xff] %v4493
  %4500 = vst [vmem:[%s9 + $0x8] sm:$0xff] %v4496
  // Predicated region
  $region38: #{cnn_forward.1} parent=0 // pred_check
    _
  $region39: #{cnn_forward.1} parent=0 // pred_check_branch
    %4502 = sbr.rel (0) target = $region41
  $region40: #{cnn_forward.1} parent=0 // pred_region
    _
  $region41: #{cnn_forward.1} parent=0 // pred_fallthru
    _
  // Predicated region
  $region42: #{cnn_forward.1} parent=0 // pred_check
    _
  $region43: #{cnn_forward.1} parent=0 // pred_check_branch
    %4504 = sbr.rel (0) target = $region45
  $region44: #{cnn_forward.1} parent=0 // pred_region
    _
  $region45: #{cnn_forward.1} parent=0 // pred_fallthru
    _

</llo_original>
